<compile_context>
chip_gen: v5e
topology: v5e:2x2
jax: 0.10.0
libtpu: 0.0.40
codegen_flags: <defaults>
</compile_context>

<pallas_src>
import math
import functools

import jax
import jax.numpy as jnp
from jax.experimental import pallas as pl
from jax.experimental.pallas import tpu as pltpu


# ----------------------------- in-kernel helpers -----------------------------

def _layer_norm(v, w, b, eps=1e-5):
    mu = jnp.mean(v, axis=-1, keepdims=True)
    var = jnp.mean((v - mu) ** 2, axis=-1, keepdims=True)
    return (v - mu) * jax.lax.rsqrt(var + eps) * w + b


# ------------------------------ fused kernel ----------------------------------

def trans_block_kernel(x_ref,
                       ln1_w_ref, ln1_b_ref, wqkv_ref, bqkv_ref,
                       wout_ref, bout_ref, ln2_w_ref, ln2_b_ref,
                       wfc1_ref, bfc1_ref, wfc2_ref, bfc2_ref,
                       lnp_w_ref, lnp_b_ref, proj_ref,
                       out_ref,
                       ctx_ref,
                       *, heads, left_tokens, mlp_chunk, gelu_bf16):
    x = x_ref[...]                                   # (B, L, D) f32
    B, L, D = x.shape
    dh = D // heads
    xf = x.reshape(B * L, D)

    # ----------------- attention branch (pre-LN) -----------------
    h = _layer_norm(xf, ln1_w_ref[...], ln1_b_ref[...]).astype(jnp.bfloat16)

    def _qkv_proj(c0):
        # One D-wide column slice of the fused in-proj; f32 accumulate + bias,
        # cast to bf16 right away (no (B*L, 3D) f32 intermediate).
        r = jnp.dot(h, wqkv_ref[:, c0:c0 + D],
                    preferred_element_type=jnp.float32) + bqkv_ref[:, c0:c0 + D]
        return r.astype(jnp.bfloat16).reshape(B, L, D)

    # 1/sqrt(dh) has been folded into the q columns of wqkv / bqkv.
    q = _qkv_proj(0)
    k = _qkv_proj(D)
    v = _qkv_proj(2 * D)

    # Per-head attention; two heads per group so each ctx store is 2*dh lanes
    # wide (a full 128-lane store for dh=64).  ctx scratch is bf16 since it is
    # only ever consumed by the bf16 wout matmul.
    hg = 2 if heads % 2 == 0 else 1
    for g in range(heads // hg):
        parts = []
        for hh in range(hg):
            c0 = (g * hg + hh) * dh
            sl = slice(c0, c0 + dh)
            s = jnp.einsum("bqd,bkd->bqk", q[:, :, sl], k[:, :, sl],
                           preferred_element_type=jnp.float32)        # (B, L, L)
            s = s - jnp.max(s, axis=-1, keepdims=True)
            p = jnp.exp(s)
            p = p * pl.reciprocal(jnp.sum(p, axis=-1, keepdims=True), approx=True)
            parts.append(jnp.einsum("bqk,bkd->bqd", p.astype(jnp.bfloat16),
                                    v[:, :, sl],
                                    preferred_element_type=jnp.float32))
        ctx_g = parts[0] if hg == 1 else jnp.concatenate(parts, axis=-1)
        c0 = g * hg * dh
        ctx_ref[:, c0:c0 + hg * dh] = (
            ctx_g.reshape(B * L, hg * dh).astype(jnp.bfloat16))

    attn = jnp.dot(ctx_ref[...], wout_ref[...],
                   preferred_element_type=jnp.float32) + bout_ref[...]
    x1 = xf + attn                                                    # (B*L, D) f32

    # ------------- MLP branch (pre-LN, QuickGELU), hidden-chunked -------------
    h2 = _layer_norm(x1, ln2_w_ref[...], ln2_b_ref[...]).astype(jnp.bfloat16)
    hidden = wfc1_ref.shape[1]
    y_flat = x1 + bfc2_ref[...]          # residual + fc2 bias (added once)
    for c0 in range(0, hidden, mlp_chunk):
        f = (jnp.dot(h2, wfc1_ref[:, c0:c0 + mlp_chunk],
                     preferred_element_type=jnp.float32)
             + bfc1_ref[:, c0:c0 + mlp_chunk])
        if gelu_bf16:
            sig = 1.0 / (1.0 + jnp.exp((-1.702 * f).astype(jnp.bfloat16)))
            f = f * sig.astype(jnp.float32)
        else:
            f = f * (1.0 / (1.0 + jnp.exp(-1.702 * f)))
        y_flat = y_flat + jnp.dot(f.astype(jnp.bfloat16),
                                  wfc2_ref[c0:c0 + mlp_chunk, :],
                                  preferred_element_type=jnp.float32)
    y = y_flat.reshape(B, L, D)                                       # post-block feats

    # ------------- Pruning + ln_post + proj (batched over B) -------------
    # topk-by-cls-similarity + gather + mean == masked mean over the
    # `left_tokens` best-ranked tokens.  torch.topk ordering (largest first,
    # lower index wins ties) is reproduced with a pairwise-compare rank; both
    # operands of the compare are broadcasts of the SAME sim tensor, so the
    # tie-break stays bitwise consistent.
    scale_p = float(D) ** -0.5
    inv_left = 1.0 / float(left_tokens)
    cls = y[:, 0:1, :]                                                # (B, 1, D)
    sim = jnp.sum(y * cls, axis=-1) * scale_p                         # (B, L)
    sim_row = sim[:, None, :]                                         # (B, 1, L) token t (lanes)
    sim_col = sim[:, :, None]                                         # (B, L, 1) token j (sublanes)
    jj = jax.lax.broadcasted_iota(jnp.int32, (L, L), 0)               # ranked token j
    tt = jax.lax.broadcasted_iota(jnp.int32, (L, L), 1)               # candidate token t
    # t beats j  <=>  sim[t] > sim[j]  or  (sim[t] == sim[j] and t < j)
    beats = (sim_row > sim_col) | ((sim_row == sim_col) & (tt < jj))  # (B, L, L)
    rank = jnp.sum(beats.astype(jnp.float32), axis=-1, keepdims=True)  # (B, L, 1)
    sel = (rank < float(left_tokens)).astype(jnp.float32)             # (B, L, 1)
    feat = jnp.sum(y * sel, axis=1) * inv_left                        # (B, D)

    feat = _layer_norm(feat, lnp_w_ref[...], lnp_b_ref[...])          # (B, D)
    out_ref[...] = jnp.dot(feat.astype(jnp.bfloat16), proj_ref[...],
                           preferred_element_type=jnp.float32)        # (B, 512)


# --------------------------------- wrapper ------------------------------------

def _pick_mlp_chunk(hidden):
    if hidden <= 1024:
        return hidden
    for c in (1024, 768, 512, 384, 256, 128):
        if hidden % c == 0:
            return c
    return hidden


def _default_gelu_bf16():
    # bf16 QuickGELU only where a bf16 VPU/EUP path exists (>= v6e).
    try:
        kind = jax.devices()[0].device_kind.lower()
    except Exception:
        return False
    return not any(t in kind for t in ("v2", "v3", "v4", "v5"))


def trans_block_forward(x_lnd, params, *, heads, keep_rate=0.5,
                        batch_block=None, mlp_chunk=None, gelu_bf16=None):
    """x_lnd: (L, N, D) float32 -> (N, 512) float32."""
    L, N, D = x_lnd.shape
    assert D % heads == 0
    out_dim = params["proj"].shape[1]
    hidden = params["wfc1"].shape[1]
    left_tokens = math.ceil(keep_rate * (L - 1)) + 1

    if batch_block is None:
        # v6e: aim for M = batch_block*L around 512-1024; v7x: re-derive for the
        # 64 MiB VMEM (drop to 4 if shapes are larger than ViT-B) and keep
        # N//batch_block >= 2 so the 'parallel' axis shards across both cores.
        batch_block = min(N, 8)
        while N % batch_block:
            batch_block -= 1
    assert N % batch_block == 0
    if mlp_chunk is None:
        mlp_chunk = _pick_mlp_chunk(hidden)
    assert hidden % mlp_chunk == 0
    if gelu_bf16 is None:
        gelu_bf16 = _default_gelu_bf16()

    # LND -> NLD (absorbs the module's x.permute(1, 0, 2)); see TODO(synk) above.
    x = jnp.transpose(x_lnd, (1, 0, 2))              # (N, L, D)

    # ---- parameter prep: fold 1/sqrt(dh) into q projection; bf16 MXU weights ----
    dh = D // heads
    qk_scale = dh ** -0.5
    col_scale = jnp.concatenate(
        [jnp.full((1, D), qk_scale, jnp.float32), jnp.ones((1, 2 * D), jnp.float32)],
        axis=1)
    wqkv = (params["wqkv"] * col_scale).astype(jnp.bfloat16)
    bqkv = params["bqkv"] * col_scale                # bias stays f32
    wout = params["wout"].astype(jnp.bfloat16)
    wfc1 = params["wfc1"].astype(jnp.bfloat16)
    wfc2 = params["wfc2"].astype(jnp.bfloat16)
    proj = params["proj"].astype(jnp.bfloat16)

    weight_args = [params["ln1_w"], params["ln1_b"], wqkv, bqkv,
                   wout, params["bout"], params["ln2_w"], params["ln2_b"],
                   wfc1, params["bfc1"], wfc2, params["bfc2"],
                   params["lnp_w"], params["lnp_b"], proj]

    x_spec = pl.BlockSpec((batch_block, L, D), lambda n: (n, 0, 0))
    out_spec = pl.BlockSpec((batch_block, out_dim), lambda n: (n, 0))

    kernel = functools.partial(trans_block_kernel, heads=heads,
                               left_tokens=left_tokens, mlp_chunk=mlp_chunk,
                               gelu_bf16=gelu_bf16)

    def _weight_spec(shape, single_buffer):
        idx = lambda n, _nd=len(shape): (0,) * _nd
        if single_buffer:
            # constant index_map -> double buffering only doubles VMEM use
            return pl.BlockSpec(shape, idx, pipeline_mode=pl.Buffered(1))
        return pl.BlockSpec(shape, idx)

    def _call(single_buffer_weights):
        return pl.pallas_call(
            kernel,
            out_shape=jax.ShapeDtypeStruct((N, out_dim), jnp.float32),
            grid=(N // batch_block,),
            in_specs=[x_spec] + [_weight_spec(w.shape, single_buffer_weights)
                                 for w in weight_args],
            out_specs=out_spec,
            scratch_shapes=[pltpu.VMEM((batch_block * L, D), jnp.bfloat16)],
            compiler_params=pltpu.CompilerParams(
                # batch-grid axis is independent -> shard across TCs on v7x
                dimension_semantics=("parallel",),
                # above v5e (16 MiB) / v6e (32 MiB) scoped defaults, within
                # v7x's 64 MiB physical; re-derive for production shapes.
                vmem_limit_bytes=48 * 1024 * 1024,
            ),
        )(x, *weight_args)

    try:
        return _call(True)
    except Exception:
        # Fallback for jax versions without BlockSpec(pipeline_mode=...):
        # default (double-buffered) weight specs.
        return _call(False)


# --------------------------- parameter construction ---------------------------

def init_params(key, width, out_dim=512):
    D = width
    ks = jax.random.split(key, 10)
    s = 0.02
    f32 = jnp.float32
    return {
        # ResidualAttentionBlock
        "ln1_w": jnp.ones((1, D), f32),
        "ln1_b": jnp.zeros((1, D), f32),
        "wqkv": (s * jax.random.normal(ks[0], (D, 3 * D))).astype(f32),   # (in, 3*out)
        "bqkv": (s * jax.random.normal(ks[1], (1, 3 * D))).astype(f32),
        "wout": (s * jax.random.normal(ks[2], (D, D))).astype(f32),       # (in, out)
        "bout": (s * jax.random.normal(ks[3], (1, D))).astype(f32),
        "ln2_w": jnp.ones((1, D), f32),
        "ln2_b": jnp.zeros((1, D), f32),
        "wfc1": (s * jax.random.normal(ks[4], (D, 4 * D))).astype(f32),
        "bfc1": (s * jax.random.normal(ks[5], (1, 4 * D))).astype(f32),
        "wfc2": (s * jax.random.normal(ks[6], (4 * D, D))).astype(f32),
        "bfc2": (s * jax.random.normal(ks[7], (1, D))).astype(f32),
        # ln_post + proj
        "lnp_w": jnp.ones((1, D), f32),
        "lnp_b": jnp.zeros((1, D), f32),
        "proj": ((D ** -0.5) * jax.random.normal(ks[8], (D, out_dim))).astype(f32),
    }


# ----------------------------------- main -------------------------------------

if __name__ == "__main__":
    # small, module-consistent shapes: seq L=8, batch N=2, width D=32, heads=4
    L, N, D, HEADS = 8, 2, 32, 4
    key = jax.random.PRNGKey(0)
    k_x, k_p = jax.random.split(key)
    x = jax.random.normal(k_x, (L, N, D), dtype=jnp.float32)   # LND, like CLIP
    params = init_params(k_p, D)

    out = trans_block_forward(x, params, heads=HEADS, keep_rate=0.5)
    jax.block_until_ready(out)
    assert out.shape == (N, 512), out.shape
    assert bool(jnp.all(jnp.isfinite(out)))
    print("KERNEL_OK")
</pallas_src>

<mosaic_0001>
module attributes {stable_mosaic.version = 11 : i64} {
  func.func @trans_block_kernel(%arg0: i32, %arg1: memref<2x8x32xf32, #tpu.memory_space<vmem>>, %arg2: memref<1x32xf32, #tpu.memory_space<vmem>>, %arg3: memref<1x32xf32, #tpu.memory_space<vmem>>, %arg4: memref<32x96xbf16, #tpu.memory_space<vmem>>, %arg5: memref<1x96xf32, #tpu.memory_space<vmem>>, %arg6: memref<32x32xbf16, #tpu.memory_space<vmem>>, %arg7: memref<1x32xf32, #tpu.memory_space<vmem>>, %arg8: memref<1x32xf32, #tpu.memory_space<vmem>>, %arg9: memref<1x32xf32, #tpu.memory_space<vmem>>, %arg10: memref<32x128xbf16, #tpu.memory_space<vmem>>, %arg11: memref<1x128xf32, #tpu.memory_space<vmem>>, %arg12: memref<128x32xbf16, #tpu.memory_space<vmem>>, %arg13: memref<1x32xf32, #tpu.memory_space<vmem>>, %arg14: memref<1x32xf32, #tpu.memory_space<vmem>>, %arg15: memref<1x32xf32, #tpu.memory_space<vmem>>, %arg16: memref<32x512xbf16, #tpu.memory_space<vmem>>, %arg17: memref<2x512xf32, #tpu.memory_space<vmem>>, %arg18: memref<16x32xbf16, #tpu.memory_space<vmem>>) attributes {dimension_semantics = [#tpu.dimension_semantics<parallel>], iteration_bounds = array<i64: 1>, scalar_prefetch = 0 : i64, scratch_operands = 1 : i64, tpu.core_type = #tpu.core_type<tc>, window_params = [{transform_indices = @transform_0, window_bounds = array<i64: 2, 8, 32>}, {pipeline_mode = #tpu.pipeline_mode<synchronous>, transform_indices = @transform_1, window_bounds = array<i64: 1, 32>}, {pipeline_mode = #tpu.pipeline_mode<synchronous>, transform_indices = @transform_2, window_bounds = array<i64: 1, 32>}, {pipeline_mode = #tpu.pipeline_mode<synchronous>, transform_indices = @transform_3, window_bounds = array<i64: 32, 96>}, {pipeline_mode = #tpu.pipeline_mode<synchronous>, transform_indices = @transform_4, window_bounds = array<i64: 1, 96>}, {pipeline_mode = #tpu.pipeline_mode<synchronous>, transform_indices = @transform_5, window_bounds = array<i64: 32, 32>}, {pipeline_mode = #tpu.pipeline_mode<synchronous>, transform_indices = @transform_6, window_bounds = array<i64: 1, 32>}, {pipeline_mode = #tpu.pipeline_mode<synchronous>, transform_indices = @transform_7, window_bounds = array<i64: 1, 32>}, {pipeline_mode = #tpu.pipeline_mode<synchronous>, transform_indices = @transform_8, window_bounds = array<i64: 1, 32>}, {pipeline_mode = #tpu.pipeline_mode<synchronous>, transform_indices = @transform_9, window_bounds = array<i64: 32, 128>}, {pipeline_mode = #tpu.pipeline_mode<synchronous>, transform_indices = @transform_10, window_bounds = array<i64: 1, 128>}, {pipeline_mode = #tpu.pipeline_mode<synchronous>, transform_indices = @transform_11, window_bounds = array<i64: 128, 32>}, {pipeline_mode = #tpu.pipeline_mode<synchronous>, transform_indices = @transform_12, window_bounds = array<i64: 1, 32>}, {pipeline_mode = #tpu.pipeline_mode<synchronous>, transform_indices = @transform_13, window_bounds = array<i64: 1, 32>}, {pipeline_mode = #tpu.pipeline_mode<synchronous>, transform_indices = @transform_14, window_bounds = array<i64: 1, 32>}, {pipeline_mode = #tpu.pipeline_mode<synchronous>, transform_indices = @transform_15, window_bounds = array<i64: 32, 512>}, {transform_indices = @transform_16, window_bounds = array<i64: 2, 512>}]} {
    %c0 = arith.constant 0 : index
    %c0_0 = arith.constant 0 : index
    %c0_1 = arith.constant 0 : index
    %0 = vector.load %arg1[%c0, %c0_0, %c0_1] : memref<2x8x32xf32, #tpu.memory_space<vmem>>, vector<2x8x32xf32>
    %1 = vector.shape_cast %0 : vector<2x8x32xf32> to vector<16x32xf32>
    %c0_2 = arith.constant 0 : index
    %c0_3 = arith.constant 0 : index
    %2 = vector.load %arg2[%c0_2, %c0_3] : memref<1x32xf32, #tpu.memory_space<vmem>>, vector<1x32xf32>
    %c0_4 = arith.constant 0 : index
    %c0_5 = arith.constant 0 : index
    %3 = vector.load %arg3[%c0_4, %c0_5] : memref<1x32xf32, #tpu.memory_space<vmem>>, vector<1x32xf32>
    %cst = arith.constant dense<0.000000e+00> : vector<16xf32>
    %4 = vector.multi_reduction <add>, %1, %cst [1] : vector<16x32xf32> to vector<16xf32>
    %5 = vector.shape_cast %4 : vector<16xf32> to vector<16x1xf32>
    %cst_6 = arith.constant 3.200000e+01 : f32
    %6 = vector.broadcast %cst_6 : f32 to vector<16x1xf32>
    %7 = arith.divf %5, %6 : vector<16x1xf32>
    %8 = vector.broadcast %7 : vector<16x1xf32> to vector<16x32xf32>
    %9 = arith.subf %1, %8 : vector<16x32xf32>
    %10 = arith.mulf %9, %9 : vector<16x32xf32>
    %cst_7 = arith.constant dense<0.000000e+00> : vector<16xf32>
    %11 = vector.multi_reduction <add>, %10, %cst_7 [1] : vector<16x32xf32> to vector<16xf32>
    %12 = vector.shape_cast %11 : vector<16xf32> to vector<16x1xf32>
    %cst_8 = arith.constant 3.200000e+01 : f32
    %13 = vector.broadcast %cst_8 : f32 to vector<16x1xf32>
    %14 = arith.divf %12, %13 : vector<16x1xf32>
    %15 = vector.broadcast %7 : vector<16x1xf32> to vector<16x32xf32>
    %16 = arith.subf %1, %15 : vector<16x32xf32>
    %cst_9 = arith.constant 9.99999974E-6 : f32
    %17 = vector.broadcast %cst_9 : f32 to vector<16x1xf32>
    %18 = arith.addf %14, %17 : vector<16x1xf32>
    %19 = math.rsqrt %18 : vector<16x1xf32>
    %20 = vector.broadcast %19 : vector<16x1xf32> to vector<16x32xf32>
    %21 = arith.mulf %16, %20 : vector<16x32xf32>
    %22 = vector.broadcast %2 : vector<1x32xf32> to vector<16x32xf32>
    %23 = arith.mulf %21, %22 : vector<16x32xf32>
    %24 = vector.broadcast %3 : vector<1x32xf32> to vector<16x32xf32>
    %25 = arith.addf %23, %24 : vector<16x32xf32>
    %26 = arith.truncf %25 : vector<16x32xf32> to vector<16x32xbf16>
    %c0_10 = arith.constant 0 : index
    %c0_11 = arith.constant 0 : index
    %27 = vector.load %arg4[%c0_10, %c0_11] : memref<32x96xbf16, #tpu.memory_space<vmem>>, vector<32x32xbf16>
    %cst_12 = arith.constant dense<0.000000e+00> : vector<16x32xf32>
    %28 = tpu.matmul %26, %27, %cst_12 {dimension_numbers = #tpu.dot_dimension_numbers<[1], [0], [0], [1], [0, 0, 1, 1], [], []>} : vector<16x32xbf16>, vector<32x32xbf16>, vector<16x32xf32> -> vector<16x32xf32>
    %c0_13 = arith.constant 0 : index
    %c0_14 = arith.constant 0 : index
    %29 = vector.load %arg5[%c0_13, %c0_14] : memref<1x96xf32, #tpu.memory_space<vmem>>, vector<1x32xf32>
    %30 = vector.broadcast %29 : vector<1x32xf32> to vector<16x32xf32>
    %31 = arith.addf %28, %30 : vector<16x32xf32>
    %32 = arith.truncf %31 : vector<16x32xf32> to vector<16x32xbf16>
    %33 = vector.shape_cast %32 : vector<16x32xbf16> to vector<2x8x32xbf16>
    %c0_15 = arith.constant 0 : index
    %c32 = arith.constant 32 : index
    %34 = vector.load %arg4[%c0_15, %c32] : memref<32x96xbf16, #tpu.memory_space<vmem>>, vector<32x32xbf16>
    %cst_16 = arith.constant dense<0.000000e+00> : vector<16x32xf32>
    %35 = tpu.matmul %26, %34, %cst_16 {dimension_numbers = #tpu.dot_dimension_numbers<[1], [0], [0], [1], [0, 0, 1, 1], [], []>} : vector<16x32xbf16>, vector<32x32xbf16>, vector<16x32xf32> -> vector<16x32xf32>
    %c0_17 = arith.constant 0 : index
    %c32_18 = arith.constant 32 : index
    %36 = vector.load %arg5[%c0_17, %c32_18] : memref<1x96xf32, #tpu.memory_space<vmem>>, vector<1x32xf32>
    %37 = vector.broadcast %36 : vector<1x32xf32> to vector<16x32xf32>
    %38 = arith.addf %35, %37 : vector<16x32xf32>
    %39 = arith.truncf %38 : vector<16x32xf32> to vector<16x32xbf16>
    %40 = vector.shape_cast %39 : vector<16x32xbf16> to vector<2x8x32xbf16>
    %c0_19 = arith.constant 0 : index
    %c64 = arith.constant 64 : index
    %41 = vector.load %arg4[%c0_19, %c64] : memref<32x96xbf16, #tpu.memory_space<vmem>>, vector<32x32xbf16>
    %cst_20 = arith.constant dense<0.000000e+00> : vector<16x32xf32>
    %42 = tpu.matmul %26, %41, %cst_20 {dimension_numbers = #tpu.dot_dimension_numbers<[1], [0], [0], [1], [0, 0, 1, 1], [], []>} : vector<16x32xbf16>, vector<32x32xbf16>, vector<16x32xf32> -> vector<16x32xf32>
    %c0_21 = arith.constant 0 : index
    %c64_22 = arith.constant 64 : index
    %43 = vector.load %arg5[%c0_21, %c64_22] : memref<1x96xf32, #tpu.memory_space<vmem>>, vector<1x32xf32>
    %44 = vector.broadcast %43 : vector<1x32xf32> to vector<16x32xf32>
    %45 = arith.addf %42, %44 : vector<16x32xf32>
    %46 = arith.truncf %45 : vector<16x32xf32> to vector<16x32xbf16>
    %47 = vector.shape_cast %46 : vector<16x32xbf16> to vector<2x8x32xbf16>
    %48 = vector.extract_strided_slice %33 {offsets = [0, 0, 0], sizes = [2, 8, 8], strides = [1, 1, 1]} : vector<2x8x32xbf16> to vector<2x8x8xbf16>
    %49 = vector.extract_strided_slice %40 {offsets = [0, 0, 0], sizes = [2, 8, 8], strides = [1, 1, 1]} : vector<2x8x32xbf16> to vector<2x8x8xbf16>
    "tpu.trace_start"() <{level = 10 : i32, message = "bqd,bkd->bqk"}> : () -> ()
    %cst_23 = arith.constant dense<0.000000e+00> : vector<2x8x8xf32>
    %50 = tpu.matmul %48, %49, %cst_23 {dimension_numbers = #tpu.dot_dimension_numbers<[2], [2], [1], [1], [0, 0, 0, 1, 1, 1], [0], [0]>} : vector<2x8x8xbf16>, vector<2x8x8xbf16>, vector<2x8x8xf32> -> vector<2x8x8xf32>
    "tpu.trace_stop"() : () -> ()
    %cst_24 = arith.constant dense<0xFF800000> : vector<2x8xf32>
    %51 = vector.multi_reduction <maximumf>, %50, %cst_24 [2] : vector<2x8x8xf32> to vector<2x8xf32>
    %52 = vector.shape_cast %51 : vector<2x8xf32> to vector<2x8x1xf32>
    %53 = vector.broadcast %52 : vector<2x8x1xf32> to vector<2x8x8xf32>
    %54 = arith.subf %50, %53 : vector<2x8x8xf32>
    %55 = math.exp %54 : vector<2x8x8xf32>
    %cst_25 = arith.constant dense<0.000000e+00> : vector<2x8xf32>
    %56 = vector.multi_reduction <add>, %55, %cst_25 [2] : vector<2x8x8xf32> to vector<2x8xf32>
    %57 = vector.shape_cast %56 : vector<2x8xf32> to vector<2x8x1xf32>
    %58 = tpu.reciprocal %57 {approx = true} : vector<2x8x1xf32> -> vector<2x8x1xf32>
    %59 = vector.broadcast %58 : vector<2x8x1xf32> to vector<2x8x8xf32>
    %60 = arith.mulf %55, %59 : vector<2x8x8xf32>
    %61 = arith.truncf %60 : vector<2x8x8xf32> to vector<2x8x8xbf16>
    %62 = vector.extract_strided_slice %47 {offsets = [0, 0, 0], sizes = [2, 8, 8], strides = [1, 1, 1]} : vector<2x8x32xbf16> to vector<2x8x8xbf16>
    "tpu.trace_start"() <{level = 10 : i32, message = "bqk,bkd->bqd"}> : () -> ()
    %cst_26 = arith.constant dense<0.000000e+00> : vector<2x8x8xf32>
    %63 = tpu.matmul %61, %62, %cst_26 {dimension_numbers = #tpu.dot_dimension_numbers<[2], [1], [1], [2], [0, 0, 0, 1, 1, 2], [0], [0]>} : vector<2x8x8xbf16>, vector<2x8x8xbf16>, vector<2x8x8xf32> -> vector<2x8x8xf32>
    "tpu.trace_stop"() : () -> ()
    %64 = vector.extract_strided_slice %33 {offsets = [0, 0, 8], sizes = [2, 8, 8], strides = [1, 1, 1]} : vector<2x8x32xbf16> to vector<2x8x8xbf16>
    %65 = vector.extract_strided_slice %40 {offsets = [0, 0, 8], sizes = [2, 8, 8], strides = [1, 1, 1]} : vector<2x8x32xbf16> to vector<2x8x8xbf16>
    "tpu.trace_start"() <{level = 10 : i32, message = "bqd,bkd->bqk"}> : () -> ()
    %cst_27 = arith.constant dense<0.000000e+00> : vector<2x8x8xf32>
    %66 = tpu.matmul %64, %65, %cst_27 {dimension_numbers = #tpu.dot_dimension_numbers<[2], [2], [1], [1], [0, 0, 0, 1, 1, 1], [0], [0]>} : vector<2x8x8xbf16>, vector<2x8x8xbf16>, vector<2x8x8xf32> -> vector<2x8x8xf32>
    "tpu.trace_stop"() : () -> ()
    %cst_28 = arith.constant dense<0xFF800000> : vector<2x8xf32>
    %67 = vector.multi_reduction <maximumf>, %66, %cst_28 [2] : vector<2x8x8xf32> to vector<2x8xf32>
    %68 = vector.shape_cast %67 : vector<2x8xf32> to vector<2x8x1xf32>
    %69 = vector.broadcast %68 : vector<2x8x1xf32> to vector<2x8x8xf32>
    %70 = arith.subf %66, %69 : vector<2x8x8xf32>
    %71 = math.exp %70 : vector<2x8x8xf32>
    %cst_29 = arith.constant dense<0.000000e+00> : vector<2x8xf32>
    %72 = vector.multi_reduction <add>, %71, %cst_29 [2] : vector<2x8x8xf32> to vector<2x8xf32>
    %73 = vector.shape_cast %72 : vector<2x8xf32> to vector<2x8x1xf32>
    %74 = tpu.reciprocal %73 {approx = true} : vector<2x8x1xf32> -> vector<2x8x1xf32>
    %75 = vector.broadcast %74 : vector<2x8x1xf32> to vector<2x8x8xf32>
    %76 = arith.mulf %71, %75 : vector<2x8x8xf32>
    %77 = arith.truncf %76 : vector<2x8x8xf32> to vector<2x8x8xbf16>
    %78 = vector.extract_strided_slice %47 {offsets = [0, 0, 8], sizes = [2, 8, 8], strides = [1, 1, 1]} : vector<2x8x32xbf16> to vector<2x8x8xbf16>
    "tpu.trace_start"() <{level = 10 : i32, message = "bqk,bkd->bqd"}> : () -> ()
    %cst_30 = arith.constant dense<0.000000e+00> : vector<2x8x8xf32>
    %79 = tpu.matmul %77, %78, %cst_30 {dimension_numbers = #tpu.dot_dimension_numbers<[2], [1], [1], [2], [0, 0, 0, 1, 1, 2], [0], [0]>} : vector<2x8x8xbf16>, vector<2x8x8xbf16>, vector<2x8x8xf32> -> vector<2x8x8xf32>
    "tpu.trace_stop"() : () -> ()
    %80 = tpu.concatenate %63, %79 in 2 : vector<2x8x8xf32>, vector<2x8x8xf32> -> vector<2x8x16xf32>
    %81 = vector.shape_cast %80 : vector<2x8x16xf32> to vector<16x16xf32>
    %82 = arith.truncf %81 : vector<16x16xf32> to vector<16x16xbf16>
    %c0_31 = arith.constant 0 : index
    %c0_32 = arith.constant 0 : index
    %83 = vector.load %arg18[%c0_31, %c0_32] : memref<16x32xbf16, #tpu.memory_space<vmem>>, vector<16x16xbf16>
    tpu.vector_store %arg18[%c0_31, %c0_32], %82 {strides = array<i32>} : memref<16x32xbf16, #tpu.memory_space<vmem>>, vector<16x16xbf16>,
    %84 = vector.extract_strided_slice %33 {offsets = [0, 0, 16], sizes = [2, 8, 8], strides = [1, 1, 1]} : vector<2x8x32xbf16> to vector<2x8x8xbf16>
    %85 = vector.extract_strided_slice %40 {offsets = [0, 0, 16], sizes = [2, 8, 8], strides = [1, 1, 1]} : vector<2x8x32xbf16> to vector<2x8x8xbf16>
    "tpu.trace_start"() <{level = 10 : i32, message = "bqd,bkd->bqk"}> : () -> ()
    %cst_33 = arith.constant dense<0.000000e+00> : vector<2x8x8xf32>
    %86 = tpu.matmul %84, %85, %cst_33 {dimension_numbers = #tpu.dot_dimension_numbers<[2], [2], [1], [1], [0, 0, 0, 1, 1, 1], [0], [0]>} : vector<2x8x8xbf16>, vector<2x8x8xbf16>, vector<2x8x8xf32> -> vector<2x8x8xf32>
    "tpu.trace_stop"() : () -> ()
    %cst_34 = arith.constant dense<0xFF800000> : vector<2x8xf32>
    %87 = vector.multi_reduction <maximumf>, %86, %cst_34 [2] : vector<2x8x8xf32> to vector<2x8xf32>
    %88 = vector.shape_cast %87 : vector<2x8xf32> to vector<2x8x1xf32>
    %89 = vector.broadcast %88 : vector<2x8x1xf32> to vector<2x8x8xf32>
    %90 = arith.subf %86, %89 : vector<2x8x8xf32>
    %91 = math.exp %90 : vector<2x8x8xf32>
    %cst_35 = arith.constant dense<0.000000e+00> : vector<2x8xf32>
    %92 = vector.multi_reduction <add>, %91, %cst_35 [2] : vector<2x8x8xf32> to vector<2x8xf32>
    %93 = vector.shape_cast %92 : vector<2x8xf32> to vector<2x8x1xf32>
    %94 = tpu.reciprocal %93 {approx = true} : vector<2x8x1xf32> -> vector<2x8x1xf32>
    %95 = vector.broadcast %94 : vector<2x8x1xf32> to vector<2x8x8xf32>
    %96 = arith.mulf %91, %95 : vector<2x8x8xf32>
    %97 = arith.truncf %96 : vector<2x8x8xf32> to vector<2x8x8xbf16>
    %98 = vector.extract_strided_slice %47 {offsets = [0, 0, 16], sizes = [2, 8, 8], strides = [1, 1, 1]} : vector<2x8x32xbf16> to vector<2x8x8xbf16>
    "tpu.trace_start"() <{level = 10 : i32, message = "bqk,bkd->bqd"}> : () -> ()
    %cst_36 = arith.constant dense<0.000000e+00> : vector<2x8x8xf32>
    %99 = tpu.matmul %97, %98, %cst_36 {dimension_numbers = #tpu.dot_dimension_numbers<[2], [1], [1], [2], [0, 0, 0, 1, 1, 2], [0], [0]>} : vector<2x8x8xbf16>, vector<2x8x8xbf16>, vector<2x8x8xf32> -> vector<2x8x8xf32>
    "tpu.trace_stop"() : () -> ()
    %100 = vector.extract_strided_slice %33 {offsets = [0, 0, 24], sizes = [2, 8, 8], strides = [1, 1, 1]} : vector<2x8x32xbf16> to vector<2x8x8xbf16>
    %101 = vector.extract_strided_slice %40 {offsets = [0, 0, 24], sizes = [2, 8, 8], strides = [1, 1, 1]} : vector<2x8x32xbf16> to vector<2x8x8xbf16>
    "tpu.trace_start"() <{level = 10 : i32, message = "bqd,bkd->bqk"}> : () -> ()
    %cst_37 = arith.constant dense<0.000000e+00> : vector<2x8x8xf32>
    %102 = tpu.matmul %100, %101, %cst_37 {dimension_numbers = #tpu.dot_dimension_numbers<[2], [2], [1], [1], [0, 0, 0, 1, 1, 1], [0], [0]>} : vector<2x8x8xbf16>, vector<2x8x8xbf16>, vector<2x8x8xf32> -> vector<2x8x8xf32>
    "tpu.trace_stop"() : () -> ()
    %cst_38 = arith.constant dense<0xFF800000> : vector<2x8xf32>
    %103 = vector.multi_reduction <maximumf>, %102, %cst_38 [2] : vector<2x8x8xf32> to vector<2x8xf32>
    %104 = vector.shape_cast %103 : vector<2x8xf32> to vector<2x8x1xf32>
    %105 = vector.broadcast %104 : vector<2x8x1xf32> to vector<2x8x8xf32>
    %106 = arith.subf %102, %105 : vector<2x8x8xf32>
    %107 = math.exp %106 : vector<2x8x8xf32>
    %cst_39 = arith.constant dense<0.000000e+00> : vector<2x8xf32>
    %108 = vector.multi_reduction <add>, %107, %cst_39 [2] : vector<2x8x8xf32> to vector<2x8xf32>
    %109 = vector.shape_cast %108 : vector<2x8xf32> to vector<2x8x1xf32>
    %110 = tpu.reciprocal %109 {approx = true} : vector<2x8x1xf32> -> vector<2x8x1xf32>
    %111 = vector.broadcast %110 : vector<2x8x1xf32> to vector<2x8x8xf32>
    %112 = arith.mulf %107, %111 : vector<2x8x8xf32>
    %113 = arith.truncf %112 : vector<2x8x8xf32> to vector<2x8x8xbf16>
    %114 = vector.extract_strided_slice %47 {offsets = [0, 0, 24], sizes = [2, 8, 8], strides = [1, 1, 1]} : vector<2x8x32xbf16> to vector<2x8x8xbf16>
    "tpu.trace_start"() <{level = 10 : i32, message = "bqk,bkd->bqd"}> : () -> ()
    %cst_40 = arith.constant dense<0.000000e+00> : vector<2x8x8xf32>
    %115 = tpu.matmul %113, %114, %cst_40 {dimension_numbers = #tpu.dot_dimension_numbers<[2], [1], [1], [2], [0, 0, 0, 1, 1, 2], [0], [0]>} : vector<2x8x8xbf16>, vector<2x8x8xbf16>, vector<2x8x8xf32> -> vector<2x8x8xf32>
    "tpu.trace_stop"() : () -> ()
    %116 = tpu.concatenate %99, %115 in 2 : vector<2x8x8xf32>, vector<2x8x8xf32> -> vector<2x8x16xf32>
    %117 = vector.shape_cast %116 : vector<2x8x16xf32> to vector<16x16xf32>
    %118 = arith.truncf %117 : vector<16x16xf32> to vector<16x16xbf16>
    %c0_41 = arith.constant 0 : index
    %c16 = arith.constant 16 : index
    %119 = vector.load %arg18[%c0_41, %c16] : memref<16x32xbf16, #tpu.memory_space<vmem>>, vector<16x16xbf16>
    tpu.vector_store %arg18[%c0_41, %c16], %118 {strides = array<i32>} : memref<16x32xbf16, #tpu.memory_space<vmem>>, vector<16x16xbf16>,
    %c0_42 = arith.constant 0 : index
    %c0_43 = arith.constant 0 : index
    %120 = vector.load %arg18[%c0_42, %c0_43] : memref<16x32xbf16, #tpu.memory_space<vmem>>, vector<16x32xbf16>
    %c0_44 = arith.constant 0 : index
    %c0_45 = arith.constant 0 : index
    %121 = vector.load %arg6[%c0_44, %c0_45] : memref<32x32xbf16, #tpu.memory_space<vmem>>, vector<32x32xbf16>
    %cst_46 = arith.constant dense<0.000000e+00> : vector<16x32xf32>
    %122 = tpu.matmul %120, %121, %cst_46 {dimension_numbers = #tpu.dot_dimension_numbers<[1], [0], [0], [1], [0, 0, 1, 1], [], []>} : vector<16x32xbf16>, vector<32x32xbf16>, vector<16x32xf32> -> vector<16x32xf32>
    %c0_47 = arith.constant 0 : index
    %c0_48 = arith.constant 0 : index
    %123 = vector.load %arg7[%c0_47, %c0_48] : memref<1x32xf32, #tpu.memory_space<vmem>>, vector<1x32xf32>
    %124 = vector.broadcast %123 : vector<1x32xf32> to vector<16x32xf32>
    %125 = arith.addf %122, %124 : vector<16x32xf32>
    %126 = arith.addf %1, %125 : vector<16x32xf32>
    %c0_49 = arith.constant 0 : index
    %c0_50 = arith.constant 0 : index
    %127 = vector.load %arg8[%c0_49, %c0_50] : memref<1x32xf32, #tpu.memory_space<vmem>>, vector<1x32xf32>
    %c0_51 = arith.constant 0 : index
    %c0_52 = arith.constant 0 : index
    %128 = vector.load %arg9[%c0_51, %c0_52] : memref<1x32xf32, #tpu.memory_space<vmem>>, vector<1x32xf32>
    %cst_53 = arith.constant dense<0.000000e+00> : vector<16xf32>
    %129 = vector.multi_reduction <add>, %126, %cst_53 [1] : vector<16x32xf32> to vector<16xf32>
    %130 = vector.shape_cast %129 : vector<16xf32> to vector<16x1xf32>
    %cst_54 = arith.constant 3.200000e+01 : f32
    %131 = vector.broadcast %cst_54 : f32 to vector<16x1xf32>
    %132 = arith.divf %130, %131 : vector<16x1xf32>
    %133 = vector.broadcast %132 : vector<16x1xf32> to vector<16x32xf32>
    %134 = arith.subf %126, %133 : vector<16x32xf32>
    %135 = arith.mulf %134, %134 : vector<16x32xf32>
    %cst_55 = arith.constant dense<0.000000e+00> : vector<16xf32>
    %136 = vector.multi_reduction <add>, %135, %cst_55 [1] : vector<16x32xf32> to vector<16xf32>
    %137 = vector.shape_cast %136 : vector<16xf32> to vector<16x1xf32>
    %cst_56 = arith.constant 3.200000e+01 : f32
    %138 = vector.broadcast %cst_56 : f32 to vector<16x1xf32>
    %139 = arith.divf %137, %138 : vector<16x1xf32>
    %140 = vector.broadcast %132 : vector<16x1xf32> to vector<16x32xf32>
    %141 = arith.subf %126, %140 : vector<16x32xf32>
    %cst_57 = arith.constant 9.99999974E-6 : f32
    %142 = vector.broadcast %cst_57 : f32 to vector<16x1xf32>
    %143 = arith.addf %139, %142 : vector<16x1xf32>
    %144 = math.rsqrt %143 : vector<16x1xf32>
    %145 = vector.broadcast %144 : vector<16x1xf32> to vector<16x32xf32>
    %146 = arith.mulf %141, %145 : vector<16x32xf32>
    %147 = vector.broadcast %127 : vector<1x32xf32> to vector<16x32xf32>
    %148 = arith.mulf %146, %147 : vector<16x32xf32>
    %149 = vector.broadcast %128 : vector<1x32xf32> to vector<16x32xf32>
    %150 = arith.addf %148, %149 : vector<16x32xf32>
    %151 = arith.truncf %150 : vector<16x32xf32> to vector<16x32xbf16>
    %c0_58 = arith.constant 0 : index
    %c0_59 = arith.constant 0 : index
    %152 = vector.load %arg13[%c0_58, %c0_59] : memref<1x32xf32, #tpu.memory_space<vmem>>, vector<1x32xf32>
    %153 = vector.broadcast %152 : vector<1x32xf32> to vector<16x32xf32>
    %154 = arith.addf %126, %153 : vector<16x32xf32>
    %c0_60 = arith.constant 0 : index
    %c0_61 = arith.constant 0 : index
    %155 = vector.load %arg10[%c0_60, %c0_61] : memref<32x128xbf16, #tpu.memory_space<vmem>>, vector<32x128xbf16>
    %cst_62 = arith.constant dense<0.000000e+00> : vector<16x128xf32>
    %156 = tpu.matmul %151, %155, %cst_62 {dimension_numbers = #tpu.dot_dimension_numbers<[1], [0], [0], [1], [0, 0, 1, 1], [], []>} : vector<16x32xbf16>, vector<32x128xbf16>, vector<16x128xf32> -> vector<16x128xf32>
    %c0_63 = arith.constant 0 : index
    %c0_64 = arith.constant 0 : index
    %157 = vector.load %arg11[%c0_63, %c0_64] : memref<1x128xf32, #tpu.memory_space<vmem>>, vector<1x128xf32>
    %158 = vector.broadcast %157 : vector<1x128xf32> to vector<16x128xf32>
    %159 = arith.addf %156, %158 : vector<16x128xf32>
    %cst_65 = arith.constant -1.702000e+00 : f32
    %160 = vector.broadcast %cst_65 : f32 to vector<16x128xf32>
    %161 = arith.mulf %160, %159 : vector<16x128xf32>
    %162 = arith.truncf %161 : vector<16x128xf32> to vector<16x128xbf16>
    %163 = math.exp %162 : vector<16x128xbf16>
    %cst_66 = arith.constant 1.000000e+00 : bf16
    %164 = vector.broadcast %cst_66 : bf16 to vector<16x128xbf16>
    %165 = arith.addf %164, %163 : vector<16x128xbf16>
    %cst_67 = arith.constant 1.000000e+00 : bf16
    %166 = vector.broadcast %cst_67 : bf16 to vector<16x128xbf16>
    %167 = arith.divf %166, %165 : vector<16x128xbf16>
    %168 = arith.extf %167 : vector<16x128xbf16> to vector<16x128xf32>
    %169 = arith.mulf %159, %168 : vector<16x128xf32>
    %170 = arith.truncf %169 : vector<16x128xf32> to vector<16x128xbf16>
    %c0_68 = arith.constant 0 : index
    %c0_69 = arith.constant 0 : index
    %171 = vector.load %arg12[%c0_68, %c0_69] : memref<128x32xbf16, #tpu.memory_space<vmem>>, vector<128x32xbf16>
    %cst_70 = arith.constant dense<0.000000e+00> : vector<16x32xf32>
    %172 = tpu.matmul %170, %171, %cst_70 {dimension_numbers = #tpu.dot_dimension_numbers<[1], [0], [0], [1], [0, 0, 1, 1], [], []>} : vector<16x128xbf16>, vector<128x32xbf16>, vector<16x32xf32> -> vector<16x32xf32>
    %173 = arith.addf %154, %172 : vector<16x32xf32>
    %174 = vector.shape_cast %173 : vector<16x32xf32> to vector<2x8x32xf32>
    %175 = vector.extract_strided_slice %174 {offsets = [0, 0, 0], sizes = [2, 1, 32], strides = [1, 1, 1]} : vector<2x8x32xf32> to vector<2x1x32xf32>
    %176 = vector.broadcast %175 : vector<2x1x32xf32> to vector<2x8x32xf32>
    %177 = arith.mulf %174, %176 : vector<2x8x32xf32>
    %cst_71 = arith.constant dense<0.000000e+00> : vector<2x8xf32>
    %178 = vector.multi_reduction <add>, %177, %cst_71 [2] : vector<2x8x32xf32> to vector<2x8xf32>
    %cst_72 = arith.constant 0.176776692 : f32
    %179 = vector.broadcast %cst_72 : f32 to vector<2x8xf32>
    %180 = arith.mulf %178, %179 : vector<2x8xf32>
    %181 = vector.shape_cast %180 : vector<2x8xf32> to vector<2x1x8xf32>
    %182 = vector.shape_cast %180 : vector<2x8xf32> to vector<2x8x1xf32>
    %183 = tpu.iota {dimensions = array<i32: 0>} : vector<8x8xi32>
    %184 = tpu.iota {dimensions = array<i32: 1>} : vector<8x8xi32>
    %185 = vector.broadcast %181 : vector<2x1x8xf32> to vector<2x8x8xf32>
    %186 = vector.broadcast %182 : vector<2x8x1xf32> to vector<2x8x8xf32>
    %187 = arith.cmpf ogt, %185, %186 : vector<2x8x8xf32>
    %188 = vector.broadcast %181 : vector<2x1x8xf32> to vector<2x8x8xf32>
    %189 = vector.broadcast %182 : vector<2x8x1xf32> to vector<2x8x8xf32>
    %190 = arith.cmpf oeq, %188, %189 : vector<2x8x8xf32>
    %191 = arith.cmpi slt, %184, %183 : vector<8x8xi32>
    %192 = vector.shape_cast %191 : vector<8x8xi1> to vector<1x8x8xi1>
    %193 = vector.broadcast %192 : vector<1x8x8xi1> to vector<2x8x8xi1>
    %194 = arith.andi %190, %193 : vector<2x8x8xi1>
    %195 = arith.ori %187, %194 : vector<2x8x8xi1>
    %196 = arith.extui %195 : vector<2x8x8xi1> to vector<2x8x8xi32>
    %197 = arith.sitofp %196 : vector<2x8x8xi32> to vector<2x8x8xf32>
    %cst_73 = arith.constant dense<0.000000e+00> : vector<2x8xf32>
    %198 = vector.multi_reduction <add>, %197, %cst_73 [2] : vector<2x8x8xf32> to vector<2x8xf32>
    %199 = vector.shape_cast %198 : vector<2x8xf32> to vector<2x8x1xf32>
    %cst_74 = arith.constant 5.000000e+00 : f32
    %200 = vector.broadcast %cst_74 : f32 to vector<2x8x1xf32>
    %201 = arith.cmpf olt, %199, %200 : vector<2x8x1xf32>
    %202 = arith.extui %201 : vector<2x8x1xi1> to vector<2x8x1xi32>
    %203 = arith.sitofp %202 : vector<2x8x1xi32> to vector<2x8x1xf32>
    %204 = vector.broadcast %203 : vector<2x8x1xf32> to vector<2x8x32xf32>
    %205 = arith.mulf %174, %204 : vector<2x8x32xf32>
    %cst_75 = arith.constant dense<0.000000e+00> : vector<2x32xf32>
    %206 = vector.multi_reduction <add>, %205, %cst_75 [1] : vector<2x8x32xf32> to vector<2x32xf32>
    %cst_76 = arith.constant 2.000000e-01 : f32
    %207 = vector.broadcast %cst_76 : f32 to vector<2x32xf32>
    %208 = arith.mulf %206, %207 : vector<2x32xf32>
    %c0_77 = arith.constant 0 : index
    %c0_78 = arith.constant 0 : index
    %209 = vector.load %arg14[%c0_77, %c0_78] : memref<1x32xf32, #tpu.memory_space<vmem>>, vector<1x32xf32>
    %c0_79 = arith.constant 0 : index
    %c0_80 = arith.constant 0 : index
    %210 = vector.load %arg15[%c0_79, %c0_80] : memref<1x32xf32, #tpu.memory_space<vmem>>, vector<1x32xf32>
    %cst_81 = arith.constant dense<0.000000e+00> : vector<2xf32>
    %211 = vector.multi_reduction <add>, %208, %cst_81 [1] : vector<2x32xf32> to vector<2xf32>
    %212 = vector.shape_cast %211 : vector<2xf32> to vector<2x1xf32>
    %cst_82 = arith.constant 3.200000e+01 : f32
    %213 = vector.broadcast %cst_82 : f32 to vector<2x1xf32>
    %214 = arith.divf %212, %213 : vector<2x1xf32>
    %215 = vector.broadcast %214 : vector<2x1xf32> to vector<2x32xf32>
    %216 = arith.subf %208, %215 : vector<2x32xf32>
    %217 = arith.mulf %216, %216 : vector<2x32xf32>
    %cst_83 = arith.constant dense<0.000000e+00> : vector<2xf32>
    %218 = vector.multi_reduction <add>, %217, %cst_83 [1] : vector<2x32xf32> to vector<2xf32>
    %219 = vector.shape_cast %218 : vector<2xf32> to vector<2x1xf32>
    %cst_84 = arith.constant 3.200000e+01 : f32
    %220 = vector.broadcast %cst_84 : f32 to vector<2x1xf32>
    %221 = arith.divf %219, %220 : vector<2x1xf32>
    %222 = vector.broadcast %214 : vector<2x1xf32> to vector<2x32xf32>
    %223 = arith.subf %208, %222 : vector<2x32xf32>
    %cst_85 = arith.constant 9.99999974E-6 : f32
    %224 = vector.broadcast %cst_85 : f32 to vector<2x1xf32>
    %225 = arith.addf %221, %224 : vector<2x1xf32>
    %226 = math.rsqrt %225 : vector<2x1xf32>
    %227 = vector.broadcast %226 : vector<2x1xf32> to vector<2x32xf32>
    %228 = arith.mulf %223, %227 : vector<2x32xf32>
    %229 = vector.broadcast %209 : vector<1x32xf32> to vector<2x32xf32>
    %230 = arith.mulf %228, %229 : vector<2x32xf32>
    %231 = vector.broadcast %210 : vector<1x32xf32> to vector<2x32xf32>
    %232 = arith.addf %230, %231 : vector<2x32xf32>
    %233 = arith.truncf %232 : vector<2x32xf32> to vector<2x32xbf16>
    %c0_86 = arith.constant 0 : index
    %c0_87 = arith.constant 0 : index
    %234 = vector.load %arg16[%c0_86, %c0_87] : memref<32x512xbf16, #tpu.memory_space<vmem>>, vector<32x512xbf16>
    %cst_88 = arith.constant dense<0.000000e+00> : vector<2x512xf32>
    %235 = tpu.matmul %233, %234, %cst_88 {dimension_numbers = #tpu.dot_dimension_numbers<[1], [0], [0], [1], [0, 0, 1, 1], [], []>} : vector<2x32xbf16>, vector<32x512xbf16>, vector<2x512xf32> -> vector<2x512xf32>
    %c0_89 = arith.constant 0 : index
    %c0_90 = arith.constant 0 : index
    %236 = vector.load %arg17[%c0_89, %c0_90] : memref<2x512xf32, #tpu.memory_space<vmem>>, vector<2x512xf32>
    tpu.vector_store %arg17[%c0_89, %c0_90], %235 {strides = array<i32>} : memref<2x512xf32, #tpu.memory_space<vmem>>, vector<2x512xf32>,
    return
  }
  func.func @transform_0(%arg0: i32) -> (i32, i32, i32) {
    %c0_i32 = arith.constant 0 : i32
    %c0_i32_0 = arith.constant 0 : i32
    %c0_i32_1 = arith.constant 0 : i32
    return %arg0, %c0_i32, %c0_i32_0 : i32, i32, i32
  }
  func.func @transform_1(%arg0: i32) -> (i32, i32) {
    %c0_i32 = arith.constant 0 : i32
    %c0_i32_0 = arith.constant 0 : i32
    %c0_i32_1 = arith.constant 0 : i32
    return %c0_i32, %c0_i32_0 : i32, i32
  }
  func.func @transform_2(%arg0: i32) -> (i32, i32) {
    %c0_i32 = arith.constant 0 : i32
    %c0_i32_0 = arith.constant 0 : i32
    %c0_i32_1 = arith.constant 0 : i32
    return %c0_i32, %c0_i32_0 : i32, i32
  }
  func.func @transform_3(%arg0: i32) -> (i32, i32) {
    %c0_i32 = arith.constant 0 : i32
    %c0_i32_0 = arith.constant 0 : i32
    %c0_i32_1 = arith.constant 0 : i32
    return %c0_i32, %c0_i32_0 : i32, i32
  }
  func.func @transform_4(%arg0: i32) -> (i32, i32) {
    %c0_i32 = arith.constant 0 : i32
    %c0_i32_0 = arith.constant 0 : i32
    %c0_i32_1 = arith.constant 0 : i32
    return %c0_i32, %c0_i32_0 : i32, i32
  }
  func.func @transform_5(%arg0: i32) -> (i32, i32) {
    %c0_i32 = arith.constant 0 : i32
    %c0_i32_0 = arith.constant 0 : i32
    %c0_i32_1 = arith.constant 0 : i32
    return %c0_i32, %c0_i32_0 : i32, i32
  }
  func.func @transform_6(%arg0: i32) -> (i32, i32) {
    %c0_i32 = arith.constant 0 : i32
    %c0_i32_0 = arith.constant 0 : i32
    %c0_i32_1 = arith.constant 0 : i32
    return %c0_i32, %c0_i32_0 : i32, i32
  }
  func.func @transform_7(%arg0: i32) -> (i32, i32) {
    %c0_i32 = arith.constant 0 : i32
    %c0_i32_0 = arith.constant 0 : i32
    %c0_i32_1 = arith.constant 0 : i32
    return %c0_i32, %c0_i32_0 : i32, i32
  }
  func.func @transform_8(%arg0: i32) -> (i32, i32) {
    %c0_i32 = arith.constant 0 : i32
    %c0_i32_0 = arith.constant 0 : i32
    %c0_i32_1 = arith.constant 0 : i32
    return %c0_i32, %c0_i32_0 : i32, i32
  }
  func.func @transform_9(%arg0: i32) -> (i32, i32) {
    %c0_i32 = arith.constant 0 : i32
    %c0_i32_0 = arith.constant 0 : i32
    %c0_i32_1 = arith.constant 0 : i32
    return %c0_i32, %c0_i32_0 : i32, i32
  }
  func.func @transform_10(%arg0: i32) -> (i32, i32) {
    %c0_i32 = arith.constant 0 : i32
    %c0_i32_0 = arith.constant 0 : i32
    %c0_i32_1 = arith.constant 0 : i32
    return %c0_i32, %c0_i32_0 : i32, i32
  }
  func.func @transform_11(%arg0: i32) -> (i32, i32) {
    %c0_i32 = arith.constant 0 : i32
    %c0_i32_0 = arith.constant 0 : i32
    %c0_i32_1 = arith.constant 0 : i32
    return %c0_i32, %c0_i32_0 : i32, i32
  }
  func.func @transform_12(%arg0: i32) -> (i32, i32) {
    %c0_i32 = arith.constant 0 : i32
    %c0_i32_0 = arith.constant 0 : i32
    %c0_i32_1 = arith.constant 0 : i32
    return %c0_i32, %c0_i32_0 : i32, i32
  }
  func.func @transform_13(%arg0: i32) -> (i32, i32) {
    %c0_i32 = arith.constant 0 : i32
    %c0_i32_0 = arith.constant 0 : i32
    %c0_i32_1 = arith.constant 0 : i32
    return %c0_i32, %c0_i32_0 : i32, i32
  }
  func.func @transform_14(%arg0: i32) -> (i32, i32) {
    %c0_i32 = arith.constant 0 : i32
    %c0_i32_0 = arith.constant 0 : i32
    %c0_i32_1 = arith.constant 0 : i32
    return %c0_i32, %c0_i32_0 : i32, i32
  }
  func.func @transform_15(%arg0: i32) -> (i32, i32) {
    %c0_i32 = arith.constant 0 : i32
    %c0_i32_0 = arith.constant 0 : i32
    %c0_i32_1 = arith.constant 0 : i32
    return %c0_i32, %c0_i32_0 : i32, i32
  }
  func.func @transform_16(%arg0: i32) -> (i32, i32) {
    %c0_i32 = arith.constant 0 : i32
    %c0_i32_0 = arith.constant 0 : i32
    return %arg0, %c0_i32 : i32, i32
  }
}

module attributes {stable_mosaic.version = 11 : i64} {
  func.func @trans_block_kernel(%arg0: i32, %arg1: memref<2x8x32xf32, #tpu.memory_space<vmem>>, %arg2: memref<1x32xf32, #tpu.memory_space<vmem>>, %arg3: memref<1x32xf32, #tpu.memory_space<vmem>>, %arg4: memref<32x96xbf16, #tpu.memory_space<vmem>>, %arg5: memref<1x96xf32, #tpu.memory_space<vmem>>, %arg6: memref<32x32xbf16, #tpu.memory_space<vmem>>, %arg7: memref<1x32xf32, #tpu.memory_space<vmem>>, %arg8: memref<1x32xf32, #tpu.memory_space<vmem>>, %arg9: memref<1x32xf32, #tpu.memory_space<vmem>>, %arg10: memref<32x128xbf16, #tpu.memory_space<vmem>>, %arg11: memref<1x128xf32, #tpu.memory_space<vmem>>, %arg12: memref<128x32xbf16, #tpu.memory_space<vmem>>, %arg13: memref<1x32xf32, #tpu.memory_space<vmem>>, %arg14: memref<1x32xf32, #tpu.memory_space<vmem>>, %arg15: memref<1x32xf32, #tpu.memory_space<vmem>>, %arg16: memref<32x512xbf16, #tpu.memory_space<vmem>>, %arg17: memref<2x512xf32, #tpu.memory_space<vmem>>, %arg18: memref<16x32xbf16, #tpu.memory_space<vmem>>) attributes {dimension_semantics = [#tpu.dimension_semantics<parallel>], iteration_bounds = array<i64: 1>, scalar_prefetch = 0 : i64, scratch_operands = 1 : i64, tpu.core_type = #tpu.core_type<tc>, window_params = [{transform_indices = @transform_0, window_bounds = array<i64: 2, 8, 32>}, {pipeline_mode = #tpu.pipeline_mode<synchronous>, transform_indices = @transform_1, window_bounds = array<i64: 1, 32>}, {pipeline_mode = #tpu.pipeline_mode<synchronous>, transform_indices = @transform_2, window_bounds = array<i64: 1, 32>}, {pipeline_mode = #tpu.pipeline_mode<synchronous>, transform_indices = @transform_3, window_bounds = array<i64: 32, 96>}, {pipeline_mode = #tpu.pipeline_mode<synchronous>, transform_indices = @transform_4, window_bounds = array<i64: 1, 96>}, {pipeline_mode = #tpu.pipeline_mode<synchronous>, transform_indices = @transform_5, window_bounds = array<i64: 32, 32>}, {pipeline_mode = #tpu.pipeline_mode<synchronous>, transform_indices = @transform_6, window_bounds = array<i64: 1, 32>}, {pipeline_mode = #tpu.pipeline_mode<synchronous>, transform_indices = @transform_7, window_bounds = array<i64: 1, 32>}, {pipeline_mode = #tpu.pipeline_mode<synchronous>, transform_indices = @transform_8, window_bounds = array<i64: 1, 32>}, {pipeline_mode = #tpu.pipeline_mode<synchronous>, transform_indices = @transform_9, window_bounds = array<i64: 32, 128>}, {pipeline_mode = #tpu.pipeline_mode<synchronous>, transform_indices = @transform_10, window_bounds = array<i64: 1, 128>}, {pipeline_mode = #tpu.pipeline_mode<synchronous>, transform_indices = @transform_11, window_bounds = array<i64: 128, 32>}, {pipeline_mode = #tpu.pipeline_mode<synchronous>, transform_indices = @transform_12, window_bounds = array<i64: 1, 32>}, {pipeline_mode = #tpu.pipeline_mode<synchronous>, transform_indices = @transform_13, window_bounds = array<i64: 1, 32>}, {pipeline_mode = #tpu.pipeline_mode<synchronous>, transform_indices = @transform_14, window_bounds = array<i64: 1, 32>}, {pipeline_mode = #tpu.pipeline_mode<synchronous>, transform_indices = @transform_15, window_bounds = array<i64: 32, 512>}, {transform_indices = @transform_16, window_bounds = array<i64: 2, 512>}]} {
    %c0 = arith.constant 0 : index
    %c0_0 = arith.constant 0 : index
    %c0_1 = arith.constant 0 : index
    %0 = vector.load %arg1[%c0, %c0_0, %c0_1] : memref<2x8x32xf32, #tpu.memory_space<vmem>>, vector<2x8x32xf32>
    %1 = vector.shape_cast %0 : vector<2x8x32xf32> to vector<16x32xf32>
    %c0_2 = arith.constant 0 : index
    %c0_3 = arith.constant 0 : index
    %2 = vector.load %arg2[%c0_2, %c0_3] : memref<1x32xf32, #tpu.memory_space<vmem>>, vector<1x32xf32>
    %c0_4 = arith.constant 0 : index
    %c0_5 = arith.constant 0 : index
    %3 = vector.load %arg3[%c0_4, %c0_5] : memref<1x32xf32, #tpu.memory_space<vmem>>, vector<1x32xf32>
    %cst = arith.constant dense<0.000000e+00> : vector<16xf32>
    %4 = vector.multi_reduction <add>, %1, %cst [1] : vector<16x32xf32> to vector<16xf32>
    %5 = vector.shape_cast %4 : vector<16xf32> to vector<16x1xf32>
    %cst_6 = arith.constant 3.200000e+01 : f32
    %6 = vector.broadcast %cst_6 : f32 to vector<16x1xf32>
    %7 = arith.divf %5, %6 : vector<16x1xf32>
    %8 = vector.broadcast %7 : vector<16x1xf32> to vector<16x32xf32>
    %9 = arith.subf %1, %8 : vector<16x32xf32>
    %10 = arith.mulf %9, %9 : vector<16x32xf32>
    %cst_7 = arith.constant dense<0.000000e+00> : vector<16xf32>
    %11 = vector.multi_reduction <add>, %10, %cst_7 [1] : vector<16x32xf32> to vector<16xf32>
    %12 = vector.shape_cast %11 : vector<16xf32> to vector<16x1xf32>
    %cst_8 = arith.constant 3.200000e+01 : f32
    %13 = vector.broadcast %cst_8 : f32 to vector<16x1xf32>
    %14 = arith.divf %12, %13 : vector<16x1xf32>
    %15 = vector.broadcast %7 : vector<16x1xf32> to vector<16x32xf32>
    %16 = arith.subf %1, %15 : vector<16x32xf32>
    %cst_9 = arith.constant 9.99999974E-6 : f32
    %17 = vector.broadcast %cst_9 : f32 to vector<16x1xf32>
    %18 = arith.addf %14, %17 : vector<16x1xf32>
    %19 = math.rsqrt %18 : vector<16x1xf32>
    %20 = vector.broadcast %19 : vector<16x1xf32> to vector<16x32xf32>
    %21 = arith.mulf %16, %20 : vector<16x32xf32>
    %22 = vector.broadcast %2 : vector<1x32xf32> to vector<16x32xf32>
    %23 = arith.mulf %21, %22 : vector<16x32xf32>
    %24 = vector.broadcast %3 : vector<1x32xf32> to vector<16x32xf32>
    %25 = arith.addf %23, %24 : vector<16x32xf32>
    %26 = arith.truncf %25 : vector<16x32xf32> to vector<16x32xbf16>
    %c0_10 = arith.constant 0 : index
    %c0_11 = arith.constant 0 : index
    %27 = vector.load %arg4[%c0_10, %c0_11] : memref<32x96xbf16, #tpu.memory_space<vmem>>, vector<32x32xbf16>
    %cst_12 = arith.constant dense<0.000000e+00> : vector<16x32xf32>
    %28 = tpu.matmul %26, %27, %cst_12 {dimension_numbers = #tpu.dot_dimension_numbers<[1], [0], [0], [1], [0, 0, 1, 1], [], []>} : vector<16x32xbf16>, vector<32x32xbf16>, vector<16x32xf32> -> vector<16x32xf32>
    %c0_13 = arith.constant 0 : index
    %c0_14 = arith.constant 0 : index
    %29 = vector.load %arg5[%c0_13, %c0_14] : memref<1x96xf32, #tpu.memory_space<vmem>>, vector<1x32xf32>
    %30 = vector.broadcast %29 : vector<1x32xf32> to vector<16x32xf32>
    %31 = arith.addf %28, %30 : vector<16x32xf32>
    %32 = arith.truncf %31 : vector<16x32xf32> to vector<16x32xbf16>
    %33 = vector.shape_cast %32 : vector<16x32xbf16> to vector<2x8x32xbf16>
    %c0_15 = arith.constant 0 : index
    %c32 = arith.constant 32 : index
    %34 = vector.load %arg4[%c0_15, %c32] : memref<32x96xbf16, #tpu.memory_space<vmem>>, vector<32x32xbf16>
    %cst_16 = arith.constant dense<0.000000e+00> : vector<16x32xf32>
    %35 = tpu.matmul %26, %34, %cst_16 {dimension_numbers = #tpu.dot_dimension_numbers<[1], [0], [0], [1], [0, 0, 1, 1], [], []>} : vector<16x32xbf16>, vector<32x32xbf16>, vector<16x32xf32> -> vector<16x32xf32>
    %c0_17 = arith.constant 0 : index
    %c32_18 = arith.constant 32 : index
    %36 = vector.load %arg5[%c0_17, %c32_18] : memref<1x96xf32, #tpu.memory_space<vmem>>, vector<1x32xf32>
    %37 = vector.broadcast %36 : vector<1x32xf32> to vector<16x32xf32>
    %38 = arith.addf %35, %37 : vector<16x32xf32>
    %39 = arith.truncf %38 : vector<16x32xf32> to vector<16x32xbf16>
    %40 = vector.shape_cast %39 : vector<16x32xbf16> to vector<2x8x32xbf16>
    %c0_19 = arith.constant 0 : index
    %c64 = arith.constant 64 : index
    %41 = vector.load %arg4[%c0_19, %c64] : memref<32x96xbf16, #tpu.memory_space<vmem>>, vector<32x32xbf16>
    %cst_20 = arith.constant dense<0.000000e+00> : vector<16x32xf32>
    %42 = tpu.matmul %26, %41, %cst_20 {dimension_numbers = #tpu.dot_dimension_numbers<[1], [0], [0], [1], [0, 0, 1, 1], [], []>} : vector<16x32xbf16>, vector<32x32xbf16>, vector<16x32xf32> -> vector<16x32xf32>
    %c0_21 = arith.constant 0 : index
    %c64_22 = arith.constant 64 : index
    %43 = vector.load %arg5[%c0_21, %c64_22] : memref<1x96xf32, #tpu.memory_space<vmem>>, vector<1x32xf32>
    %44 = vector.broadcast %43 : vector<1x32xf32> to vector<16x32xf32>
    %45 = arith.addf %42, %44 : vector<16x32xf32>
    %46 = arith.truncf %45 : vector<16x32xf32> to vector<16x32xbf16>
    %47 = vector.shape_cast %46 : vector<16x32xbf16> to vector<2x8x32xbf16>
    %48 = vector.extract_strided_slice %33 {offsets = [0, 0, 0], sizes = [2, 8, 8], strides = [1, 1, 1]} : vector<2x8x32xbf16> to vector<2x8x8xbf16>
    %49 = vector.extract_strided_slice %40 {offsets = [0, 0, 0], sizes = [2, 8, 8], strides = [1, 1, 1]} : vector<2x8x32xbf16> to vector<2x8x8xbf16>
    "tpu.trace_start"() <{level = 10 : i32, message = "bqd,bkd->bqk"}> : () -> ()
    %cst_23 = arith.constant dense<0.000000e+00> : vector<2x8x8xf32>
    %50 = tpu.matmul %48, %49, %cst_23 {dimension_numbers = #tpu.dot_dimension_numbers<[2], [2], [1], [1], [0, 0, 0, 1, 1, 1], [0], [0]>} : vector<2x8x8xbf16>, vector<2x8x8xbf16>, vector<2x8x8xf32> -> vector<2x8x8xf32>
    "tpu.trace_stop"() : () -> ()
    %cst_24 = arith.constant dense<0xFF800000> : vector<2x8xf32>
    %51 = vector.multi_reduction <maximumf>, %50, %cst_24 [2] : vector<2x8x8xf32> to vector<2x8xf32>
    %52 = vector.shape_cast %51 : vector<2x8xf32> to vector<2x8x1xf32>
    %53 = vector.broadcast %52 : vector<2x8x1xf32> to vector<2x8x8xf32>
    %54 = arith.subf %50, %53 : vector<2x8x8xf32>
    %55 = math.exp %54 : vector<2x8x8xf32>
    %cst_25 = arith.constant dense<0.000000e+00> : vector<2x8xf32>
    %56 = vector.multi_reduction <add>, %55, %cst_25 [2] : vector<2x8x8xf32> to vector<2x8xf32>
    %57 = vector.shape_cast %56 : vector<2x8xf32> to vector<2x8x1xf32>
    %58 = tpu.reciprocal %57 {approx = true} : vector<2x8x1xf32> -> vector<2x8x1xf32>
    %59 = vector.broadcast %58 : vector<2x8x1xf32> to vector<2x8x8xf32>
    %60 = arith.mulf %55, %59 : vector<2x8x8xf32>
    %61 = arith.truncf %60 : vector<2x8x8xf32> to vector<2x8x8xbf16>
    %62 = vector.extract_strided_slice %47 {offsets = [0, 0, 0], sizes = [2, 8, 8], strides = [1, 1, 1]} : vector<2x8x32xbf16> to vector<2x8x8xbf16>
    "tpu.trace_start"() <{level = 10 : i32, message = "bqk,bkd->bqd"}> : () -> ()
    %cst_26 = arith.constant dense<0.000000e+00> : vector<2x8x8xf32>
    %63 = tpu.matmul %61, %62, %cst_26 {dimension_numbers = #tpu.dot_dimension_numbers<[2], [1], [1], [2], [0, 0, 0, 1, 1, 2], [0], [0]>} : vector<2x8x8xbf16>, vector<2x8x8xbf16>, vector<2x8x8xf32> -> vector<2x8x8xf32>
    "tpu.trace_stop"() : () -> ()
    %64 = vector.extract_strided_slice %33 {offsets = [0, 0, 8], sizes = [2, 8, 8], strides = [1, 1, 1]} : vector<2x8x32xbf16> to vector<2x8x8xbf16>
    %65 = vector.extract_strided_slice %40 {offsets = [0, 0, 8], sizes = [2, 8, 8], strides = [1, 1, 1]} : vector<2x8x32xbf16> to vector<2x8x8xbf16>
    "tpu.trace_start"() <{level = 10 : i32, message = "bqd,bkd->bqk"}> : () -> ()
    %cst_27 = arith.constant dense<0.000000e+00> : vector<2x8x8xf32>
    %66 = tpu.matmul %64, %65, %cst_27 {dimension_numbers = #tpu.dot_dimension_numbers<[2], [2], [1], [1], [0, 0, 0, 1, 1, 1], [0], [0]>} : vector<2x8x8xbf16>, vector<2x8x8xbf16>, vector<2x8x8xf32> -> vector<2x8x8xf32>
    "tpu.trace_stop"() : () -> ()
    %cst_28 = arith.constant dense<0xFF800000> : vector<2x8xf32>
    %67 = vector.multi_reduction <maximumf>, %66, %cst_28 [2] : vector<2x8x8xf32> to vector<2x8xf32>
    %68 = vector.shape_cast %67 : vector<2x8xf32> to vector<2x8x1xf32>
    %69 = vector.broadcast %68 : vector<2x8x1xf32> to vector<2x8x8xf32>
    %70 = arith.subf %66, %69 : vector<2x8x8xf32>
    %71 = math.exp %70 : vector<2x8x8xf32>
    %cst_29 = arith.constant dense<0.000000e+00> : vector<2x8xf32>
    %72 = vector.multi_reduction <add>, %71, %cst_29 [2] : vector<2x8x8xf32> to vector<2x8xf32>
    %73 = vector.shape_cast %72 : vector<2x8xf32> to vector<2x8x1xf32>
    %74 = tpu.reciprocal %73 {approx = true} : vector<2x8x1xf32> -> vector<2x8x1xf32>
    %75 = vector.broadcast %74 : vector<2x8x1xf32> to vector<2x8x8xf32>
    %76 = arith.mulf %71, %75 : vector<2x8x8xf32>
    %77 = arith.truncf %76 : vector<2x8x8xf32> to vector<2x8x8xbf16>
    %78 = vector.extract_strided_slice %47 {offsets = [0, 0, 8], sizes = [2, 8, 8], strides = [1, 1, 1]} : vector<2x8x32xbf16> to vector<2x8x8xbf16>
    "tpu.trace_start"() <{level = 10 : i32, message = "bqk,bkd->bqd"}> : () -> ()
    %cst_30 = arith.constant dense<0.000000e+00> : vector<2x8x8xf32>
    %79 = tpu.matmul %77, %78, %cst_30 {dimension_numbers = #tpu.dot_dimension_numbers<[2], [1], [1], [2], [0, 0, 0, 1, 1, 2], [0], [0]>} : vector<2x8x8xbf16>, vector<2x8x8xbf16>, vector<2x8x8xf32> -> vector<2x8x8xf32>
    "tpu.trace_stop"() : () -> ()
    %80 = tpu.concatenate %63, %79 in 2 : vector<2x8x8xf32>, vector<2x8x8xf32> -> vector<2x8x16xf32>
    %81 = vector.shape_cast %80 : vector<2x8x16xf32> to vector<16x16xf32>
    %82 = arith.truncf %81 : vector<16x16xf32> to vector<16x16xbf16>
    %c0_31 = arith.constant 0 : index
    %c0_32 = arith.constant 0 : index
    %83 = vector.load %arg18[%c0_31, %c0_32] : memref<16x32xbf16, #tpu.memory_space<vmem>>, vector<16x16xbf16>
    tpu.vector_store %arg18[%c0_31, %c0_32], %82 {strides = array<i32>} : memref<16x32xbf16, #tpu.memory_space<vmem>>, vector<16x16xbf16>,
    %84 = vector.extract_strided_slice %33 {offsets = [0, 0, 16], sizes = [2, 8, 8], strides = [1, 1, 1]} : vector<2x8x32xbf16> to vector<2x8x8xbf16>
    %85 = vector.extract_strided_slice %40 {offsets = [0, 0, 16], sizes = [2, 8, 8], strides = [1, 1, 1]} : vector<2x8x32xbf16> to vector<2x8x8xbf16>
    "tpu.trace_start"() <{level = 10 : i32, message = "bqd,bkd->bqk"}> : () -> ()
    %cst_33 = arith.constant dense<0.000000e+00> : vector<2x8x8xf32>
    %86 = tpu.matmul %84, %85, %cst_33 {dimension_numbers = #tpu.dot_dimension_numbers<[2], [2], [1], [1], [0, 0, 0, 1, 1, 1], [0], [0]>} : vector<2x8x8xbf16>, vector<2x8x8xbf16>, vector<2x8x8xf32> -> vector<2x8x8xf32>
    "tpu.trace_stop"() : () -> ()
    %cst_34 = arith.constant dense<0xFF800000> : vector<2x8xf32>
    %87 = vector.multi_reduction <maximumf>, %86, %cst_34 [2] : vector<2x8x8xf32> to vector<2x8xf32>
    %88 = vector.shape_cast %87 : vector<2x8xf32> to vector<2x8x1xf32>
    %89 = vector.broadcast %88 : vector<2x8x1xf32> to vector<2x8x8xf32>
    %90 = arith.subf %86, %89 : vector<2x8x8xf32>
    %91 = math.exp %90 : vector<2x8x8xf32>
    %cst_35 = arith.constant dense<0.000000e+00> : vector<2x8xf32>
    %92 = vector.multi_reduction <add>, %91, %cst_35 [2] : vector<2x8x8xf32> to vector<2x8xf32>
    %93 = vector.shape_cast %92 : vector<2x8xf32> to vector<2x8x1xf32>
    %94 = tpu.reciprocal %93 {approx = true} : vector<2x8x1xf32> -> vector<2x8x1xf32>
    %95 = vector.broadcast %94 : vector<2x8x1xf32> to vector<2x8x8xf32>
    %96 = arith.mulf %91, %95 : vector<2x8x8xf32>
    %97 = arith.truncf %96 : vector<2x8x8xf32> to vector<2x8x8xbf16>
    %98 = vector.extract_strided_slice %47 {offsets = [0, 0, 16], sizes = [2, 8, 8], strides = [1, 1, 1]} : vector<2x8x32xbf16> to vector<2x8x8xbf16>
    "tpu.trace_start"() <{level = 10 : i32, message = "bqk,bkd->bqd"}> : () -> ()
    %cst_36 = arith.constant dense<0.000000e+00> : vector<2x8x8xf32>
    %99 = tpu.matmul %97, %98, %cst_36 {dimension_numbers = #tpu.dot_dimension_numbers<[2], [1], [1], [2], [0, 0, 0, 1, 1, 2], [0], [0]>} : vector<2x8x8xbf16>, vector<2x8x8xbf16>, vector<2x8x8xf32> -> vector<2x8x8xf32>
    "tpu.trace_stop"() : () -> ()
    %100 = vector.extract_strided_slice %33 {offsets = [0, 0, 24], sizes = [2, 8, 8], strides = [1, 1, 1]} : vector<2x8x32xbf16> to vector<2x8x8xbf16>
    %101 = vector.extract_strided_slice %40 {offsets = [0, 0, 24], sizes = [2, 8, 8], strides = [1, 1, 1]} : vector<2x8x32xbf16> to vector<2x8x8xbf16>
    "tpu.trace_start"() <{level = 10 : i32, message = "bqd,bkd->bqk"}> : () -> ()
    %cst_37 = arith.constant dense<0.000000e+00> : vector<2x8x8xf32>
    %102 = tpu.matmul %100, %101, %cst_37 {dimension_numbers = #tpu.dot_dimension_numbers<[2], [2], [1], [1], [0, 0, 0, 1, 1, 1], [0], [0]>} : vector<2x8x8xbf16>, vector<2x8x8xbf16>, vector<2x8x8xf32> -> vector<2x8x8xf32>
    "tpu.trace_stop"() : () -> ()
    %cst_38 = arith.constant dense<0xFF800000> : vector<2x8xf32>
    %103 = vector.multi_reduction <maximumf>, %102, %cst_38 [2] : vector<2x8x8xf32> to vector<2x8xf32>
    %104 = vector.shape_cast %103 : vector<2x8xf32> to vector<2x8x1xf32>
    %105 = vector.broadcast %104 : vector<2x8x1xf32> to vector<2x8x8xf32>
    %106 = arith.subf %102, %105 : vector<2x8x8xf32>
    %107 = math.exp %106 : vector<2x8x8xf32>
    %cst_39 = arith.constant dense<0.000000e+00> : vector<2x8xf32>
    %108 = vector.multi_reduction <add>, %107, %cst_39 [2] : vector<2x8x8xf32> to vector<2x8xf32>
    %109 = vector.shape_cast %108 : vector<2x8xf32> to vector<2x8x1xf32>
    %110 = tpu.reciprocal %109 {approx = true} : vector<2x8x1xf32> -> vector<2x8x1xf32>
    %111 = vector.broadcast %110 : vector<2x8x1xf32> to vector<2x8x8xf32>
    %112 = arith.mulf %107, %111 : vector<2x8x8xf32>
    %113 = arith.truncf %112 : vector<2x8x8xf32> to vector<2x8x8xbf16>
    %114 = vector.extract_strided_slice %47 {offsets = [0, 0, 24], sizes = [2, 8, 8], strides = [1, 1, 1]} : vector<2x8x32xbf16> to vector<2x8x8xbf16>
    "tpu.trace_start"() <{level = 10 : i32, message = "bqk,bkd->bqd"}> : () -> ()
    %cst_40 = arith.constant dense<0.000000e+00> : vector<2x8x8xf32>
    %115 = tpu.matmul %113, %114, %cst_40 {dimension_numbers = #tpu.dot_dimension_numbers<[2], [1], [1], [2], [0, 0, 0, 1, 1, 2], [0], [0]>} : vector<2x8x8xbf16>, vector<2x8x8xbf16>, vector<2x8x8xf32> -> vector<2x8x8xf32>
    "tpu.trace_stop"() : () -> ()
    %116 = tpu.concatenate %99, %115 in 2 : vector<2x8x8xf32>, vector<2x8x8xf32> -> vector<2x8x16xf32>
    %117 = vector.shape_cast %116 : vector<2x8x16xf32> to vector<16x16xf32>
    %118 = arith.truncf %117 : vector<16x16xf32> to vector<16x16xbf16>
    %c0_41 = arith.constant 0 : index
    %c16 = arith.constant 16 : index
    %119 = vector.load %arg18[%c0_41, %c16] : memref<16x32xbf16, #tpu.memory_space<vmem>>, vector<16x16xbf16>
    tpu.vector_store %arg18[%c0_41, %c16], %118 {strides = array<i32>} : memref<16x32xbf16, #tpu.memory_space<vmem>>, vector<16x16xbf16>,
    %c0_42 = arith.constant 0 : index
    %c0_43 = arith.constant 0 : index
    %120 = vector.load %arg18[%c0_42, %c0_43] : memref<16x32xbf16, #tpu.memory_space<vmem>>, vector<16x32xbf16>
    %c0_44 = arith.constant 0 : index
    %c0_45 = arith.constant 0 : index
    %121 = vector.load %arg6[%c0_44, %c0_45] : memref<32x32xbf16, #tpu.memory_space<vmem>>, vector<32x32xbf16>
    %cst_46 = arith.constant dense<0.000000e+00> : vector<16x32xf32>
    %122 = tpu.matmul %120, %121, %cst_46 {dimension_numbers = #tpu.dot_dimension_numbers<[1], [0], [0], [1], [0, 0, 1, 1], [], []>} : vector<16x32xbf16>, vector<32x32xbf16>, vector<16x32xf32> -> vector<16x32xf32>
    %c0_47 = arith.constant 0 : index
    %c0_48 = arith.constant 0 : index
    %123 = vector.load %arg7[%c0_47, %c0_48] : memref<1x32xf32, #tpu.memory_space<vmem>>, vector<1x32xf32>
    %124 = vector.broadcast %123 : vector<1x32xf32> to vector<16x32xf32>
    %125 = arith.addf %122, %124 : vector<16x32xf32>
    %126 = arith.addf %1, %125 : vector<16x32xf32>
    %c0_49 = arith.constant 0 : index
    %c0_50 = arith.constant 0 : index
    %127 = vector.load %arg8[%c0_49, %c0_50] : memref<1x32xf32, #tpu.memory_space<vmem>>, vector<1x32xf32>
    %c0_51 = arith.constant 0 : index
    %c0_52 = arith.constant 0 : index
    %128 = vector.load %arg9[%c0_51, %c0_52] : memref<1x32xf32, #tpu.memory_space<vmem>>, vector<1x32xf32>
    %cst_53 = arith.constant dense<0.000000e+00> : vector<16xf32>
    %129 = vector.multi_reduction <add>, %126, %cst_53 [1] : vector<16x32xf32> to vector<16xf32>
    %130 = vector.shape_cast %129 : vector<16xf32> to vector<16x1xf32>
    %cst_54 = arith.constant 3.200000e+01 : f32
    %131 = vector.broadcast %cst_54 : f32 to vector<16x1xf32>
    %132 = arith.divf %130, %131 : vector<16x1xf32>
    %133 = vector.broadcast %132 : vector<16x1xf32> to vector<16x32xf32>
    %134 = arith.subf %126, %133 : vector<16x32xf32>
    %135 = arith.mulf %134, %134 : vector<16x32xf32>
    %cst_55 = arith.constant dense<0.000000e+00> : vector<16xf32>
    %136 = vector.multi_reduction <add>, %135, %cst_55 [1] : vector<16x32xf32> to vector<16xf32>
    %137 = vector.shape_cast %136 : vector<16xf32> to vector<16x1xf32>
    %cst_56 = arith.constant 3.200000e+01 : f32
    %138 = vector.broadcast %cst_56 : f32 to vector<16x1xf32>
    %139 = arith.divf %137, %138 : vector<16x1xf32>
    %140 = vector.broadcast %132 : vector<16x1xf32> to vector<16x32xf32>
    %141 = arith.subf %126, %140 : vector<16x32xf32>
    %cst_57 = arith.constant 9.99999974E-6 : f32
    %142 = vector.broadcast %cst_57 : f32 to vector<16x1xf32>
    %143 = arith.addf %139, %142 : vector<16x1xf32>
    %144 = math.rsqrt %143 : vector<16x1xf32>
    %145 = vector.broadcast %144 : vector<16x1xf32> to vector<16x32xf32>
    %146 = arith.mulf %141, %145 : vector<16x32xf32>
    %147 = vector.broadcast %127 : vector<1x32xf32> to vector<16x32xf32>
    %148 = arith.mulf %146, %147 : vector<16x32xf32>
    %149 = vector.broadcast %128 : vector<1x32xf32> to vector<16x32xf32>
    %150 = arith.addf %148, %149 : vector<16x32xf32>
    %151 = arith.truncf %150 : vector<16x32xf32> to vector<16x32xbf16>
    %c0_58 = arith.constant 0 : index
    %c0_59 = arith.constant 0 : index
    %152 = vector.load %arg13[%c0_58, %c0_59] : memref<1x32xf32, #tpu.memory_space<vmem>>, vector<1x32xf32>
    %153 = vector.broadcast %152 : vector<1x32xf32> to vector<16x32xf32>
    %154 = arith.addf %126, %153 : vector<16x32xf32>
    %c0_60 = arith.constant 0 : index
    %c0_61 = arith.constant 0 : index
    %155 = vector.load %arg10[%c0_60, %c0_61] : memref<32x128xbf16, #tpu.memory_space<vmem>>, vector<32x128xbf16>
    %cst_62 = arith.constant dense<0.000000e+00> : vector<16x128xf32>
    %156 = tpu.matmul %151, %155, %cst_62 {dimension_numbers = #tpu.dot_dimension_numbers<[1], [0], [0], [1], [0, 0, 1, 1], [], []>} : vector<16x32xbf16>, vector<32x128xbf16>, vector<16x128xf32> -> vector<16x128xf32>
    %c0_63 = arith.constant 0 : index
    %c0_64 = arith.constant 0 : index
    %157 = vector.load %arg11[%c0_63, %c0_64] : memref<1x128xf32, #tpu.memory_space<vmem>>, vector<1x128xf32>
    %158 = vector.broadcast %157 : vector<1x128xf32> to vector<16x128xf32>
    %159 = arith.addf %156, %158 : vector<16x128xf32>
    %cst_65 = arith.constant -1.702000e+00 : f32
    %160 = vector.broadcast %cst_65 : f32 to vector<16x128xf32>
    %161 = arith.mulf %160, %159 : vector<16x128xf32>
    %162 = arith.truncf %161 : vector<16x128xf32> to vector<16x128xbf16>
    %163 = math.exp %162 : vector<16x128xbf16>
    %cst_66 = arith.constant 1.000000e+00 : bf16
    %164 = vector.broadcast %cst_66 : bf16 to vector<16x128xbf16>
    %165 = arith.addf %164, %163 : vector<16x128xbf16>
    %cst_67 = arith.constant 1.000000e+00 : bf16
    %166 = vector.broadcast %cst_67 : bf16 to vector<16x128xbf16>
    %167 = arith.divf %166, %165 : vector<16x128xbf16>
    %168 = arith.extf %167 : vector<16x128xbf16> to vector<16x128xf32>
    %169 = arith.mulf %159, %168 : vector<16x128xf32>
    %170 = arith.truncf %169 : vector<16x128xf32> to vector<16x128xbf16>
    %c0_68 = arith.constant 0 : index
    %c0_69 = arith.constant 0 : index
    %171 = vector.load %arg12[%c0_68, %c0_69] : memref<128x32xbf16, #tpu.memory_space<vmem>>, vector<128x32xbf16>
    %cst_70 = arith.constant dense<0.000000e+00> : vector<16x32xf32>
    %172 = tpu.matmul %170, %171, %cst_70 {dimension_numbers = #tpu.dot_dimension_numbers<[1], [0], [0], [1], [0, 0, 1, 1], [], []>} : vector<16x128xbf16>, vector<128x32xbf16>, vector<16x32xf32> -> vector<16x32xf32>
    %173 = arith.addf %154, %172 : vector<16x32xf32>
    %174 = vector.shape_cast %173 : vector<16x32xf32> to vector<2x8x32xf32>
    %175 = vector.extract_strided_slice %174 {offsets = [0, 0, 0], sizes = [2, 1, 32], strides = [1, 1, 1]} : vector<2x8x32xf32> to vector<2x1x32xf32>
    %176 = vector.broadcast %175 : vector<2x1x32xf32> to vector<2x8x32xf32>
    %177 = arith.mulf %174, %176 : vector<2x8x32xf32>
    %cst_71 = arith.constant dense<0.000000e+00> : vector<2x8xf32>
    %178 = vector.multi_reduction <add>, %177, %cst_71 [2] : vector<2x8x32xf32> to vector<2x8xf32>
    %cst_72 = arith.constant 0.176776692 : f32
    %179 = vector.broadcast %cst_72 : f32 to vector<2x8xf32>
    %180 = arith.mulf %178, %179 : vector<2x8xf32>
    %181 = vector.shape_cast %180 : vector<2x8xf32> to vector<2x1x8xf32>
    %182 = vector.shape_cast %180 : vector<2x8xf32> to vector<2x8x1xf32>
    %183 = tpu.iota {dimensions = array<i32: 0>} : vector<8x8xi32>
    %184 = tpu.iota {dimensions = array<i32: 1>} : vector<8x8xi32>
    %185 = vector.broadcast %181 : vector<2x1x8xf32> to vector<2x8x8xf32>
    %186 = vector.broadcast %182 : vector<2x8x1xf32> to vector<2x8x8xf32>
    %187 = arith.cmpf ogt, %185, %186 : vector<2x8x8xf32>
    %188 = vector.broadcast %181 : vector<2x1x8xf32> to vector<2x8x8xf32>
    %189 = vector.broadcast %182 : vector<2x8x1xf32> to vector<2x8x8xf32>
    %190 = arith.cmpf oeq, %188, %189 : vector<2x8x8xf32>
    %191 = arith.cmpi slt, %184, %183 : vector<8x8xi32>
    %192 = vector.shape_cast %191 : vector<8x8xi1> to vector<1x8x8xi1>
    %193 = vector.broadcast %192 : vector<1x8x8xi1> to vector<2x8x8xi1>
    %194 = arith.andi %190, %193 : vector<2x8x8xi1>
    %195 = arith.ori %187, %194 : vector<2x8x8xi1>
    %196 = arith.extui %195 : vector<2x8x8xi1> to vector<2x8x8xi32>
    %197 = arith.sitofp %196 : vector<2x8x8xi32> to vector<2x8x8xf32>
    %cst_73 = arith.constant dense<0.000000e+00> : vector<2x8xf32>
    %198 = vector.multi_reduction <add>, %197, %cst_73 [2] : vector<2x8x8xf32> to vector<2x8xf32>
    %199 = vector.shape_cast %198 : vector<2x8xf32> to vector<2x8x1xf32>
    %cst_74 = arith.constant 5.000000e+00 : f32
    %200 = vector.broadcast %cst_74 : f32 to vector<2x8x1xf32>
    %201 = arith.cmpf olt, %199, %200 : vector<2x8x1xf32>
    %202 = arith.extui %201 : vector<2x8x1xi1> to vector<2x8x1xi32>
    %203 = arith.sitofp %202 : vector<2x8x1xi32> to vector<2x8x1xf32>
    %204 = vector.broadcast %203 : vector<2x8x1xf32> to vector<2x8x32xf32>
    %205 = arith.mulf %174, %204 : vector<2x8x32xf32>
    %cst_75 = arith.constant dense<0.000000e+00> : vector<2x32xf32>
    %206 = vector.multi_reduction <add>, %205, %cst_75 [1] : vector<2x8x32xf32> to vector<2x32xf32>
    %cst_76 = arith.constant 2.000000e-01 : f32
    %207 = vector.broadcast %cst_76 : f32 to vector<2x32xf32>
    %208 = arith.mulf %206, %207 : vector<2x32xf32>
    %c0_77 = arith.constant 0 : index
    %c0_78 = arith.constant 0 : index
    %209 = vector.load %arg14[%c0_77, %c0_78] : memref<1x32xf32, #tpu.memory_space<vmem>>, vector<1x32xf32>
    %c0_79 = arith.constant 0 : index
    %c0_80 = arith.constant 0 : index
    %210 = vector.load %arg15[%c0_79, %c0_80] : memref<1x32xf32, #tpu.memory_space<vmem>>, vector<1x32xf32>
    %cst_81 = arith.constant dense<0.000000e+00> : vector<2xf32>
    %211 = vector.multi_reduction <add>, %208, %cst_81 [1] : vector<2x32xf32> to vector<2xf32>
    %212 = vector.shape_cast %211 : vector<2xf32> to vector<2x1xf32>
    %cst_82 = arith.constant 3.200000e+01 : f32
    %213 = vector.broadcast %cst_82 : f32 to vector<2x1xf32>
    %214 = arith.divf %212, %213 : vector<2x1xf32>
    %215 = vector.broadcast %214 : vector<2x1xf32> to vector<2x32xf32>
    %216 = arith.subf %208, %215 : vector<2x32xf32>
    %217 = arith.mulf %216, %216 : vector<2x32xf32>
    %cst_83 = arith.constant dense<0.000000e+00> : vector<2xf32>
    %218 = vector.multi_reduction <add>, %217, %cst_83 [1] : vector<2x32xf32> to vector<2xf32>
    %219 = vector.shape_cast %218 : vector<2xf32> to vector<2x1xf32>
    %cst_84 = arith.constant 3.200000e+01 : f32
    %220 = vector.broadcast %cst_84 : f32 to vector<2x1xf32>
    %221 = arith.divf %219, %220 : vector<2x1xf32>
    %222 = vector.broadcast %214 : vector<2x1xf32> to vector<2x32xf32>
    %223 = arith.subf %208, %222 : vector<2x32xf32>
    %cst_85 = arith.constant 9.99999974E-6 : f32
    %224 = vector.broadcast %cst_85 : f32 to vector<2x1xf32>
    %225 = arith.addf %221, %224 : vector<2x1xf32>
    %226 = math.rsqrt %225 : vector<2x1xf32>
    %227 = vector.broadcast %226 : vector<2x1xf32> to vector<2x32xf32>
    %228 = arith.mulf %223, %227 : vector<2x32xf32>
    %229 = vector.broadcast %209 : vector<1x32xf32> to vector<2x32xf32>
    %230 = arith.mulf %228, %229 : vector<2x32xf32>
    %231 = vector.broadcast %210 : vector<1x32xf32> to vector<2x32xf32>
    %232 = arith.addf %230, %231 : vector<2x32xf32>
    %233 = arith.truncf %232 : vector<2x32xf32> to vector<2x32xbf16>
    %c0_86 = arith.constant 0 : index
    %c0_87 = arith.constant 0 : index
    %234 = vector.load %arg16[%c0_86, %c0_87] : memref<32x512xbf16, #tpu.memory_space<vmem>>, vector<32x512xbf16>
    %cst_88 = arith.constant dense<0.000000e+00> : vector<2x512xf32>
    %235 = tpu.matmul %233, %234, %cst_88 {dimension_numbers = #tpu.dot_dimension_numbers<[1], [0], [0], [1], [0, 0, 1, 1], [], []>} : vector<2x32xbf16>, vector<32x512xbf16>, vector<2x512xf32> -> vector<2x512xf32>
    %c0_89 = arith.constant 0 : index
    %c0_90 = arith.constant 0 : index
    %236 = vector.load %arg17[%c0_89, %c0_90] : memref<2x512xf32, #tpu.memory_space<vmem>>, vector<2x512xf32>
    tpu.vector_store %arg17[%c0_89, %c0_90], %235 {strides = array<i32>} : memref<2x512xf32, #tpu.memory_space<vmem>>, vector<2x512xf32>,
    return
  }
  func.func @transform_0(%arg0: i32) -> (i32, i32, i32) {
    %c0_i32 = arith.constant 0 : i32
    %c0_i32_0 = arith.constant 0 : i32
    %c0_i32_1 = arith.constant 0 : i32
    return %arg0, %c0_i32, %c0_i32_0 : i32, i32, i32
  }
  func.func @transform_1(%arg0: i32) -> (i32, i32) {
    %c0_i32 = arith.constant 0 : i32
    %c0_i32_0 = arith.constant 0 : i32
    %c0_i32_1 = arith.constant 0 : i32
    return %c0_i32, %c0_i32_0 : i32, i32
  }
  func.func @transform_2(%arg0: i32) -> (i32, i32) {
    %c0_i32 = arith.constant 0 : i32
    %c0_i32_0 = arith.constant 0 : i32
    %c0_i32_1 = arith.constant 0 : i32
    return %c0_i32, %c0_i32_0 : i32, i32
  }
  func.func @transform_3(%arg0: i32) -> (i32, i32) {
    %c0_i32 = arith.constant 0 : i32
    %c0_i32_0 = arith.constant 0 : i32
    %c0_i32_1 = arith.constant 0 : i32
    return %c0_i32, %c0_i32_0 : i32, i32
  }
  func.func @transform_4(%arg0: i32) -> (i32, i32) {
    %c0_i32 = arith.constant 0 : i32
    %c0_i32_0 = arith.constant 0 : i32
    %c0_i32_1 = arith.constant 0 : i32
    return %c0_i32, %c0_i32_0 : i32, i32
  }
  func.func @transform_5(%arg0: i32) -> (i32, i32) {
    %c0_i32 = arith.constant 0 : i32
    %c0_i32_0 = arith.constant 0 : i32
    %c0_i32_1 = arith.constant 0 : i32
    return %c0_i32, %c0_i32_0 : i32, i32
  }
  func.func @transform_6(%arg0: i32) -> (i32, i32) {
    %c0_i32 = arith.constant 0 : i32
    %c0_i32_0 = arith.constant 0 : i32
    %c0_i32_1 = arith.constant 0 : i32
    return %c0_i32, %c0_i32_0 : i32, i32
  }
  func.func @transform_7(%arg0: i32) -> (i32, i32) {
    %c0_i32 = arith.constant 0 : i32
    %c0_i32_0 = arith.constant 0 : i32
    %c0_i32_1 = arith.constant 0 : i32
    return %c0_i32, %c0_i32_0 : i32, i32
  }
  func.func @transform_8(%arg0: i32) -> (i32, i32) {
    %c0_i32 = arith.constant 0 : i32
    %c0_i32_0 = arith.constant 0 : i32
    %c0_i32_1 = arith.constant 0 : i32
    return %c0_i32, %c0_i32_0 : i32, i32
  }
  func.func @transform_9(%arg0: i32) -> (i32, i32) {
    %c0_i32 = arith.constant 0 : i32
    %c0_i32_0 = arith.constant 0 : i32
    %c0_i32_1 = arith.constant 0 : i32
    return %c0_i32, %c0_i32_0 : i32, i32
  }
  func.func @transform_10(%arg0: i32) -> (i32, i32) {
    %c0_i32 = arith.constant 0 : i32
    %c0_i32_0 = arith.constant 0 : i32
    %c0_i32_1 = arith.constant 0 : i32
    return %c0_i32, %c0_i32_0 : i32, i32
  }
  func.func @transform_11(%arg0: i32) -> (i32, i32) {
    %c0_i32 = arith.constant 0 : i32
    %c0_i32_0 = arith.constant 0 : i32
    %c0_i32_1 = arith.constant 0 : i32
    return %c0_i32, %c0_i32_0 : i32, i32
  }
  func.func @transform_12(%arg0: i32) -> (i32, i32) {
    %c0_i32 = arith.constant 0 : i32
    %c0_i32_0 = arith.constant 0 : i32
    %c0_i32_1 = arith.constant 0 : i32
    return %c0_i32, %c0_i32_0 : i32, i32
  }
  func.func @transform_13(%arg0: i32) -> (i32, i32) {
    %c0_i32 = arith.constant 0 : i32
    %c0_i32_0 = arith.constant 0 : i32
    %c0_i32_1 = arith.constant 0 : i32
    return %c0_i32, %c0_i32_0 : i32, i32
  }
  func.func @transform_14(%arg0: i32) -> (i32, i32) {
    %c0_i32 = arith.constant 0 : i32
    %c0_i32_0 = arith.constant 0 : i32
    %c0_i32_1 = arith.constant 0 : i32
    return %c0_i32, %c0_i32_0 : i32, i32
  }
  func.func @transform_15(%arg0: i32) -> (i32, i32) {
    %c0_i32 = arith.constant 0 : i32
    %c0_i32_0 = arith.constant 0 : i32
    %c0_i32_1 = arith.constant 0 : i32
    return %c0_i32, %c0_i32_0 : i32, i32
  }
  func.func @transform_16(%arg0: i32) -> (i32, i32) {
    %c0_i32 = arith.constant 0 : i32
    %c0_i32_0 = arith.constant 0 : i32
    return %arg0, %c0_i32 : i32, i32
  }
}

</mosaic_0001>

<llo_original>
// kernel: tpu_custom_call.1
$region0: #{tpu_custom_call.1}
  #allocation0 [shape = 'u32[]', space=smem, size = 0x4, offset = 0x4, fixed_abs, tag = 'smem constant byte address 0x4 - core index']
  #allocation1 [shape = 'u32[72,128]{1,0:T(1,128)}', space=vmem, size = 0x9000, scoped, tag = 'internal scratch']
  #allocation2 [shape = 'bf16[16,32]{1,0:T(8,128)(2,1)}', space=vmem, size = 0x1000, scoped, tag = 'scratch operand']
  %s0 = inlined_call_operand.vmem [shape: f32[2,8,32], index: 0, kind: input, shape index: {}]
  %s1 = inlined_call_operand.vmem [shape: f32[1,32], index: 1, kind: input, shape index: {}]
  %s2 = inlined_call_operand.vmem [shape: f32[1,32], index: 2, kind: input, shape index: {}]
  %s3 = inlined_call_operand.hbm [shape: bf16[32,96], index: 3, kind: input, shape index: {}]
  %s4 = inlined_call_operand.vmem [shape: f32[1,96], index: 4, kind: input, shape index: {}]
  %s5 = inlined_call_operand.hbm [shape: bf16[32,32], index: 5, kind: input, shape index: {}]
  %s6 = inlined_call_operand.vmem [shape: f32[1,32], index: 6, kind: input, shape index: {}]
  %s7 = inlined_call_operand.vmem [shape: f32[1,32], index: 7, kind: input, shape index: {}]
  %s8 = inlined_call_operand.vmem [shape: f32[1,32], index: 8, kind: input, shape index: {}]
  %s9 = inlined_call_operand.hbm [shape: bf16[32,128], index: 9, kind: input, shape index: {}]
  %s10 = inlined_call_operand.vmem [shape: f32[1,128], index: 10, kind: input, shape index: {}]
  %s11 = inlined_call_operand.vmem [shape: bf16[128,32], index: 11, kind: input, shape index: {}]
  %s12 = inlined_call_operand.vmem [shape: f32[1,32], index: 12, kind: input, shape index: {}]
  %s13 = inlined_call_operand.vmem [shape: f32[1,32], index: 13, kind: input, shape index: {}]
  %s14 = inlined_call_operand.vmem [shape: f32[1,32], index: 14, kind: input, shape index: {}]
  %s15 = inlined_call_operand.vmem [shape: bf16[32,512], index: 15, kind: input, shape index: {}]
  %s16 = inlined_call_operand.hbm [shape: f32[2,512], index: 16, kind: output, shape index: {}]
  %s17 = sld [smem:[#allocation0]]
  $region86: #{tpu_custom_call.1} parent=0
    _
  %s19 = ssub.s32 1, %s17
  %s20 = scalar_select 0, %s19, %s17
  $region1: #{tpu_custom_call.1} parent=0
    #allocation3 [shape = 'u8[8192]{0}', space=vmem, size = 0x2000, scoped, tag = 'input window, operand 3, single buffered']
    #allocation4 [shape = 's32[1]{0}', space=sflag, size = 0x4, scoped, tag = 'scoped memory for tpu_custom_call.1']
    #allocation5 [shape = 's32[1]{0}', space=sflag, size = 0x4, scoped, tag = 'scoped memory for tpu_custom_call.1']
    #allocation6 [shape = 'u8[8192]{0}', space=vmem, size = 0x2000, scoped, tag = 'input window, operand 5, single buffered']
    #allocation7 [shape = 's32[1]{0}', space=sflag, size = 0x4, scoped, tag = 'scoped memory for tpu_custom_call.1']
    #allocation8 [shape = 'u8[8192]{0}', space=vmem, size = 0x2000, scoped, tag = 'input window, operand 9, single buffered']
    #allocation9 [shape = 'u8[4096]{0}', space=vmem, size = 0x1000, scoped, tag = 'output window, operand 0, single buffered']
    %21 = vsyncpa [#allocation4], 0
    %22 = vsyncpa [#allocation7], 0
    %23 = vsyncpa [#allocation5], 0
    // Predicated region
    $region2: #{tpu_custom_call.1} parent=1 // pred_check
      _
    $region3: #{tpu_custom_call.1} parent=1 // pred_check_branch
      %25 = sbr.rel (0) target = $region5
    $region4: #{tpu_custom_call.1} parent=1 // pred_region
      _
    $region5: #{tpu_custom_call.1} parent=1 // pred_fallthru
      _
    // Predicated region
    $region6: #{tpu_custom_call.1} parent=1 // pred_check
      _
    $region7: #{tpu_custom_call.1} parent=1 // pred_check_branch
      %27 = sbr.rel (0) target = $region9
    $region8: #{tpu_custom_call.1} parent=1 // pred_region
      _
    $region9: #{tpu_custom_call.1} parent=1 // pred_fallthru
      _
    // Predicated region
    $region10: #{tpu_custom_call.1} parent=1 // pred_check
      _
    $region11: #{tpu_custom_call.1} parent=1 // pred_check_branch
      %29 = sbr.rel (0) target = $region13
    $region12: #{tpu_custom_call.1} parent=1 // pred_region
      _
    $region13: #{tpu_custom_call.1} parent=1 // pred_fallthru
      _
    // Predicated region
    $region14: #{tpu_custom_call.1} parent=1 // pred_check
      _
    $region15: #{tpu_custom_call.1} parent=1 // pred_check_branch
      %31 = sbr.rel (0) target = $region17
    $region16: #{tpu_custom_call.1} parent=1 // pred_region
      %33 = vsyncadd [#allocation4], 0
      %s34 = sshll.u32 %s3, 4
      %s35 = int_to_ptr.hbm [resolvable:$true] %s34
      %s36 = sshll.u32 [#allocation3], 4
      %s37 = int_to_ptr.vmem [resolvable:$true] %s36
      %42 = dma.hbm_to_vmem [thread:$0]  %s35, 256, %s37, [#allocation4], 64, 64, 4
    $region17: #{tpu_custom_call.1} parent=1 // pred_fallthru
      _
    // Predicated region
    $region18: #{tpu_custom_call.1} parent=1 // pred_check
      _
    $region19: #{tpu_custom_call.1} parent=1 // pred_check_branch
      %44 = sbr.rel (0) target = $region21
    $region20: #{tpu_custom_call.1} parent=1 // pred_region
      _
    $region21: #{tpu_custom_call.1} parent=1 // pred_fallthru
      _
    // Predicated region
    $region22: #{tpu_custom_call.1} parent=1 // pred_check
      _
    $region23: #{tpu_custom_call.1} parent=1 // pred_check_branch
      %46 = sbr.rel (0) target = $region25
    $region24: #{tpu_custom_call.1} parent=1 // pred_region
      %48 = vsyncadd [#allocation7], 0
      %s49 = sshll.u32 %s5, 4
      %s50 = int_to_ptr.hbm [resolvable:$true] %s49
      %s51 = sshll.u32 [#allocation6], 4
      %s52 = int_to_ptr.vmem [resolvable:$true] %s51
      %57 = dma.hbm_to_vmem [thread:$0]  %s50, 256, %s52, [#allocation7], 64, 64, 4
    $region25: #{tpu_custom_call.1} parent=1 // pred_fallthru
      _
    // Predicated region
    $region26: #{tpu_custom_call.1} parent=1 // pred_check
      _
    $region27: #{tpu_custom_call.1} parent=1 // pred_check_branch
      %59 = sbr.rel (0) target = $region29
    $region28: #{tpu_custom_call.1} parent=1 // pred_region
      _
    $region29: #{tpu_custom_call.1} parent=1 // pred_fallthru
      _
    // Predicated region
    $region30: #{tpu_custom_call.1} parent=1 // pred_check
      _
    $region31: #{tpu_custom_call.1} parent=1 // pred_check_branch
      %61 = sbr.rel (0) target = $region33
    $region32: #{tpu_custom_call.1} parent=1 // pred_region
      _
    $region33: #{tpu_custom_call.1} parent=1 // pred_fallthru
      _
    // Predicated region
    $region34: #{tpu_custom_call.1} parent=1 // pred_check
      _
    $region35: #{tpu_custom_call.1} parent=1 // pred_check_branch
      %63 = sbr.rel (0) target = $region37
    $region36: #{tpu_custom_call.1} parent=1 // pred_region
      _
    $region37: #{tpu_custom_call.1} parent=1 // pred_fallthru
      _
    // Predicated region
    $region38: #{tpu_custom_call.1} parent=1 // pred_check
      _
    $region39: #{tpu_custom_call.1} parent=1 // pred_check_branch
      %65 = sbr.rel (0) target = $region41
    $region40: #{tpu_custom_call.1} parent=1 // pred_region
      %67 = vsyncadd [#allocation7], 0
      %s68 = sshll.u32 %s9, 4
      %s69 = int_to_ptr.hbm [resolvable:$true] %s68
      %s70 = sshll.u32 [#allocation8], 4
      %s71 = int_to_ptr.vmem [resolvable:$true] %s70
      %76 = dma.hbm_to_vmem [thread:$0]  %s69, 256, %s71, [#allocation7], 64, 64, 4
    $region41: #{tpu_custom_call.1} parent=1 // pred_fallthru
      _
    // Predicated region
    $region42: #{tpu_custom_call.1} parent=1 // pred_check
      _
    $region43: #{tpu_custom_call.1} parent=1 // pred_check_branch
      %78 = sbr.rel (0) target = $region45
    $region44: #{tpu_custom_call.1} parent=1 // pred_region
      _
    $region45: #{tpu_custom_call.1} parent=1 // pred_fallthru
      _
    // Predicated region
    $region46: #{tpu_custom_call.1} parent=1 // pred_check
      _
    $region47: #{tpu_custom_call.1} parent=1 // pred_check_branch
      %80 = sbr.rel (0) target = $region49
    $region48: #{tpu_custom_call.1} parent=1 // pred_region
      _
    $region49: #{tpu_custom_call.1} parent=1 // pred_fallthru
      _
    // Predicated region
    $region50: #{tpu_custom_call.1} parent=1 // pred_check
      _
    $region51: #{tpu_custom_call.1} parent=1 // pred_check_branch
      %82 = sbr.rel (0) target = $region53
    $region52: #{tpu_custom_call.1} parent=1 // pred_region
      _
    $region53: #{tpu_custom_call.1} parent=1 // pred_fallthru
      _
    // Predicated region
    $region54: #{tpu_custom_call.1} parent=1 // pred_check
      _
    $region55: #{tpu_custom_call.1} parent=1 // pred_check_branch
      %84 = sbr.rel (0) target = $region57
    $region56: #{tpu_custom_call.1} parent=1 // pred_region
      _
    $region57: #{tpu_custom_call.1} parent=1 // pred_fallthru
      _
    // Predicated region
    $region58: #{tpu_custom_call.1} parent=1 // pred_check
      _
    $region59: #{tpu_custom_call.1} parent=1 // pred_check_branch
      %86 = sbr.rel (0) target = $region61
    $region60: #{tpu_custom_call.1} parent=1 // pred_region
      _
    $region61: #{tpu_custom_call.1} parent=1 // pred_fallthru
      _
    // Predicated region
    $region62: #{tpu_custom_call.1} parent=1 // pred_check
      _
    $region63: #{tpu_custom_call.1} parent=1 // pred_check_branch
      %88 = sbr.rel (0) target = $region65
    $region64: #{tpu_custom_call.1} parent=1 // pred_region
      _
    $region65: #{tpu_custom_call.1} parent=1 // pred_fallthru
      _
    // Predicated region
    $region66: #{tpu_custom_call.1} parent=1 // pred_check
      _
    $region67: #{tpu_custom_call.1} parent=1 // pred_check_branch
      %90 = sbr.rel (0) target = $region69
    $region68: #{tpu_custom_call.1} parent=1 // pred_region
      %92 = dma.done [#allocation4], 256
    $region69: #{tpu_custom_call.1} parent=1 // pred_fallthru
      _
    // Predicated region
    $region70: #{tpu_custom_call.1} parent=1 // pred_check
      _
    $region71: #{tpu_custom_call.1} parent=1 // pred_check_branch
      %94 = sbr.rel (0) target = $region73
    $region72: #{tpu_custom_call.1} parent=1 // pred_region
      %96 = dma.done [#allocation7], 256
    $region73: #{tpu_custom_call.1} parent=1 // pred_fallthru
      _
    // Predicated region
    $region74: #{tpu_custom_call.1} parent=1 // pred_check
      _
    $region75: #{tpu_custom_call.1} parent=1 // pred_check_branch
      %98 = sbr.rel (0) target = $region77
    $region76: #{tpu_custom_call.1} parent=1 // pred_region
      %100 = dma.done [#allocation7], 256
    $region77: #{tpu_custom_call.1} parent=1 // pred_fallthru
      _
    %v103 = vld [vmem:[%s0] sm:$0xff]
    %v104 = vld [vmem:[%s0 + $0x8] sm:$0xff]
    %v105 = vld [vmem:[%s1] sm:$0x1]
    %v106 = vld [vmem:[%s2] sm:$0x1]
    %vm107 = vcmask 261120
    %v108 = vsel %vm107, %v103, 0.0
    %109 = vadd.xlane.f32.xlu0 %v108
    %v110 = vpop.xlane.xlu0 %109
    %v111 = vsel %vm107, %v104, 0.0
    %112 = vadd.xlane.f32.xlu0 %v111
    %v113 = vpop.xlane.xlu0 %112
    %v114 = vrcp.pop 32.0
    %v115 = vmul.f32 32.0, %v114
    %v116 = vsub.f32 1.0, %v115
    %v117 = vmul.f32 %v114, %v116
    %v118 = vadd.f32 %v114, %v117
    %vm119 = vweird.f32 %v114
    %v120 = vsel %vm119, %v114, %v118
    %v121 = vmul.f32 %v110, %v120
    %v122 = vmul.f32 %v113, %v120
    %v123 = vsub.f32 %v103, %v121
    %v124 = vsub.f32 %v104, %v122
    %v125 = vmul.f32 %v123, %v123
    %v126 = vmul.f32 %v124, %v124
    %v127 = vsel %vm107, %v125, 0.0
    %128 = vadd.xlane.f32.xlu0 %v127
    %v129 = vpop.xlane.xlu0 %128
    %v130 = vsel %vm107, %v126, 0.0
    %131 = vadd.xlane.f32.xlu0 %v130
    %v132 = vpop.xlane.xlu0 %131
    %v133 = vmul.f32 %v129, %v120
    %v134 = vmul.f32 %v132, %v120
    %v135 = vadd.f32 %v133, 1e-05
    %v136 = vadd.f32 %v134, 1e-05
    %v137 = vrsqrt.pop %v135
    %v138 = vmul.f32 %v137, %v135
    %v139 = vmul.f32 %v138, %v137
    %v140 = vmul.f32 0.5, %v139
    %v141 = vsub.f32 1.5, %v140
    %v142 = vmul.f32 %v137, %v141
    %vm143 = vweird.f32 %v135
    %vm144 = vweird.f32 %v137
    %vm145 = vmor %vm143, %vm144
    %v146 = vsel %vm145, %v137, %v142
    %v147 = vrsqrt.pop %v136
    %v148 = vmul.f32 %v147, %v136
    %v149 = vmul.f32 %v148, %v147
    %v150 = vmul.f32 0.5, %v149
    %v151 = vsub.f32 1.5, %v150
    %v152 = vmul.f32 %v147, %v151
    %vm153 = vweird.f32 %v136
    %vm154 = vweird.f32 %v147
    %vm155 = vmor %vm153, %vm154
    %v156 = vsel %vm155, %v147, %v152
    %v157 = vmul.f32 %v123, %v146
    %v158 = vmul.f32 %v124, %v156
    %v160 = vperm.slane %v105, 0
    %v162 = vmul.f32 %v157, %v160
    %v163 = vmul.f32 %v158, %v160
    %v165 = vperm.slane %v106, 0
    %v167 = vadd.f32 %v162, %v165
    %v168 = vadd.f32 %v163, %v165
    %v169 = vpack.c.bf16 %v168, %v167
    %v170 = vld [vmem:[#allocation3] sm:$0xf]
    %v171 = vld [vmem:[#allocation3 + $0x4] sm:$0xf]
    %v172 = vld [vmem:[#allocation3 + $0x8] sm:$0xf]
    %v173 = vld [vmem:[#allocation3 + $0xc] sm:$0xf]
    %v174 = vld [vmem:[%s4] sm:$0x1]
    %v176 = vperm.slane %v174, 0
    %v182 = vunpack.c.l.b16 %v170
    %v183 = vunpack.c.l.b16 %v171
    %v184 = vunpack.c.l.b16 %v172
    %v185 = vunpack.c.l.b16 %v173
    %v186 = vpack.c.b16 %v183, %v182
    %v187 = vpack.c.b16 %v185, %v184
    %v191 = vsel %vm107, %v169, 0
    %193 = vmatpush.bf16.msra.mxu0 0
    %194 = vmatpush.bf16.msra.mxu0 0
    %195 = vmatpush.bf16.msra.mxu0 0
    %196 = vmatpush.bf16.msra.mxu0 0
    %197 = vmatpush.bf16.msra.mxu0 0
    %198 = vmatpush.bf16.msra.mxu0 0
    %199 = vmatpush.bf16.msra.mxu0 %v187
    %200 = vmatpush.bf16.msra.mxu0 %v186
    %201 = vmatmul.bf16.gmra.mxu0 %v191
    %v202 = vpop.f32.mrf.mxu0
    %v203 = vadd.f32 %v176, %v202
    %v204 = vpop.f32.mrf.mxu0
    %v205 = vadd.f32 %v176, %v204
    %206 = vdwg.mxu0
    %v207 = vpack.c.bf16 %v203, %v203
    %v208 = vpack.c.bf16 %v205, %v205
    %209 = vrot.lane.b32.xlu0 %v186, 96
    %v210 = vpop.permute.xlu0 %209
    %211 = vrot.lane.b32.xlu0 %v187, 96
    %v212 = vpop.permute.xlu0 %211
    %215 = vrot.lane.b32.xlu0 %v176, 96
    %v216 = vpop.permute.xlu0 %215
    %218 = vmatpush.bf16.msra.mxu0 0
    %219 = vmatpush.bf16.msra.mxu0 0
    %220 = vmatpush.bf16.msra.mxu0 0
    %221 = vmatpush.bf16.msra.mxu0 0
    %222 = vmatpush.bf16.msra.mxu0 0
    %223 = vmatpush.bf16.msra.mxu0 0
    %224 = vmatpush.bf16.msra.mxu0 %v212
    %225 = vmatpush.bf16.msra.mxu0 %v210
    %226 = vmatmul.bf16.gmra.mxu0 %v191
    %v227 = vpop.f32.mrf.mxu0
    %v228 = vadd.f32 %v216, %v227
    %v229 = vpop.f32.mrf.mxu0
    %v230 = vadd.f32 %v216, %v229
    %231 = vdwg.mxu0
    %v232 = vpack.c.bf16 %v228, %v228
    %v233 = vpack.c.bf16 %v230, %v230
    %234 = vrot.lane.b32.xlu0 %v186, 64
    %v235 = vpop.permute.xlu0 %234
    %236 = vrot.lane.b32.xlu0 %v187, 64
    %v237 = vpop.permute.xlu0 %236
    %240 = vrot.lane.b32.xlu0 %v176, 64
    %v241 = vpop.permute.xlu0 %240
    %243 = vmatpush.bf16.msra.mxu0 0
    %244 = vmatpush.bf16.msra.mxu0 0
    %245 = vmatpush.bf16.msra.mxu0 0
    %246 = vmatpush.bf16.msra.mxu0 0
    %247 = vmatpush.bf16.msra.mxu0 0
    %248 = vmatpush.bf16.msra.mxu0 0
    %249 = vmatpush.bf16.msra.mxu0 %v237
    %250 = vmatpush.bf16.msra.mxu0 %v235
    %251 = vmatmul.bf16.gmra.mxu0 %v191
    %v252 = vpop.f32.mrf.mxu0
    %v253 = vadd.f32 %v241, %v252
    %v254 = vpop.f32.mrf.mxu0
    %v255 = vadd.f32 %v241, %v254
    %256 = vdwg.mxu0
    %v257 = vpack.c.bf16 %v253, %v253
    %v258 = vpack.c.bf16 %v255, %v255
    %vm259 = vcmask 64512
    %v261 = vsel %vm259, %v207, 0
    %v264 = vsel %vm259, %v232, 0
    %266 = vmatpush.bf16.xpose.msra.mxu0 0
    %267 = vmatpush.bf16.xpose.msra.mxu0 0
    %268 = vmatpush.bf16.xpose.msra.mxu0 0
    %269 = vmatpush.bf16.xpose.msra.mxu0 0
    %270 = vmatpush.bf16.xpose.msra.mxu0 0
    %271 = vmatpush.bf16.xpose.msra.mxu0 0
    %272 = vmatpush.bf16.xpose.msra.mxu0 0
    %273 = vmatpush.bf16.xpose.msra.mxu0 %v264
    %274 = vmatmul.bf16.gmra.mxu0 %v261
    %v275 = vpop.f32.mrf.mxu0
    %v276 = vadd.f32 0.0, %v275
    %v277 = vpop.f32.mrf.mxu0
    %278 = vdwg.mxu0
    %v280 = vsel %vm259, %v208, 0
    %v283 = vsel %vm259, %v233, 0
    %285 = vmatpush.bf16.xpose.msra.mxu0 0
    %286 = vmatpush.bf16.xpose.msra.mxu0 0
    %287 = vmatpush.bf16.xpose.msra.mxu0 0
    %288 = vmatpush.bf16.xpose.msra.mxu0 0
    %289 = vmatpush.bf16.xpose.msra.mxu0 0
    %290 = vmatpush.bf16.xpose.msra.mxu0 0
    %291 = vmatpush.bf16.xpose.msra.mxu0 0
    %292 = vmatpush.bf16.xpose.msra.mxu0 %v283
    %293 = vmatmul.bf16.gmra.mxu0 %v280
    %v294 = vpop.f32.mrf.mxu0
    %v295 = vadd.f32 0.0, %v294
    %v296 = vpop.f32.mrf.mxu0
    %297 = vdwg.mxu0
    %v298 = vsel %vm259, %v276, -inf
    %299 = vmax.xlane.f32.xlu0 %v298
    %v300 = vpop.xlane.xlu0 %299
    %v301 = vsel %vm259, %v295, -inf
    %302 = vmax.xlane.f32.xlu0 %v301
    %v303 = vpop.xlane.xlu0 %302
    %v304 = vsub.f32 %v276, %v300
    %v305 = vsub.f32 %v295, %v303
    %v306 = vmul.f32 %v304, 1.442695
    %v307 = vpow.pop %v306
    %v308 = vmul.f32 %v305, 1.442695
    %v309 = vpow.pop %v308
    %v310 = vsel %vm259, %v307, 0.0
    %311 = vadd.xlane.f32.xlu0 %v310
    %v312 = vpop.xlane.xlu0 %311
    %v313 = vsel %vm259, %v309, 0.0
    %314 = vadd.xlane.f32.xlu0 %v313
    %v315 = vpop.xlane.xlu0 %314
    %v316 = vrcp.pop %v312
    %v317 = vrcp.pop %v315
    %v318 = vmul.f32 %v307, %v316
    %v319 = vmul.f32 %v309, %v317
    %v320 = vpack.c.bf16 %v318, %v318
    %v321 = vpack.c.bf16 %v319, %v319
    %v323 = vsel %vm259, %v320, 0
    %vm325 = vcmask 1043456
    %v327 = vsel %vm325, %v257, 0
    %329 = vmatpush.bf16.msra.mxu0 0
    %330 = vmatpush.bf16.msra.mxu0 0
    %331 = vmatpush.bf16.msra.mxu0 0
    %332 = vmatpush.bf16.msra.mxu0 0
    %333 = vmatpush.bf16.msra.mxu0 0
    %334 = vmatpush.bf16.msra.mxu0 0
    %335 = vmatpush.bf16.msra.mxu0 0
    %336 = vmatpush.bf16.msra.mxu0 %v327
    %337 = vmatmul.bf16.gmra.mxu0 %v323
    %v338 = vpop.f32.mrf.mxu0
    %v339 = vadd.f32 0.0, %v338
    %v340 = vpop.f32.mrf.mxu0
    %341 = vdwg.mxu0
    %v343 = vsel %vm259, %v321, 0
    %v346 = vsel %vm325, %v258, 0
    %348 = vmatpush.bf16.msra.mxu0 0
    %349 = vmatpush.bf16.msra.mxu0 0
    %350 = vmatpush.bf16.msra.mxu0 0
    %351 = vmatpush.bf16.msra.mxu0 0
    %352 = vmatpush.bf16.msra.mxu0 0
    %353 = vmatpush.bf16.msra.mxu0 0
    %354 = vmatpush.bf16.msra.mxu0 0
    %355 = vmatpush.bf16.msra.mxu0 %v346
    %356 = vmatmul.bf16.gmra.mxu0 %v343
    %v357 = vpop.f32.mrf.mxu0
    %v358 = vadd.f32 0.0, %v357
    %v359 = vpop.f32.mrf.mxu0
    %360 = vdwg.mxu0
    %v362 = vunpack.c.l.b16 %v207
    %v363 = vpack.c.b16 %v362, %v362
    %364 = vrot.lane.b32.xlu0 %v363, 120
    %v365 = vpop.permute.xlu0 %364
    %v367 = vunpack.c.l.b16 %v232
    %v368 = vpack.c.b16 %v367, %v367
    %369 = vrot.lane.b32.xlu0 %v368, 120
    %v370 = vpop.permute.xlu0 %369
    %v372 = vsel %vm259, %v365, 0
    %v375 = vsel %vm259, %v370, 0
    %377 = vmatpush.bf16.xpose.msra.mxu0 0
    %378 = vmatpush.bf16.xpose.msra.mxu0 0
    %379 = vmatpush.bf16.xpose.msra.mxu0 0
    %380 = vmatpush.bf16.xpose.msra.mxu0 0
    %381 = vmatpush.bf16.xpose.msra.mxu0 0
    %382 = vmatpush.bf16.xpose.msra.mxu0 0
    %383 = vmatpush.bf16.xpose.msra.mxu0 0
    %384 = vmatpush.bf16.xpose.msra.mxu0 %v375
    %385 = vmatmul.bf16.gmra.mxu0 %v372
    %v386 = vpop.f32.mrf.mxu0
    %v387 = vadd.f32 0.0, %v386
    %v388 = vpop.f32.mrf.mxu0
    %389 = vdwg.mxu0
    %v391 = vunpack.c.l.b16 %v208
    %v392 = vpack.c.b16 %v391, %v391
    %393 = vrot.lane.b32.xlu0 %v392, 120
    %v394 = vpop.permute.xlu0 %393
    %v396 = vunpack.c.l.b16 %v233
    %v397 = vpack.c.b16 %v396, %v396
    %398 = vrot.lane.b32.xlu0 %v397, 120
    %v399 = vpop.permute.xlu0 %398
    %v401 = vsel %vm259, %v394, 0
    %v404 = vsel %vm259, %v399, 0
    %406 = vmatpush.bf16.xpose.msra.mxu0 0
    %407 = vmatpush.bf16.xpose.msra.mxu0 0
    %408 = vmatpush.bf16.xpose.msra.mxu0 0
    %409 = vmatpush.bf16.xpose.msra.mxu0 0
    %410 = vmatpush.bf16.xpose.msra.mxu0 0
    %411 = vmatpush.bf16.xpose.msra.mxu0 0
    %412 = vmatpush.bf16.xpose.msra.mxu0 0
    %413 = vmatpush.bf16.xpose.msra.mxu0 %v404
    %414 = vmatmul.bf16.gmra.mxu0 %v401
    %v415 = vpop.f32.mrf.mxu0
    %v416 = vadd.f32 0.0, %v415
    %v417 = vpop.f32.mrf.mxu0
    %418 = vdwg.mxu0
    %v419 = vsel %vm259, %v387, -inf
    %420 = vmax.xlane.f32.xlu0 %v419
    %v421 = vpop.xlane.xlu0 %420
    %v422 = vsel %vm259, %v416, -inf
    %423 = vmax.xlane.f32.xlu0 %v422
    %v424 = vpop.xlane.xlu0 %423
    %v425 = vsub.f32 %v387, %v421
    %v426 = vsub.f32 %v416, %v424
    %v427 = vmul.f32 %v425, 1.442695
    %v428 = vpow.pop %v427
    %v429 = vmul.f32 %v426, 1.442695
    %v430 = vpow.pop %v429
    %v431 = vsel %vm259, %v428, 0.0
    %432 = vadd.xlane.f32.xlu0 %v431
    %v433 = vpop.xlane.xlu0 %432
    %v434 = vsel %vm259, %v430, 0.0
    %435 = vadd.xlane.f32.xlu0 %v434
    %v436 = vpop.xlane.xlu0 %435
    %v437 = vrcp.pop %v433
    %v438 = vrcp.pop %v436
    %v439 = vmul.f32 %v428, %v437
    %v440 = vmul.f32 %v430, %v438
    %v441 = vpack.c.bf16 %v439, %v439
    %v442 = vpack.c.bf16 %v440, %v440
    %v444 = vunpack.c.l.b16 %v257
    %v445 = vpack.c.b16 %v444, %v444
    %446 = vrot.lane.b32.xlu0 %v445, 120
    %v447 = vpop.permute.xlu0 %446
    %v449 = vsel %vm259, %v441, 0
    %v452 = vsel %vm325, %v447, 0
    %454 = vmatpush.bf16.msra.mxu0 0
    %455 = vmatpush.bf16.msra.mxu0 0
    %456 = vmatpush.bf16.msra.mxu0 0
    %457 = vmatpush.bf16.msra.mxu0 0
    %458 = vmatpush.bf16.msra.mxu0 0
    %459 = vmatpush.bf16.msra.mxu0 0
    %460 = vmatpush.bf16.msra.mxu0 0
    %461 = vmatpush.bf16.msra.mxu0 %v452
    %462 = vmatmul.bf16.gmra.mxu0 %v449
    %v463 = vpop.f32.mrf.mxu0
    %v464 = vadd.f32 0.0, %v463
    %v465 = vpop.f32.mrf.mxu0
    %466 = vdwg.mxu0
    %v468 = vunpack.c.l.b16 %v258
    %v469 = vpack.c.b16 %v468, %v468
    %470 = vrot.lane.b32.xlu0 %v469, 120
    %v471 = vpop.permute.xlu0 %470
    %v473 = vsel %vm259, %v442, 0
    %v476 = vsel %vm325, %v471, 0
    %478 = vmatpush.bf16.msra.mxu0 0
    %479 = vmatpush.bf16.msra.mxu0 0
    %480 = vmatpush.bf16.msra.mxu0 0
    %481 = vmatpush.bf16.msra.mxu0 0
    %482 = vmatpush.bf16.msra.mxu0 0
    %483 = vmatpush.bf16.msra.mxu0 0
    %484 = vmatpush.bf16.msra.mxu0 0
    %485 = vmatpush.bf16.msra.mxu0 %v476
    %486 = vmatmul.bf16.gmra.mxu0 %v473
    %v487 = vpop.f32.mrf.mxu0
    %v488 = vadd.f32 0.0, %v487
    %v489 = vpop.f32.mrf.mxu0
    %490 = vdwg.mxu0
    %493 = vrot.lane.b32.xlu0 %v464, 8
    %v494 = vpop.permute.xlu0 %493
    %495 = vrot.lane.b32.xlu0 %v488, 8
    %v496 = vpop.permute.xlu0 %495
    %v499 = vsel %vm259, %v339, %v494
    %v500 = vsel %vm259, %v358, %v496
    %v501 = vpack.c.bf16 %v499, %v499
    %v502 = vpack.c.bf16 %v500, %v500
    %vm503 = vcmask 125952
    %504 = vst.msk [vmem:[#allocation2] sm:$0xf] %vm503, %v501
    %505 = vst.msk [vmem:[#allocation2 + $0x4] sm:$0xf] %vm503, %v502
    %506 = vrot.lane.b32.xlu0 %v363, 112
    %v507 = vpop.permute.xlu0 %506
    %508 = vrot.lane.b32.xlu0 %v368, 112
    %v509 = vpop.permute.xlu0 %508
    %v511 = vsel %vm259, %v507, 0
    %v514 = vsel %vm259, %v509, 0
    %516 = vmatpush.bf16.xpose.msra.mxu0 0
    %517 = vmatpush.bf16.xpose.msra.mxu0 0
    %518 = vmatpush.bf16.xpose.msra.mxu0 0
    %519 = vmatpush.bf16.xpose.msra.mxu0 0
    %520 = vmatpush.bf16.xpose.msra.mxu0 0
    %521 = vmatpush.bf16.xpose.msra.mxu0 0
    %522 = vmatpush.bf16.xpose.msra.mxu0 0
    %523 = vmatpush.bf16.xpose.msra.mxu0 %v514
    %524 = vmatmul.bf16.gmra.mxu0 %v511
    %v525 = vpop.f32.mrf.mxu0
    %v526 = vadd.f32 0.0, %v525
    %v527 = vpop.f32.mrf.mxu0
    %528 = vdwg.mxu0
    %529 = vrot.lane.b32.xlu0 %v392, 112
    %v530 = vpop.permute.xlu0 %529
    %531 = vrot.lane.b32.xlu0 %v397, 112
    %v532 = vpop.permute.xlu0 %531
    %v534 = vsel %vm259, %v530, 0
    %v537 = vsel %vm259, %v532, 0
    %539 = vmatpush.bf16.xpose.msra.mxu0 0
    %540 = vmatpush.bf16.xpose.msra.mxu0 0
    %541 = vmatpush.bf16.xpose.msra.mxu0 0
    %542 = vmatpush.bf16.xpose.msra.mxu0 0
    %543 = vmatpush.bf16.xpose.msra.mxu0 0
    %544 = vmatpush.bf16.xpose.msra.mxu0 0
    %545 = vmatpush.bf16.xpose.msra.mxu0 0
    %546 = vmatpush.bf16.xpose.msra.mxu0 %v537
    %547 = vmatmul.bf16.gmra.mxu0 %v534
    %v548 = vpop.f32.mrf.mxu0
    %v549 = vadd.f32 0.0, %v548
    %v550 = vpop.f32.mrf.mxu0
    %551 = vdwg.mxu0
    %v552 = vsel %vm259, %v526, -inf
    %553 = vmax.xlane.f32.xlu0 %v552
    %v554 = vpop.xlane.xlu0 %553
    %v555 = vsel %vm259, %v549, -inf
    %556 = vmax.xlane.f32.xlu0 %v555
    %v557 = vpop.xlane.xlu0 %556
    %v558 = vsub.f32 %v526, %v554
    %v559 = vsub.f32 %v549, %v557
    %v560 = vmul.f32 %v558, 1.442695
    %v561 = vpow.pop %v560
    %v562 = vmul.f32 %v559, 1.442695
    %v563 = vpow.pop %v562
    %v564 = vsel %vm259, %v561, 0.0
    %565 = vadd.xlane.f32.xlu0 %v564
    %v566 = vpop.xlane.xlu0 %565
    %v567 = vsel %vm259, %v563, 0.0
    %568 = vadd.xlane.f32.xlu0 %v567
    %v569 = vpop.xlane.xlu0 %568
    %v570 = vrcp.pop %v566
    %v571 = vrcp.pop %v569
    %v572 = vmul.f32 %v561, %v570
    %v573 = vmul.f32 %v563, %v571
    %v574 = vpack.c.bf16 %v572, %v572
    %v575 = vpack.c.bf16 %v573, %v573
    %576 = vrot.lane.b32.xlu0 %v445, 112
    %v577 = vpop.permute.xlu0 %576
    %v579 = vsel %vm259, %v574, 0
    %v582 = vsel %vm325, %v577, 0
    %584 = vmatpush.bf16.msra.mxu0 0
    %585 = vmatpush.bf16.msra.mxu0 0
    %586 = vmatpush.bf16.msra.mxu0 0
    %587 = vmatpush.bf16.msra.mxu0 0
    %588 = vmatpush.bf16.msra.mxu0 0
    %589 = vmatpush.bf16.msra.mxu0 0
    %590 = vmatpush.bf16.msra.mxu0 0
    %591 = vmatpush.bf16.msra.mxu0 %v582
    %592 = vmatmul.bf16.gmra.mxu0 %v579
    %v593 = vpop.f32.mrf.mxu0
    %v594 = vadd.f32 0.0, %v593
    %v595 = vpop.f32.mrf.mxu0
    %596 = vdwg.mxu0
    %597 = vrot.lane.b32.xlu0 %v469, 112
    %v598 = vpop.permute.xlu0 %597
    %v600 = vsel %vm259, %v575, 0
    %v603 = vsel %vm325, %v598, 0
    %605 = vmatpush.bf16.msra.mxu0 0
    %606 = vmatpush.bf16.msra.mxu0 0
    %607 = vmatpush.bf16.msra.mxu0 0
    %608 = vmatpush.bf16.msra.mxu0 0
    %609 = vmatpush.bf16.msra.mxu0 0
    %610 = vmatpush.bf16.msra.mxu0 0
    %611 = vmatpush.bf16.msra.mxu0 0
    %612 = vmatpush.bf16.msra.mxu0 %v603
    %613 = vmatmul.bf16.gmra.mxu0 %v600
    %v614 = vpop.f32.mrf.mxu0
    %v615 = vadd.f32 0.0, %v614
    %v616 = vpop.f32.mrf.mxu0
    %617 = vdwg.mxu0
    %618 = vrot.lane.b32.xlu0 %v363, 104
    %v619 = vpop.permute.xlu0 %618
    %620 = vrot.lane.b32.xlu0 %v368, 104
    %v621 = vpop.permute.xlu0 %620
    %v623 = vsel %vm259, %v619, 0
    %v626 = vsel %vm259, %v621, 0
    %628 = vmatpush.bf16.xpose.msra.mxu0 0
    %629 = vmatpush.bf16.xpose.msra.mxu0 0
    %630 = vmatpush.bf16.xpose.msra.mxu0 0
    %631 = vmatpush.bf16.xpose.msra.mxu0 0
    %632 = vmatpush.bf16.xpose.msra.mxu0 0
    %633 = vmatpush.bf16.xpose.msra.mxu0 0
    %634 = vmatpush.bf16.xpose.msra.mxu0 0
    %635 = vmatpush.bf16.xpose.msra.mxu0 %v626
    %636 = vmatmul.bf16.gmra.mxu0 %v623
    %v637 = vpop.f32.mrf.mxu0
    %v638 = vadd.f32 0.0, %v637
    %v639 = vpop.f32.mrf.mxu0
    %640 = vdwg.mxu0
    %641 = vrot.lane.b32.xlu0 %v392, 104
    %v642 = vpop.permute.xlu0 %641
    %643 = vrot.lane.b32.xlu0 %v397, 104
    %v644 = vpop.permute.xlu0 %643
    %v646 = vsel %vm259, %v642, 0
    %v649 = vsel %vm259, %v644, 0
    %651 = vmatpush.bf16.xpose.msra.mxu0 0
    %652 = vmatpush.bf16.xpose.msra.mxu0 0
    %653 = vmatpush.bf16.xpose.msra.mxu0 0
    %654 = vmatpush.bf16.xpose.msra.mxu0 0
    %655 = vmatpush.bf16.xpose.msra.mxu0 0
    %656 = vmatpush.bf16.xpose.msra.mxu0 0
    %657 = vmatpush.bf16.xpose.msra.mxu0 0
    %658 = vmatpush.bf16.xpose.msra.mxu0 %v649
    %659 = vmatmul.bf16.gmra.mxu0 %v646
    %v660 = vpop.f32.mrf.mxu0
    %v661 = vadd.f32 0.0, %v660
    %v662 = vpop.f32.mrf.mxu0
    %663 = vdwg.mxu0
    %v664 = vsel %vm259, %v638, -inf
    %665 = vmax.xlane.f32.xlu0 %v664
    %v666 = vpop.xlane.xlu0 %665
    %v667 = vsel %vm259, %v661, -inf
    %668 = vmax.xlane.f32.xlu0 %v667
    %v669 = vpop.xlane.xlu0 %668
    %v670 = vsub.f32 %v638, %v666
    %v671 = vsub.f32 %v661, %v669
    %v672 = vmul.f32 %v670, 1.442695
    %v673 = vpow.pop %v672
    %v674 = vmul.f32 %v671, 1.442695
    %v675 = vpow.pop %v674
    %v676 = vsel %vm259, %v673, 0.0
    %677 = vadd.xlane.f32.xlu0 %v676
    %v678 = vpop.xlane.xlu0 %677
    %v679 = vsel %vm259, %v675, 0.0
    %680 = vadd.xlane.f32.xlu0 %v679
    %v681 = vpop.xlane.xlu0 %680
    %v682 = vrcp.pop %v678
    %v683 = vrcp.pop %v681
    %v684 = vmul.f32 %v673, %v682
    %v685 = vmul.f32 %v675, %v683
    %v686 = vpack.c.bf16 %v684, %v684
    %v687 = vpack.c.bf16 %v685, %v685
    %688 = vrot.lane.b32.xlu0 %v445, 104
    %v689 = vpop.permute.xlu0 %688
    %v691 = vsel %vm259, %v686, 0
    %v694 = vsel %vm325, %v689, 0
    %696 = vmatpush.bf16.msra.mxu0 0
    %697 = vmatpush.bf16.msra.mxu0 0
    %698 = vmatpush.bf16.msra.mxu0 0
    %699 = vmatpush.bf16.msra.mxu0 0
    %700 = vmatpush.bf16.msra.mxu0 0
    %701 = vmatpush.bf16.msra.mxu0 0
    %702 = vmatpush.bf16.msra.mxu0 0
    %703 = vmatpush.bf16.msra.mxu0 %v694
    %704 = vmatmul.bf16.gmra.mxu0 %v691
    %v705 = vpop.f32.mrf.mxu0
    %v706 = vadd.f32 0.0, %v705
    %v707 = vpop.f32.mrf.mxu0
    %708 = vdwg.mxu0
    %709 = vrot.lane.b32.xlu0 %v469, 104
    %v710 = vpop.permute.xlu0 %709
    %v712 = vsel %vm259, %v687, 0
    %v715 = vsel %vm325, %v710, 0
    %717 = vmatpush.bf16.msra.mxu0 0
    %718 = vmatpush.bf16.msra.mxu0 0
    %719 = vmatpush.bf16.msra.mxu0 0
    %720 = vmatpush.bf16.msra.mxu0 0
    %721 = vmatpush.bf16.msra.mxu0 0
    %722 = vmatpush.bf16.msra.mxu0 0
    %723 = vmatpush.bf16.msra.mxu0 0
    %724 = vmatpush.bf16.msra.mxu0 %v715
    %725 = vmatmul.bf16.gmra.mxu0 %v712
    %v726 = vpop.f32.mrf.mxu0
    %v727 = vadd.f32 0.0, %v726
    %v728 = vpop.f32.mrf.mxu0
    %729 = vdwg.mxu0
    %732 = vrot.lane.b32.xlu0 %v706, 8
    %v733 = vpop.permute.xlu0 %732
    %734 = vrot.lane.b32.xlu0 %v727, 8
    %v735 = vpop.permute.xlu0 %734
    %v738 = vsel %vm259, %v594, %v733
    %v739 = vsel %vm259, %v615, %v735
    %v740 = vpack.c.bf16 %v738, %v738
    %v741 = vpack.c.bf16 %v739, %v739
    %744 = vrot.lane.b32.xlu0 %v740, 16
    %v745 = vpop.permute.xlu0 %744
    %746 = vrot.lane.b32.xlu0 %v741, 16
    %v747 = vpop.permute.xlu0 %746
    %vm750 = vcmask 257152
    %751 = vst.msk [vmem:[#allocation2] sm:$0xf] %vm750, %v745
    %752 = vst.msk [vmem:[#allocation2 + $0x4] sm:$0xf] %vm750, %v747
    %v753 = vld [vmem:[#allocation2] sm:$0xf]
    %v754 = vld [vmem:[#allocation2 + $0x4] sm:$0xf]
    %v755 = vld [vmem:[#allocation6] sm:$0xf]
    %v756 = vld [vmem:[#allocation6 + $0x4] sm:$0xf]
    %v757 = vld [vmem:[#allocation6 + $0x8] sm:$0xf]
    %v758 = vld [vmem:[#allocation6 + $0xc] sm:$0xf]
    %v759 = vld [vmem:[%s6] sm:$0x1]
    %v761 = vperm.slane %v759, 0
    %v765 = vunpack.c.l.b16 %v753
    %v766 = vunpack.c.l.b16 %v754
    %v767 = vpack.c.b16 %v766, %v765
    %v772 = vunpack.c.l.b16 %v755
    %v773 = vunpack.c.l.b16 %v756
    %v774 = vunpack.c.l.b16 %v757
    %v775 = vunpack.c.l.b16 %v758
    %v776 = vpack.c.b16 %v773, %v772
    %v777 = vpack.c.b16 %v775, %v774
    %v781 = vsel %vm107, %v767, 0
    %783 = vmatpush.bf16.msra.mxu0 0
    %784 = vmatpush.bf16.msra.mxu0 0
    %785 = vmatpush.bf16.msra.mxu0 0
    %786 = vmatpush.bf16.msra.mxu0 0
    %787 = vmatpush.bf16.msra.mxu0 0
    %788 = vmatpush.bf16.msra.mxu0 0
    %789 = vmatpush.bf16.msra.mxu0 %v777
    %790 = vmatpush.bf16.msra.mxu0 %v776
    %791 = vmatmul.bf16.gmra.mxu0 %v781
    %v792 = vpop.f32.mrf.mxu0
    %v793 = vadd.f32 %v761, %v792
    %v794 = vpop.f32.mrf.mxu0
    %v795 = vadd.f32 %v761, %v794
    %796 = vdwg.mxu0
    %v797 = vadd.f32 %v103, %v793
    %v798 = vadd.f32 %v104, %v795
    %v799 = vld [vmem:[%s7] sm:$0x1]
    %v800 = vld [vmem:[%s8] sm:$0x1]
    %v801 = vsel %vm107, %v797, 0.0
    %802 = vadd.xlane.f32.xlu0 %v801
    %v803 = vpop.xlane.xlu0 %802
    %v804 = vsel %vm107, %v798, 0.0
    %805 = vadd.xlane.f32.xlu0 %v804
    %v806 = vpop.xlane.xlu0 %805
    %v807 = vmul.f32 %v803, %v120
    %v808 = vmul.f32 %v806, %v120
    %v809 = vsub.f32 %v797, %v807
    %v810 = vsub.f32 %v798, %v808
    %v811 = vmul.f32 %v809, %v809
    %v812 = vmul.f32 %v810, %v810
    %v813 = vsel %vm107, %v811, 0.0
    %814 = vadd.xlane.f32.xlu0 %v813
    %v815 = vpop.xlane.xlu0 %814
    %v816 = vsel %vm107, %v812, 0.0
    %817 = vadd.xlane.f32.xlu0 %v816
    %v818 = vpop.xlane.xlu0 %817
    %v819 = vmul.f32 %v815, %v120
    %v820 = vmul.f32 %v818, %v120
    %v821 = vadd.f32 %v819, 1e-05
    %v822 = vadd.f32 %v820, 1e-05
    %v823 = vrsqrt.pop %v821
    %v824 = vmul.f32 %v823, %v821
    %v825 = vmul.f32 %v824, %v823
    %v826 = vmul.f32 0.5, %v825
    %v827 = vsub.f32 1.5, %v826
    %v828 = vmul.f32 %v823, %v827
    %vm829 = vweird.f32 %v821
    %vm830 = vweird.f32 %v823
    %vm831 = vmor %vm829, %vm830
    %v832 = vsel %vm831, %v823, %v828
    %v833 = vrsqrt.pop %v822
    %v834 = vmul.f32 %v833, %v822
    %v835 = vmul.f32 %v834, %v833
    %v836 = vmul.f32 0.5, %v835
    %v837 = vsub.f32 1.5, %v836
    %v838 = vmul.f32 %v833, %v837
    %vm839 = vweird.f32 %v822
    %vm840 = vweird.f32 %v833
    %vm841 = vmor %vm839, %vm840
    %v842 = vsel %vm841, %v833, %v838
    %v843 = vmul.f32 %v809, %v832
    %v844 = vmul.f32 %v810, %v842
    %v846 = vperm.slane %v799, 0
    %v848 = vmul.f32 %v843, %v846
    %v849 = vmul.f32 %v844, %v846
    %v851 = vperm.slane %v800, 0
    %v853 = vadd.f32 %v848, %v851
    %v854 = vadd.f32 %v849, %v851
    %v855 = vpack.c.bf16 %v854, %v853
    %v856 = vld [vmem:[%s12] sm:$0x1]
    %v858 = vperm.slane %v856, 0
    %v860 = vadd.f32 %v797, %v858
    %v861 = vadd.f32 %v798, %v858
    %v862 = vld [vmem:[#allocation8] sm:$0xf]
    %v863 = vld [vmem:[#allocation8 + $0x4] sm:$0xf]
    %v864 = vld [vmem:[#allocation8 + $0x8] sm:$0xf]
    %v865 = vld [vmem:[#allocation8 + $0xc] sm:$0xf]
    %v866 = vld [vmem:[%s10] sm:$0x1]
    %v868 = vperm.slane %v866, 0
    %v874 = vunpack.c.l.b16 %v862
    %v875 = vunpack.c.l.b16 %v863
    %v876 = vunpack.c.l.b16 %v864
    %v877 = vunpack.c.l.b16 %v865
    %v878 = vpack.c.b16 %v875, %v874
    %v879 = vpack.c.b16 %v877, %v876
    %v883 = vsel %vm107, %v855, 0
    %885 = vmatpush.bf16.msra.mxu0 0
    %886 = vmatpush.bf16.msra.mxu0 0
    %887 = vmatpush.bf16.msra.mxu0 0
    %888 = vmatpush.bf16.msra.mxu0 0
    %889 = vmatpush.bf16.msra.mxu0 0
    %890 = vmatpush.bf16.msra.mxu0 0
    %891 = vmatpush.bf16.msra.mxu0 %v879
    %892 = vmatpush.bf16.msra.mxu0 %v878
    %893 = vmatmul.bf16.gmra.mxu0 %v883
    %v894 = vpop.f32.mrf.mxu0
    %v895 = vadd.f32 %v868, %v894
    %v896 = vpop.f32.mrf.mxu0
    %v897 = vadd.f32 %v868, %v896
    %898 = vdwg.mxu0
    %v899 = vmul.f32 %v895, -1.702
    %v900 = vmul.f32 %v897, -1.702
    %v901 = vpack.c.bf16 %v899, %v899
    %v902 = vpack.c.bf16 %v900, %v900
    %v903 = vunpack.c.l.bf16 %v901
    %v904 = vunpack.c.l.bf16 %v902
    %v905 = vmul.f32 %v903, 1.442695
    %v906 = vpow.pop %v905
    %v907 = vmul.f32 %v904, 1.442695
    %v908 = vpow.pop %v907
    %v909 = vpack.c.bf16 %v906, %v906
    %v910 = vpack.c.bf16 %v908, %v908
    %v911 = vunpack.c.l.bf16 %v909
    %v912 = vunpack.c.l.bf16 %v910
    %v913 = vadd.f32 %v911, 1.0
    %v914 = vadd.f32 %v912, 1.0
    %v915 = vpack.c.bf16 %v913, %v913
    %v916 = vpack.c.bf16 %v914, %v914
    %v917 = vunpack.c.h.bf16 1065369472
    %v918 = vunpack.c.l.bf16 1065369472
    %v919 = vunpack.c.h.bf16 %v915
    %v920 = vunpack.c.l.bf16 %v915
    %v921 = vrcp.pop %v919
    %v922 = vmul.f32 %v917, %v921
    %v923 = vrcp.pop %v920
    %v924 = vmul.f32 %v918, %v923
    %v925 = vpack.c.bf16 %v922, %v924
    %v926 = vunpack.c.h.bf16 %v916
    %v927 = vunpack.c.l.bf16 %v916
    %v928 = vrcp.pop %v926
    %v929 = vmul.f32 %v917, %v928
    %v930 = vrcp.pop %v927
    %v931 = vmul.f32 %v918, %v930
    %v932 = vpack.c.bf16 %v929, %v931
    %v933 = vunpack.c.l.bf16 %v925
    %v934 = vunpack.c.l.bf16 %v932
    %v935 = vmul.f32 %v895, %v933
    %v936 = vmul.f32 %v897, %v934
    %v937 = vpack.c.bf16 %v936, %v935
    %v938 = vld [vmem:[%s11] sm:$0xf]
    %v939 = vld [vmem:[%s11 + $0x4] sm:$0xf]
    %v940 = vld [vmem:[%s11 + $0x8] sm:$0xf]
    %v941 = vld [vmem:[%s11 + $0xc] sm:$0xf]
    %v942 = vld [vmem:[%s11 + $0x10] sm:$0xf]
    %v943 = vld [vmem:[%s11 + $0x14] sm:$0xf]
    %v944 = vld [vmem:[%s11 + $0x18] sm:$0xf]
    %v945 = vld [vmem:[%s11 + $0x1c] sm:$0xf]
    %v946 = vld [vmem:[%s11 + $0x20] sm:$0xf]
    %v947 = vld [vmem:[%s11 + $0x24] sm:$0xf]
    %v948 = vld [vmem:[%s11 + $0x28] sm:$0xf]
    %v949 = vld [vmem:[%s11 + $0x2c] sm:$0xf]
    %v950 = vld [vmem:[%s11 + $0x30] sm:$0xf]
    %v951 = vld [vmem:[%s11 + $0x34] sm:$0xf]
    %v952 = vld [vmem:[%s11 + $0x38] sm:$0xf]
    %v953 = vld [vmem:[%s11 + $0x3c] sm:$0xf]
    %v970 = vunpack.c.l.b16 %v938
    %v971 = vunpack.c.l.b16 %v939
    %v972 = vunpack.c.l.b16 %v940
    %v973 = vunpack.c.l.b16 %v941
    %v974 = vunpack.c.l.b16 %v942
    %v975 = vunpack.c.l.b16 %v943
    %v976 = vunpack.c.l.b16 %v944
    %v977 = vunpack.c.l.b16 %v945
    %v978 = vunpack.c.l.b16 %v946
    %v979 = vunpack.c.l.b16 %v947
    %v980 = vunpack.c.l.b16 %v948
    %v981 = vunpack.c.l.b16 %v949
    %v982 = vunpack.c.l.b16 %v950
    %v983 = vunpack.c.l.b16 %v951
    %v984 = vunpack.c.l.b16 %v952
    %v985 = vunpack.c.l.b16 %v953
    %v986 = vpack.c.b16 %v971, %v970
    %v987 = vpack.c.b16 %v973, %v972
    %v988 = vpack.c.b16 %v975, %v974
    %v989 = vpack.c.b16 %v977, %v976
    %v990 = vpack.c.b16 %v979, %v978
    %v991 = vpack.c.b16 %v981, %v980
    %v992 = vpack.c.b16 %v983, %v982
    %v993 = vpack.c.b16 %v985, %v984
    %1002 = vmatpush.bf16.msra.mxu0 %v993
    %1003 = vmatpush.bf16.msra.mxu0 %v992
    %1004 = vmatpush.bf16.msra.mxu0 %v991
    %1005 = vmatpush.bf16.msra.mxu0 %v990
    %1006 = vmatpush.bf16.msra.mxu0 %v989
    %1007 = vmatpush.bf16.msra.mxu0 %v988
    %1008 = vmatpush.bf16.msra.mxu0 %v987
    %1009 = vmatpush.bf16.msra.mxu0 %v986
    %1010 = vmatmul.bf16.gmra.mxu0 %v937
    %v1011 = vpop.f32.mrf.mxu0
    %v1012 = vadd.f32 0.0, %v1011
    %v1013 = vpop.f32.mrf.mxu0
    %v1014 = vadd.f32 0.0, %v1013
    %1015 = vdwg.mxu0
    %v1016 = vadd.f32 %v860, %v1012
    %v1017 = vadd.f32 %v861, %v1014
    %v1018 = vperm.slane %v1016, 0
    %v1019 = vperm.slane %v1017, 0
    %v1020 = vmul.f32 %v1016, %v1018
    %v1021 = vmul.f32 %v1017, %v1019
    %v1022 = vsel %vm107, %v1020, 0.0
    %1023 = vadd.xlane.f32.xlu0 %v1022
    %v1024 = vpop.xlane.xlu0 %1023
    %v1025 = vsel %vm107, %v1021, 0.0
    %1026 = vadd.xlane.f32.xlu0 %v1025
    %v1027 = vpop.xlane.xlu0 %1026
    %v1028 = vmul.f32 %v1024, 0.17677669
    %v1029 = vmul.f32 %v1027, 0.17677669
    %v1030 = vlaneseq
    %v1031 = vshrl.u32 %v1030, 7
    %v1032 = vlaneseq
    %v1033 = vand.u32 %v1032, 127
    %v1036 = vperm.slane %v1028, 0
    %v1037 = vperm.slane %v1028, 1
    %v1038 = vperm.slane %v1028, 2
    %v1039 = vperm.slane %v1028, 3
    %v1040 = vperm.slane %v1028, 4
    %v1041 = vperm.slane %v1028, 5
    %v1042 = vperm.slane %v1028, 6
    %v1043 = vperm.slane %v1028, 7
    %v1044 = vperm.slane %v1029, 0
    %v1045 = vperm.slane %v1029, 1
    %v1046 = vperm.slane %v1029, 2
    %v1047 = vperm.slane %v1029, 3
    %v1048 = vperm.slane %v1029, 4
    %v1049 = vperm.slane %v1029, 5
    %v1050 = vperm.slane %v1029, 6
    %v1051 = vperm.slane %v1029, 7
    %vm1068 = vcmp.gt.f32.partialorder %v1028, %v1036
    %vm1069 = vcmp.gt.f32.partialorder %v1028, %v1037
    %vm1070 = vcmp.gt.f32.partialorder %v1028, %v1038
    %vm1071 = vcmp.gt.f32.partialorder %v1028, %v1039
    %vm1072 = vcmp.gt.f32.partialorder %v1028, %v1040
    %vm1073 = vcmp.gt.f32.partialorder %v1028, %v1041
    %vm1074 = vcmp.gt.f32.partialorder %v1028, %v1042
    %vm1075 = vcmp.gt.f32.partialorder %v1028, %v1043
    %vm1076 = vcmp.gt.f32.partialorder %v1029, %v1044
    %vm1077 = vcmp.gt.f32.partialorder %v1029, %v1045
    %vm1078 = vcmp.gt.f32.partialorder %v1029, %v1046
    %vm1079 = vcmp.gt.f32.partialorder %v1029, %v1047
    %vm1080 = vcmp.gt.f32.partialorder %v1029, %v1048
    %vm1081 = vcmp.gt.f32.partialorder %v1029, %v1049
    %vm1082 = vcmp.gt.f32.partialorder %v1029, %v1050
    %vm1083 = vcmp.gt.f32.partialorder %v1029, %v1051
    %vm1084 = vcmp.eq.f32.partialorder %v1028, %v1036
    %vm1085 = vcmp.eq.f32.partialorder %v1028, %v1037
    %vm1086 = vcmp.eq.f32.partialorder %v1028, %v1038
    %vm1087 = vcmp.eq.f32.partialorder %v1028, %v1039
    %vm1088 = vcmp.eq.f32.partialorder %v1028, %v1040
    %vm1089 = vcmp.eq.f32.partialorder %v1028, %v1041
    %vm1090 = vcmp.eq.f32.partialorder %v1028, %v1042
    %vm1091 = vcmp.eq.f32.partialorder %v1028, %v1043
    %vm1092 = vcmp.eq.f32.partialorder %v1029, %v1044
    %vm1093 = vcmp.eq.f32.partialorder %v1029, %v1045
    %vm1094 = vcmp.eq.f32.partialorder %v1029, %v1046
    %vm1095 = vcmp.eq.f32.partialorder %v1029, %v1047
    %vm1096 = vcmp.eq.f32.partialorder %v1029, %v1048
    %vm1097 = vcmp.eq.f32.partialorder %v1029, %v1049
    %vm1098 = vcmp.eq.f32.partialorder %v1029, %v1050
    %vm1099 = vcmp.eq.f32.partialorder %v1029, %v1051
    %vm1100 = vcmp.lt.s32.totalorder %v1033, %v1031
    %v1101 = vsel %vm1100, 1, 0
    %vm1102 = vcmp.eq.s32.totalorder %v1101, 1
    %v1103 = vsel %vm1102, 1, 0
    %v1104 = vperm.slane %v1103, 0
    %v1105 = vlaneseq
    %v1106 = vshrl.u32 %v1105, 7
    %1108 = vset.pattern.permute.xlu0 %v1106
    %1109 = vperm.xlu0 %1108, %v1104
    %v1110 = vpop.permute.xlu0 %1109
    %v1111 = vperm.slane %v1103, 1
    %v1112 = vlaneseq
    %v1113 = vshrl.u32 %v1112, 7
    %1115 = vset.pattern.permute.xlu0 %v1113
    %1116 = vperm.xlu0 %1115, %v1111
    %v1117 = vpop.permute.xlu0 %1116
    %v1118 = vperm.slane %v1103, 2
    %v1119 = vlaneseq
    %v1120 = vshrl.u32 %v1119, 7
    %1122 = vset.pattern.permute.xlu0 %v1120
    %1123 = vperm.xlu0 %1122, %v1118
    %v1124 = vpop.permute.xlu0 %1123
    %v1125 = vperm.slane %v1103, 3
    %v1126 = vlaneseq
    %v1127 = vshrl.u32 %v1126, 7
    %1129 = vset.pattern.permute.xlu0 %v1127
    %1130 = vperm.xlu0 %1129, %v1125
    %v1131 = vpop.permute.xlu0 %1130
    %v1132 = vperm.slane %v1103, 4
    %v1133 = vlaneseq
    %v1134 = vshrl.u32 %v1133, 7
    %1136 = vset.pattern.permute.xlu0 %v1134
    %1137 = vperm.xlu0 %1136, %v1132
    %v1138 = vpop.permute.xlu0 %1137
    %v1139 = vperm.slane %v1103, 5
    %v1140 = vlaneseq
    %v1141 = vshrl.u32 %v1140, 7
    %1143 = vset.pattern.permute.xlu0 %v1141
    %1144 = vperm.xlu0 %1143, %v1139
    %v1145 = vpop.permute.xlu0 %1144
    %v1146 = vperm.slane %v1103, 6
    %v1147 = vlaneseq
    %v1148 = vshrl.u32 %v1147, 7
    %1150 = vset.pattern.permute.xlu0 %v1148
    %1151 = vperm.xlu0 %1150, %v1146
    %v1152 = vpop.permute.xlu0 %1151
    %v1153 = vperm.slane %v1103, 7
    %v1154 = vlaneseq
    %v1155 = vshrl.u32 %v1154, 7
    %1157 = vset.pattern.permute.xlu0 %v1155
    %1158 = vperm.xlu0 %1157, %v1153
    %v1159 = vpop.permute.xlu0 %1158
    %vm1160 = vcmp.ne.s32.totalorder %v1110, 0
    %vm1161 = vcmp.ne.s32.totalorder %v1117, 0
    %vm1162 = vcmp.ne.s32.totalorder %v1124, 0
    %vm1163 = vcmp.ne.s32.totalorder %v1131, 0
    %vm1164 = vcmp.ne.s32.totalorder %v1138, 0
    %vm1165 = vcmp.ne.s32.totalorder %v1145, 0
    %vm1166 = vcmp.ne.s32.totalorder %v1152, 0
    %vm1167 = vcmp.ne.s32.totalorder %v1159, 0
    %vm1168 = vmand %vm1084, %vm1160
    %vm1169 = vmand %vm1085, %vm1161
    %vm1170 = vmand %vm1086, %vm1162
    %vm1171 = vmand %vm1087, %vm1163
    %vm1172 = vmand %vm1088, %vm1164
    %vm1173 = vmand %vm1089, %vm1165
    %vm1174 = vmand %vm1090, %vm1166
    %vm1175 = vmand %vm1091, %vm1167
    %vm1176 = vmand %vm1092, %vm1160
    %vm1177 = vmand %vm1093, %vm1161
    %vm1178 = vmand %vm1094, %vm1162
    %vm1179 = vmand %vm1095, %vm1163
    %vm1180 = vmand %vm1096, %vm1164
    %vm1181 = vmand %vm1097, %vm1165
    %vm1182 = vmand %vm1098, %vm1166
    %vm1183 = vmand %vm1099, %vm1167
    %vm1184 = vmor %vm1068, %vm1168
    %vm1185 = vmor %vm1069, %vm1169
    %vm1186 = vmor %vm1070, %vm1170
    %vm1187 = vmor %vm1071, %vm1171
    %vm1188 = vmor %vm1072, %vm1172
    %vm1189 = vmor %vm1073, %vm1173
    %vm1190 = vmor %vm1074, %vm1174
    %vm1191 = vmor %vm1075, %vm1175
    %vm1192 = vmor %vm1076, %vm1176
    %vm1193 = vmor %vm1077, %vm1177
    %vm1194 = vmor %vm1078, %vm1178
    %vm1195 = vmor %vm1079, %vm1179
    %vm1196 = vmor %vm1080, %vm1180
    %vm1197 = vmor %vm1081, %vm1181
    %vm1198 = vmor %vm1082, %vm1182
    %vm1199 = vmor %vm1083, %vm1183
    %v1200 = vsel %vm1184, 1, 0
    %v1201 = vsel %vm1185, 1, 0
    %v1202 = vsel %vm1186, 1, 0
    %v1203 = vsel %vm1187, 1, 0
    %v1204 = vsel %vm1188, 1, 0
    %v1205 = vsel %vm1189, 1, 0
    %v1206 = vsel %vm1190, 1, 0
    %v1207 = vsel %vm1191, 1, 0
    %v1208 = vsel %vm1192, 1, 0
    %v1209 = vsel %vm1193, 1, 0
    %v1210 = vsel %vm1194, 1, 0
    %v1211 = vsel %vm1195, 1, 0
    %v1212 = vsel %vm1196, 1, 0
    %v1213 = vsel %vm1197, 1, 0
    %v1214 = vsel %vm1198, 1, 0
    %v1215 = vsel %vm1199, 1, 0
    %v1216 = vcvt.s32.f32 %v1200
    %v1217 = vcvt.s32.f32 %v1201
    %v1218 = vcvt.s32.f32 %v1202
    %v1219 = vcvt.s32.f32 %v1203
    %v1220 = vcvt.s32.f32 %v1204
    %v1221 = vcvt.s32.f32 %v1205
    %v1222 = vcvt.s32.f32 %v1206
    %v1223 = vcvt.s32.f32 %v1207
    %v1224 = vcvt.s32.f32 %v1208
    %v1225 = vcvt.s32.f32 %v1209
    %v1226 = vcvt.s32.f32 %v1210
    %v1227 = vcvt.s32.f32 %v1211
    %v1228 = vcvt.s32.f32 %v1212
    %v1229 = vcvt.s32.f32 %v1213
    %v1230 = vcvt.s32.f32 %v1214
    %v1231 = vcvt.s32.f32 %v1215
    %1248 = vset.pattern.permute.xlu0 0
    %1249 = vperm.xlu0 %1248, %v1216
    %v1250 = vpop.permute.xlu0 %1249
    %1251 = vset.pattern.permute.xlu0 0
    %1252 = vperm.xlu0 %1251, %v1217
    %v1253 = vpop.permute.xlu0 %1252
    %1254 = vset.pattern.permute.xlu0 0
    %1255 = vperm.xlu0 %1254, %v1218
    %v1256 = vpop.permute.xlu0 %1255
    %1257 = vset.pattern.permute.xlu0 0
    %1258 = vperm.xlu0 %1257, %v1219
    %v1259 = vpop.permute.xlu0 %1258
    %1260 = vset.pattern.permute.xlu0 0
    %1261 = vperm.xlu0 %1260, %v1220
    %v1262 = vpop.permute.xlu0 %1261
    %1263 = vset.pattern.permute.xlu0 0
    %1264 = vperm.xlu0 %1263, %v1221
    %v1265 = vpop.permute.xlu0 %1264
    %1266 = vset.pattern.permute.xlu0 0
    %1267 = vperm.xlu0 %1266, %v1222
    %v1268 = vpop.permute.xlu0 %1267
    %1269 = vset.pattern.permute.xlu0 0
    %1270 = vperm.xlu0 %1269, %v1223
    %v1271 = vpop.permute.xlu0 %1270
    %1272 = vset.pattern.permute.xlu0 0
    %1273 = vperm.xlu0 %1272, %v1224
    %v1274 = vpop.permute.xlu0 %1273
    %1275 = vset.pattern.permute.xlu0 0
    %1276 = vperm.xlu0 %1275, %v1225
    %v1277 = vpop.permute.xlu0 %1276
    %1278 = vset.pattern.permute.xlu0 0
    %1279 = vperm.xlu0 %1278, %v1226
    %v1280 = vpop.permute.xlu0 %1279
    %1281 = vset.pattern.permute.xlu0 0
    %1282 = vperm.xlu0 %1281, %v1227
    %v1283 = vpop.permute.xlu0 %1282
    %1284 = vset.pattern.permute.xlu0 0
    %1285 = vperm.xlu0 %1284, %v1228
    %v1286 = vpop.permute.xlu0 %1285
    %1287 = vset.pattern.permute.xlu0 0
    %1288 = vperm.xlu0 %1287, %v1229
    %v1289 = vpop.permute.xlu0 %1288
    %1290 = vset.pattern.permute.xlu0 0
    %1291 = vperm.xlu0 %1290, %v1230
    %v1292 = vpop.permute.xlu0 %1291
    %1293 = vset.pattern.permute.xlu0 0
    %1294 = vperm.xlu0 %1293, %v1231
    %v1295 = vpop.permute.xlu0 %1294
    %v1296 = vperm.slane %v1250, %v1033
    %v1297 = vperm.slane %v1253, %v1033
    %v1298 = vperm.slane %v1256, %v1033
    %v1299 = vperm.slane %v1259, %v1033
    %v1300 = vperm.slane %v1262, %v1033
    %v1301 = vperm.slane %v1265, %v1033
    %v1302 = vperm.slane %v1268, %v1033
    %v1303 = vperm.slane %v1271, %v1033
    %v1304 = vperm.slane %v1274, %v1033
    %v1305 = vperm.slane %v1277, %v1033
    %v1306 = vperm.slane %v1280, %v1033
    %v1307 = vperm.slane %v1283, %v1033
    %v1308 = vperm.slane %v1286, %v1033
    %v1309 = vperm.slane %v1289, %v1033
    %v1310 = vperm.slane %v1292, %v1033
    %v1311 = vperm.slane %v1295, %v1033
    %vm1312 = vcmask 1041409
    %v1313 = vsel %vm1312, %v1297, %v1296
    %vm1314 = vcmask 1042434
    %v1315 = vsel %vm1314, %v1298, %v1313
    %vm1316 = vcmask 1043459
    %v1317 = vsel %vm1316, %v1299, %v1315
    %vm1318 = vcmask 1044484
    %v1319 = vsel %vm1318, %v1300, %v1317
    %vm1320 = vcmask 1045509
    %v1321 = vsel %vm1320, %v1301, %v1319
    %vm1322 = vcmask 1046534
    %v1323 = vsel %vm1322, %v1302, %v1321
    %vm1324 = vcmask 1047559
    %v1325 = vsel %vm1324, %v1303, %v1323
    %v1326 = vsel %vm1312, %v1305, %v1304
    %v1327 = vsel %vm1314, %v1306, %v1326
    %v1328 = vsel %vm1316, %v1307, %v1327
    %v1329 = vsel %vm1318, %v1308, %v1328
    %v1330 = vsel %vm1320, %v1309, %v1329
    %v1331 = vsel %vm1322, %v1310, %v1330
    %v1332 = vsel %vm1324, %v1311, %v1331
    %v1335 = vsel %vm259, %v1325, 0.0
    %1336 = vadd.xlane.f32.xlu0 %v1335
    %v1337 = vpop.xlane.xlu0 %1336
    %v1338 = vsel %vm259, %v1332, 0.0
    %1339 = vadd.xlane.f32.xlu0 %v1338
    %v1340 = vpop.xlane.xlu0 %1339
    %vm1341 = vcmp.lt.f32.partialorder %v1337, 5.0
    %vm1342 = vcmp.lt.f32.partialorder %v1340, 5.0
    %v1343 = vsel %vm1341, 1, 0
    %v1344 = vsel %vm1342, 1, 0
    %v1345 = vcvt.s32.f32 %v1343
    %v1346 = vcvt.s32.f32 %v1344
    %v1347 = vmul.f32 %v1016, %v1345
    %v1348 = vmul.f32 %v1017, %v1346
    %v1349 = vsel %vm107, %v1347, 0.0
    %v1350 = vrot.slane %v1349, 4
    %v1351 = vadd.f32 %v1349, %v1350
    %v1352 = vrot.slane %v1351, 2
    %v1353 = vadd.f32 %v1351, %v1352
    %v1354 = vrot.slane %v1353, 1
    %v1355 = vadd.f32 %v1353, %v1354
    %v1356 = vsel %vm107, %v1348, 0.0
    %v1357 = vrot.slane %v1356, 4
    %v1358 = vadd.f32 %v1356, %v1357
    %v1359 = vrot.slane %v1358, 2
    %v1360 = vadd.f32 %v1358, %v1359
    %v1361 = vrot.slane %v1360, 1
    %v1362 = vadd.f32 %v1360, %v1361
    %v1363 = vmul.f32 %v1355, 0.2
    %v1364 = vmul.f32 %v1362, 0.2
    %v1365 = vld [vmem:[%s13] sm:$0x1]
    %v1366 = vld [vmem:[%s14] sm:$0x1]
    %v1369 = vsel %vm1312, %v1364, %v1363
    %vm1371 = vcmask 254976
    %v1372 = vsel %vm1371, %v1369, 0.0
    %1373 = vadd.xlane.f32.xlu0 %v1372
    %v1374 = vpop.xlane.xlu0 %1373
    %v1375 = vmul.f32 %v1374, %v120
    %v1377 = vrot.slane %v1375, 1
    %v1380 = vsub.f32 %v1363, %v1375
    %v1381 = vsub.f32 %v1364, %v1377
    %v1382 = vmul.f32 %v1380, %v1380
    %v1383 = vmul.f32 %v1381, %v1381
    %v1386 = vrot.slane %v1383, 7
    %v1387 = vsel %vm1312, %v1386, %v1382
    %v1389 = vsel %vm1371, %v1387, 0.0
    %1390 = vadd.xlane.f32.xlu0 %v1389
    %v1391 = vpop.xlane.xlu0 %1390
    %v1392 = vmul.f32 %v1391, %v120
    %v1393 = vadd.f32 %v1392, 1e-05
    %v1394 = vrsqrt.pop %v1393
    %v1395 = vmul.f32 %v1394, %v1393
    %v1396 = vmul.f32 %v1395, %v1394
    %v1397 = vmul.f32 0.5, %v1396
    %v1398 = vsub.f32 1.5, %v1397
    %v1399 = vmul.f32 %v1394, %v1398
    %vm1400 = vweird.f32 %v1393
    %vm1401 = vweird.f32 %v1394
    %vm1402 = vmor %vm1400, %vm1401
    %v1403 = vsel %vm1402, %v1394, %v1399
    %v1405 = vrot.slane %v1403, 1
    %v1408 = vmul.f32 %v1380, %v1403
    %v1409 = vmul.f32 %v1381, %v1405
    %v1411 = vperm.slane %v1365, 0
    %v1413 = vmul.f32 %v1408, %v1411
    %v1414 = vmul.f32 %v1409, %v1411
    %v1416 = vperm.slane %v1366, 0
    %v1418 = vadd.f32 %v1413, %v1416
    %v1419 = vadd.f32 %v1414, %v1416
    %v1420 = vpack.c.bf16 %v1418, %v1418
    %v1421 = vpack.c.bf16 %v1419, %v1419
    %v1422 = vld [vmem:[%s15] sm:$0xff]
    %v1423 = vld [vmem:[%s15 + $0x8] sm:$0xff]
    %v1424 = vld [vmem:[%s15 + $0x10] sm:$0xff]
    %v1425 = vld [vmem:[%s15 + $0x18] sm:$0xff]
    %v1426 = vld [vmem:[%s15 + $0x20] sm:$0xff]
    %v1427 = vld [vmem:[%s15 + $0x28] sm:$0xff]
    %v1428 = vld [vmem:[%s15 + $0x30] sm:$0xff]
    %v1429 = vld [vmem:[%s15 + $0x38] sm:$0xff]
    %v1432 = vunpack.c.l.b16 %v1420
    %v1433 = vunpack.c.l.b16 %v1421
    %v1434 = vrot.slane %v1433, 7
    %v1435 = vsel %vm1312, %v1434, %v1432
    %v1436 = vpack.c.b16 %v1435, %v1435
    %v1445 = vunpack.c.l.b16 %v1422
    %v1446 = vunpack.c.h.b16 %v1422
    %v1447 = vunpack.c.l.b16 %v1423
    %v1448 = vunpack.c.h.b16 %v1423
    %v1449 = vunpack.c.l.b16 %v1424
    %v1450 = vunpack.c.h.b16 %v1424
    %v1451 = vunpack.c.l.b16 %v1425
    %v1452 = vunpack.c.h.b16 %v1425
    %v1453 = vunpack.c.l.b16 %v1426
    %v1454 = vunpack.c.h.b16 %v1426
    %v1455 = vunpack.c.l.b16 %v1427
    %v1456 = vunpack.c.h.b16 %v1427
    %v1457 = vunpack.c.l.b16 %v1428
    %v1458 = vunpack.c.h.b16 %v1428
    %v1459 = vunpack.c.l.b16 %v1429
    %v1460 = vunpack.c.h.b16 %v1429
    %v1461 = vpack.c.b16 %v1449, %v1445
    %v1462 = vpack.c.b16 %v1450, %v1446
    %v1463 = vpack.c.b16 %v1451, %v1447
    %v1464 = vpack.c.b16 %v1452, %v1448
    %v1465 = vpack.c.b16 %v1457, %v1453
    %v1466 = vpack.c.b16 %v1458, %v1454
    %v1467 = vpack.c.b16 %v1459, %v1455
    %v1468 = vpack.c.b16 %v1460, %v1456
    %v1478 = vsel %vm107, %v1436, 0
    %1480 = vmatpush.bf16.msra.mxu0 0
    %1481 = vmatpush.bf16.msra.mxu0 0
    %1482 = vmatpush.bf16.msra.mxu0 0
    %1483 = vmatpush.bf16.msra.mxu0 0
    %1484 = vmatpush.bf16.msra.mxu0 0
    %1485 = vmatpush.bf16.msra.mxu0 0
    %1486 = vmatpush.bf16.msra.mxu0 %v1465
    %1487 = vmatpush.bf16.msra.mxu0 %v1461
    %1488 = vmatmul.bf16.gmra.mxu0 %v1478
    %v1489 = vpop.f32.mrf.mxu0
    %v1490 = vadd.f32 0.0, %v1489
    %v1491 = vpop.f32.mrf.mxu0
    %1492 = vdwg.mxu0
    %1493 = vmatpush.bf16.msra.mxu0 0
    %1494 = vmatpush.bf16.msra.mxu0 0
    %1495 = vmatpush.bf16.msra.mxu0 0
    %1496 = vmatpush.bf16.msra.mxu0 0
    %1497 = vmatpush.bf16.msra.mxu0 0
    %1498 = vmatpush.bf16.msra.mxu0 0
    %1499 = vmatpush.bf16.msra.mxu0 %v1466
    %1500 = vmatpush.bf16.msra.mxu0 %v1462
    %1501 = vmatmul.bf16.gmra.mxu0 %v1478
    %v1502 = vpop.f32.mrf.mxu0
    %v1503 = vadd.f32 0.0, %v1502
    %v1504 = vpop.f32.mrf.mxu0
    %1505 = vdwg.mxu0
    %1506 = vmatpush.bf16.msra.mxu0 0
    %1507 = vmatpush.bf16.msra.mxu0 0
    %1508 = vmatpush.bf16.msra.mxu0 0
    %1509 = vmatpush.bf16.msra.mxu0 0
    %1510 = vmatpush.bf16.msra.mxu0 0
    %1511 = vmatpush.bf16.msra.mxu0 0
    %1512 = vmatpush.bf16.msra.mxu0 %v1467
    %1513 = vmatpush.bf16.msra.mxu0 %v1463
    %1514 = vmatmul.bf16.gmra.mxu0 %v1478
    %v1515 = vpop.f32.mrf.mxu0
    %v1516 = vadd.f32 0.0, %v1515
    %v1517 = vpop.f32.mrf.mxu0
    %1518 = vdwg.mxu0
    %1519 = vmatpush.bf16.msra.mxu0 0
    %1520 = vmatpush.bf16.msra.mxu0 0
    %1521 = vmatpush.bf16.msra.mxu0 0
    %1522 = vmatpush.bf16.msra.mxu0 0
    %1523 = vmatpush.bf16.msra.mxu0 0
    %1524 = vmatpush.bf16.msra.mxu0 0
    %1525 = vmatpush.bf16.msra.mxu0 %v1468
    %1526 = vmatpush.bf16.msra.mxu0 %v1464
    %1527 = vmatmul.bf16.gmra.mxu0 %v1478
    %v1528 = vpop.f32.mrf.mxu0
    %v1529 = vadd.f32 0.0, %v1528
    %v1530 = vpop.f32.mrf.mxu0
    %1531 = vdwg.mxu0
    %v1536 = vrot.slane %v1503, 6
    %v1537 = vrot.slane %v1516, 4
    %v1538 = vrot.slane %v1529, 2
    %vm1539 = vcmask 1041408
    %v1540 = vsel %vm1539, %v1490, %v1536
    %vm1541 = vcmask 1045508
    %v1542 = vsel %vm1541, %v1537, %v1538
    %v1543 = vsel %vm325, %v1540, %v1542
    %1545 = vst [vmem:[#allocation9] sm:$0xff] %v1543
    // Predicated region
    $region78: #{tpu_custom_call.1} parent=1 // pred_check
      _
    $region79: #{tpu_custom_call.1} parent=1 // pred_check_branch
      %1547 = sbr.rel (0) target = $region81
    $region80: #{tpu_custom_call.1} parent=1 // pred_region
      %1549 = vsyncadd [#allocation5], 0
      %s1551 = sshll.u32 [#allocation9], 4
      %s1552 = int_to_ptr.vmem [resolvable:$true] %s1551
      %s1553 = sshll.u32 %s16, 4
      %s1554 = int_to_ptr.hbm [resolvable:$true] %s1553
      %1556 = dma.vmem_to_hbm [thread:$0]  %s1552, 128, %s1554, [#allocation5]
    $region81: #{tpu_custom_call.1} parent=1 // pred_fallthru
      _
    // Predicated region
    $region82: #{tpu_custom_call.1} parent=1 // pred_check
      _
    $region83: #{tpu_custom_call.1} parent=1 // pred_check_branch
      %1558 = sbr.rel (0) target = $region85
    $region84: #{tpu_custom_call.1} parent=1 // pred_region
      %1560 = dma.done [#allocation5], 128
    $region85: #{tpu_custom_call.1} parent=1 // pred_fallthru
      _
    %1561 = vsyncpa [#allocation4], 1
    %1562 = vsyncpa [#allocation7], 1
    %1563 = vsyncpa [#allocation5], 1

// kernel: tpu_custom_call.1
$region0: #{tpu_custom_call.1}
  #allocation0 [shape = 'u32[]', space=smem, size = 0x4, offset = 0x4, fixed_abs, tag = 'smem constant byte address 0x4 - core index']
  #allocation1 [shape = 'u32[72,128]{1,0:T(1,128)}', space=vmem, size = 0x9000, scoped, tag = 'internal scratch']
  #allocation2 [shape = 'bf16[16,32]{1,0:T(8,128)(2,1)}', space=vmem, size = 0x1000, scoped, tag = 'scratch operand']
  %s0 = inlined_call_operand.vmem [shape: f32[2,8,32], index: 0, kind: input, shape index: {}]
  %s1 = inlined_call_operand.vmem [shape: f32[1,32], index: 1, kind: input, shape index: {}]
  %s2 = inlined_call_operand.vmem [shape: f32[1,32], index: 2, kind: input, shape index: {}]
  %s3 = inlined_call_operand.hbm [shape: bf16[32,96], index: 3, kind: input, shape index: {}]
  %s4 = inlined_call_operand.vmem [shape: f32[1,96], index: 4, kind: input, shape index: {}]
  %s5 = inlined_call_operand.hbm [shape: bf16[32,32], index: 5, kind: input, shape index: {}]
  %s6 = inlined_call_operand.vmem [shape: f32[1,32], index: 6, kind: input, shape index: {}]
  %s7 = inlined_call_operand.vmem [shape: f32[1,32], index: 7, kind: input, shape index: {}]
  %s8 = inlined_call_operand.vmem [shape: f32[1,32], index: 8, kind: input, shape index: {}]
  %s9 = inlined_call_operand.hbm [shape: bf16[32,128], index: 9, kind: input, shape index: {}]
  %s10 = inlined_call_operand.vmem [shape: f32[1,128], index: 10, kind: input, shape index: {}]
  %s11 = inlined_call_operand.vmem [shape: bf16[128,32], index: 11, kind: input, shape index: {}]
  %s12 = inlined_call_operand.vmem [shape: f32[1,32], index: 12, kind: input, shape index: {}]
  %s13 = inlined_call_operand.vmem [shape: f32[1,32], index: 13, kind: input, shape index: {}]
  %s14 = inlined_call_operand.vmem [shape: f32[1,32], index: 14, kind: input, shape index: {}]
  %s15 = inlined_call_operand.vmem [shape: bf16[32,512], index: 15, kind: input, shape index: {}]
  %s16 = inlined_call_operand.hbm [shape: f32[2,512], index: 16, kind: output, shape index: {}]
  %s17 = sld [smem:[#allocation0]]
  $region86: #{tpu_custom_call.1} parent=0
    _
  %s19 = ssub.s32 1, %s17
  %s20 = scalar_select 0, %s19, %s17
  $region1: #{tpu_custom_call.1} parent=0
    #allocation3 [shape = 'u8[8192]{0}', space=vmem, size = 0x2000, scoped, tag = 'input window, operand 3, single buffered']
    #allocation4 [shape = 's32[1]{0}', space=sflag, size = 0x4, scoped, tag = 'scoped memory for tpu_custom_call.1']
    #allocation5 [shape = 's32[1]{0}', space=sflag, size = 0x4, scoped, tag = 'scoped memory for tpu_custom_call.1']
    #allocation6 [shape = 'u8[8192]{0}', space=vmem, size = 0x2000, scoped, tag = 'input window, operand 5, single buffered']
    #allocation7 [shape = 's32[1]{0}', space=sflag, size = 0x4, scoped, tag = 'scoped memory for tpu_custom_call.1']
    #allocation8 [shape = 'u8[8192]{0}', space=vmem, size = 0x2000, scoped, tag = 'input window, operand 9, single buffered']
    #allocation9 [shape = 'u8[4096]{0}', space=vmem, size = 0x1000, scoped, tag = 'output window, operand 0, single buffered']
    %21 = vsyncpa [#allocation4], 0
    %22 = vsyncpa [#allocation7], 0
    %23 = vsyncpa [#allocation5], 0
    // Predicated region
    $region2: #{tpu_custom_call.1} parent=1 // pred_check
      _
    $region3: #{tpu_custom_call.1} parent=1 // pred_check_branch
      %25 = sbr.rel (0) target = $region5
    $region4: #{tpu_custom_call.1} parent=1 // pred_region
      _
    $region5: #{tpu_custom_call.1} parent=1 // pred_fallthru
      _
    // Predicated region
    $region6: #{tpu_custom_call.1} parent=1 // pred_check
      _
    $region7: #{tpu_custom_call.1} parent=1 // pred_check_branch
      %27 = sbr.rel (0) target = $region9
    $region8: #{tpu_custom_call.1} parent=1 // pred_region
      _
    $region9: #{tpu_custom_call.1} parent=1 // pred_fallthru
      _
    // Predicated region
    $region10: #{tpu_custom_call.1} parent=1 // pred_check
      _
    $region11: #{tpu_custom_call.1} parent=1 // pred_check_branch
      %29 = sbr.rel (0) target = $region13
    $region12: #{tpu_custom_call.1} parent=1 // pred_region
      _
    $region13: #{tpu_custom_call.1} parent=1 // pred_fallthru
      _
    // Predicated region
    $region14: #{tpu_custom_call.1} parent=1 // pred_check
      _
    $region15: #{tpu_custom_call.1} parent=1 // pred_check_branch
      %31 = sbr.rel (0) target = $region17
    $region16: #{tpu_custom_call.1} parent=1 // pred_region
      %33 = vsyncadd [#allocation4], 0
      %s34 = sshll.u32 %s3, 4
      %s35 = int_to_ptr.hbm [resolvable:$true] %s34
      %s36 = sshll.u32 [#allocation3], 4
      %s37 = int_to_ptr.vmem [resolvable:$true] %s36
      %42 = dma.hbm_to_vmem [thread:$0]  %s35, 256, %s37, [#allocation4], 64, 64, 4
    $region17: #{tpu_custom_call.1} parent=1 // pred_fallthru
      _
    // Predicated region
    $region18: #{tpu_custom_call.1} parent=1 // pred_check
      _
    $region19: #{tpu_custom_call.1} parent=1 // pred_check_branch
      %44 = sbr.rel (0) target = $region21
    $region20: #{tpu_custom_call.1} parent=1 // pred_region
      _
    $region21: #{tpu_custom_call.1} parent=1 // pred_fallthru
      _
    // Predicated region
    $region22: #{tpu_custom_call.1} parent=1 // pred_check
      _
    $region23: #{tpu_custom_call.1} parent=1 // pred_check_branch
      %46 = sbr.rel (0) target = $region25
    $region24: #{tpu_custom_call.1} parent=1 // pred_region
      %48 = vsyncadd [#allocation7], 0
      %s49 = sshll.u32 %s5, 4
      %s50 = int_to_ptr.hbm [resolvable:$true] %s49
      %s51 = sshll.u32 [#allocation6], 4
      %s52 = int_to_ptr.vmem [resolvable:$true] %s51
      %57 = dma.hbm_to_vmem [thread:$0]  %s50, 256, %s52, [#allocation7], 64, 64, 4
    $region25: #{tpu_custom_call.1} parent=1 // pred_fallthru
      _
    // Predicated region
    $region26: #{tpu_custom_call.1} parent=1 // pred_check
      _
    $region27: #{tpu_custom_call.1} parent=1 // pred_check_branch
      %59 = sbr.rel (0) target = $region29
    $region28: #{tpu_custom_call.1} parent=1 // pred_region
      _
    $region29: #{tpu_custom_call.1} parent=1 // pred_fallthru
      _
    // Predicated region
    $region30: #{tpu_custom_call.1} parent=1 // pred_check
      _
    $region31: #{tpu_custom_call.1} parent=1 // pred_check_branch
      %61 = sbr.rel (0) target = $region33
    $region32: #{tpu_custom_call.1} parent=1 // pred_region
      _
    $region33: #{tpu_custom_call.1} parent=1 // pred_fallthru
      _
    // Predicated region
    $region34: #{tpu_custom_call.1} parent=1 // pred_check
      _
    $region35: #{tpu_custom_call.1} parent=1 // pred_check_branch
      %63 = sbr.rel (0) target = $region37
    $region36: #{tpu_custom_call.1} parent=1 // pred_region
      _
    $region37: #{tpu_custom_call.1} parent=1 // pred_fallthru
      _
    // Predicated region
    $region38: #{tpu_custom_call.1} parent=1 // pred_check
      _
    $region39: #{tpu_custom_call.1} parent=1 // pred_check_branch
      %65 = sbr.rel (0) target = $region41
    $region40: #{tpu_custom_call.1} parent=1 // pred_region
      %67 = vsyncadd [#allocation7], 0
      %s68 = sshll.u32 %s9, 4
      %s69 = int_to_ptr.hbm [resolvable:$true] %s68
      %s70 = sshll.u32 [#allocation8], 4
      %s71 = int_to_ptr.vmem [resolvable:$true] %s70
      %76 = dma.hbm_to_vmem [thread:$0]  %s69, 256, %s71, [#allocation7], 64, 64, 4
    $region41: #{tpu_custom_call.1} parent=1 // pred_fallthru
      _
    // Predicated region
    $region42: #{tpu_custom_call.1} parent=1 // pred_check
      _
    $region43: #{tpu_custom_call.1} parent=1 // pred_check_branch
      %78 = sbr.rel (0) target = $region45
    $region44: #{tpu_custom_call.1} parent=1 // pred_region
      _
    $region45: #{tpu_custom_call.1} parent=1 // pred_fallthru
      _
    // Predicated region
    $region46: #{tpu_custom_call.1} parent=1 // pred_check
      _
    $region47: #{tpu_custom_call.1} parent=1 // pred_check_branch
      %80 = sbr.rel (0) target = $region49
    $region48: #{tpu_custom_call.1} parent=1 // pred_region
      _
    $region49: #{tpu_custom_call.1} parent=1 // pred_fallthru
      _
    // Predicated region
    $region50: #{tpu_custom_call.1} parent=1 // pred_check
      _
    $region51: #{tpu_custom_call.1} parent=1 // pred_check_branch
      %82 = sbr.rel (0) target = $region53
    $region52: #{tpu_custom_call.1} parent=1 // pred_region
      _
    $region53: #{tpu_custom_call.1} parent=1 // pred_fallthru
      _
    // Predicated region
    $region54: #{tpu_custom_call.1} parent=1 // pred_check
      _
    $region55: #{tpu_custom_call.1} parent=1 // pred_check_branch
      %84 = sbr.rel (0) target = $region57
    $region56: #{tpu_custom_call.1} parent=1 // pred_region
      _
    $region57: #{tpu_custom_call.1} parent=1 // pred_fallthru
      _
    // Predicated region
    $region58: #{tpu_custom_call.1} parent=1 // pred_check
      _
    $region59: #{tpu_custom_call.1} parent=1 // pred_check_branch
      %86 = sbr.rel (0) target = $region61
    $region60: #{tpu_custom_call.1} parent=1 // pred_region
      _
    $region61: #{tpu_custom_call.1} parent=1 // pred_fallthru
      _
    // Predicated region
    $region62: #{tpu_custom_call.1} parent=1 // pred_check
      _
    $region63: #{tpu_custom_call.1} parent=1 // pred_check_branch
      %88 = sbr.rel (0) target = $region65
    $region64: #{tpu_custom_call.1} parent=1 // pred_region
      _
    $region65: #{tpu_custom_call.1} parent=1 // pred_fallthru
      _
    // Predicated region
    $region66: #{tpu_custom_call.1} parent=1 // pred_check
      _
    $region67: #{tpu_custom_call.1} parent=1 // pred_check_branch
      %90 = sbr.rel (0) target = $region69
    $region68: #{tpu_custom_call.1} parent=1 // pred_region
      %92 = dma.done [#allocation4], 256
    $region69: #{tpu_custom_call.1} parent=1 // pred_fallthru
      _
    // Predicated region
    $region70: #{tpu_custom_call.1} parent=1 // pred_check
      _
    $region71: #{tpu_custom_call.1} parent=1 // pred_check_branch
      %94 = sbr.rel (0) target = $region73
    $region72: #{tpu_custom_call.1} parent=1 // pred_region
      %96 = dma.done [#allocation7], 256
    $region73: #{tpu_custom_call.1} parent=1 // pred_fallthru
      _
    // Predicated region
    $region74: #{tpu_custom_call.1} parent=1 // pred_check
      _
    $region75: #{tpu_custom_call.1} parent=1 // pred_check_branch
      %98 = sbr.rel (0) target = $region77
    $region76: #{tpu_custom_call.1} parent=1 // pred_region
      %100 = dma.done [#allocation7], 256
    $region77: #{tpu_custom_call.1} parent=1 // pred_fallthru
      _
    %v103 = vld [vmem:[%s0] sm:$0xff]
    %v104 = vld [vmem:[%s0 + $0x8] sm:$0xff]
    %v105 = vld [vmem:[%s1] sm:$0x1]
    %v106 = vld [vmem:[%s2] sm:$0x1]
    %vm107 = vcmask 261120
    %v108 = vsel %vm107, %v103, 0.0
    %109 = vadd.xlane.f32.xlu0 %v108
    %v110 = vpop.xlane.xlu0 %109
    %v111 = vsel %vm107, %v104, 0.0
    %112 = vadd.xlane.f32.xlu0 %v111
    %v113 = vpop.xlane.xlu0 %112
    %v114 = vrcp.pop 32.0
    %v115 = vmul.f32 32.0, %v114
    %v116 = vsub.f32 1.0, %v115
    %v117 = vmul.f32 %v114, %v116
    %v118 = vadd.f32 %v114, %v117
    %vm119 = vweird.f32 %v114
    %v120 = vsel %vm119, %v114, %v118
    %v121 = vmul.f32 %v110, %v120
    %v122 = vmul.f32 %v113, %v120
    %v123 = vsub.f32 %v103, %v121
    %v124 = vsub.f32 %v104, %v122
    %v125 = vmul.f32 %v123, %v123
    %v126 = vmul.f32 %v124, %v124
    %v127 = vsel %vm107, %v125, 0.0
    %128 = vadd.xlane.f32.xlu0 %v127
    %v129 = vpop.xlane.xlu0 %128
    %v130 = vsel %vm107, %v126, 0.0
    %131 = vadd.xlane.f32.xlu0 %v130
    %v132 = vpop.xlane.xlu0 %131
    %v133 = vmul.f32 %v129, %v120
    %v134 = vmul.f32 %v132, %v120
    %v135 = vadd.f32 %v133, 1e-05
    %v136 = vadd.f32 %v134, 1e-05
    %v137 = vrsqrt.pop %v135
    %v138 = vmul.f32 %v137, %v135
    %v139 = vmul.f32 %v138, %v137
    %v140 = vmul.f32 0.5, %v139
    %v141 = vsub.f32 1.5, %v140
    %v142 = vmul.f32 %v137, %v141
    %vm143 = vweird.f32 %v135
    %vm144 = vweird.f32 %v137
    %vm145 = vmor %vm143, %vm144
    %v146 = vsel %vm145, %v137, %v142
    %v147 = vrsqrt.pop %v136
    %v148 = vmul.f32 %v147, %v136
    %v149 = vmul.f32 %v148, %v147
    %v150 = vmul.f32 0.5, %v149
    %v151 = vsub.f32 1.5, %v150
    %v152 = vmul.f32 %v147, %v151
    %vm153 = vweird.f32 %v136
    %vm154 = vweird.f32 %v147
    %vm155 = vmor %vm153, %vm154
    %v156 = vsel %vm155, %v147, %v152
    %v157 = vmul.f32 %v123, %v146
    %v158 = vmul.f32 %v124, %v156
    %v160 = vperm.slane %v105, 0
    %v162 = vmul.f32 %v157, %v160
    %v163 = vmul.f32 %v158, %v160
    %v165 = vperm.slane %v106, 0
    %v167 = vadd.f32 %v162, %v165
    %v168 = vadd.f32 %v163, %v165
    %v169 = vpack.c.bf16 %v168, %v167
    %v170 = vld [vmem:[#allocation3] sm:$0xf]
    %v171 = vld [vmem:[#allocation3 + $0x4] sm:$0xf]
    %v172 = vld [vmem:[#allocation3 + $0x8] sm:$0xf]
    %v173 = vld [vmem:[#allocation3 + $0xc] sm:$0xf]
    %v174 = vld [vmem:[%s4] sm:$0x1]
    %v176 = vperm.slane %v174, 0
    %v182 = vunpack.c.l.b16 %v170
    %v183 = vunpack.c.l.b16 %v171
    %v184 = vunpack.c.l.b16 %v172
    %v185 = vunpack.c.l.b16 %v173
    %v186 = vpack.c.b16 %v183, %v182
    %v187 = vpack.c.b16 %v185, %v184
    %v191 = vsel %vm107, %v169, 0
    %193 = vmatpush.bf16.msra.mxu0 0
    %194 = vmatpush.bf16.msra.mxu0 0
    %195 = vmatpush.bf16.msra.mxu0 0
    %196 = vmatpush.bf16.msra.mxu0 0
    %197 = vmatpush.bf16.msra.mxu0 0
    %198 = vmatpush.bf16.msra.mxu0 0
    %199 = vmatpush.bf16.msra.mxu0 %v187
    %200 = vmatpush.bf16.msra.mxu0 %v186
    %201 = vmatmul.bf16.gmra.mxu0 %v191
    %v202 = vpop.f32.mrf.mxu0
    %v203 = vadd.f32 %v176, %v202
    %v204 = vpop.f32.mrf.mxu0
    %v205 = vadd.f32 %v176, %v204
    %206 = vdwg.mxu0
    %v207 = vpack.c.bf16 %v203, %v203
    %v208 = vpack.c.bf16 %v205, %v205
    %209 = vrot.lane.b32.xlu0 %v186, 96
    %v210 = vpop.permute.xlu0 %209
    %211 = vrot.lane.b32.xlu0 %v187, 96
    %v212 = vpop.permute.xlu0 %211
    %215 = vrot.lane.b32.xlu0 %v176, 96
    %v216 = vpop.permute.xlu0 %215
    %218 = vmatpush.bf16.msra.mxu0 0
    %219 = vmatpush.bf16.msra.mxu0 0
    %220 = vmatpush.bf16.msra.mxu0 0
    %221 = vmatpush.bf16.msra.mxu0 0
    %222 = vmatpush.bf16.msra.mxu0 0
    %223 = vmatpush.bf16.msra.mxu0 0
    %224 = vmatpush.bf16.msra.mxu0 %v212
    %225 = vmatpush.bf16.msra.mxu0 %v210
    %226 = vmatmul.bf16.gmra.mxu0 %v191
    %v227 = vpop.f32.mrf.mxu0
    %v228 = vadd.f32 %v216, %v227
    %v229 = vpop.f32.mrf.mxu0
    %v230 = vadd.f32 %v216, %v229
    %231 = vdwg.mxu0
    %v232 = vpack.c.bf16 %v228, %v228
    %v233 = vpack.c.bf16 %v230, %v230
    %234 = vrot.lane.b32.xlu0 %v186, 64
    %v235 = vpop.permute.xlu0 %234
    %236 = vrot.lane.b32.xlu0 %v187, 64
    %v237 = vpop.permute.xlu0 %236
    %240 = vrot.lane.b32.xlu0 %v176, 64
    %v241 = vpop.permute.xlu0 %240
    %243 = vmatpush.bf16.msra.mxu0 0
    %244 = vmatpush.bf16.msra.mxu0 0
    %245 = vmatpush.bf16.msra.mxu0 0
    %246 = vmatpush.bf16.msra.mxu0 0
    %247 = vmatpush.bf16.msra.mxu0 0
    %248 = vmatpush.bf16.msra.mxu0 0
    %249 = vmatpush.bf16.msra.mxu0 %v237
    %250 = vmatpush.bf16.msra.mxu0 %v235
    %251 = vmatmul.bf16.gmra.mxu0 %v191
    %v252 = vpop.f32.mrf.mxu0
    %v253 = vadd.f32 %v241, %v252
    %v254 = vpop.f32.mrf.mxu0
    %v255 = vadd.f32 %v241, %v254
    %256 = vdwg.mxu0
    %v257 = vpack.c.bf16 %v253, %v253
    %v258 = vpack.c.bf16 %v255, %v255
    %vm259 = vcmask 64512
    %v261 = vsel %vm259, %v207, 0
    %v264 = vsel %vm259, %v232, 0
    %266 = vmatpush.bf16.xpose.msra.mxu0 0
    %267 = vmatpush.bf16.xpose.msra.mxu0 0
    %268 = vmatpush.bf16.xpose.msra.mxu0 0
    %269 = vmatpush.bf16.xpose.msra.mxu0 0
    %270 = vmatpush.bf16.xpose.msra.mxu0 0
    %271 = vmatpush.bf16.xpose.msra.mxu0 0
    %272 = vmatpush.bf16.xpose.msra.mxu0 0
    %273 = vmatpush.bf16.xpose.msra.mxu0 %v264
    %274 = vmatmul.bf16.gmra.mxu0 %v261
    %v275 = vpop.f32.mrf.mxu0
    %v276 = vadd.f32 0.0, %v275
    %v277 = vpop.f32.mrf.mxu0
    %278 = vdwg.mxu0
    %v280 = vsel %vm259, %v208, 0
    %v283 = vsel %vm259, %v233, 0
    %285 = vmatpush.bf16.xpose.msra.mxu0 0
    %286 = vmatpush.bf16.xpose.msra.mxu0 0
    %287 = vmatpush.bf16.xpose.msra.mxu0 0
    %288 = vmatpush.bf16.xpose.msra.mxu0 0
    %289 = vmatpush.bf16.xpose.msra.mxu0 0
    %290 = vmatpush.bf16.xpose.msra.mxu0 0
    %291 = vmatpush.bf16.xpose.msra.mxu0 0
    %292 = vmatpush.bf16.xpose.msra.mxu0 %v283
    %293 = vmatmul.bf16.gmra.mxu0 %v280
    %v294 = vpop.f32.mrf.mxu0
    %v295 = vadd.f32 0.0, %v294
    %v296 = vpop.f32.mrf.mxu0
    %297 = vdwg.mxu0
    %v298 = vsel %vm259, %v276, -inf
    %299 = vmax.xlane.f32.xlu0 %v298
    %v300 = vpop.xlane.xlu0 %299
    %v301 = vsel %vm259, %v295, -inf
    %302 = vmax.xlane.f32.xlu0 %v301
    %v303 = vpop.xlane.xlu0 %302
    %v304 = vsub.f32 %v276, %v300
    %v305 = vsub.f32 %v295, %v303
    %v306 = vmul.f32 %v304, 1.442695
    %v307 = vpow.pop %v306
    %v308 = vmul.f32 %v305, 1.442695
    %v309 = vpow.pop %v308
    %v310 = vsel %vm259, %v307, 0.0
    %311 = vadd.xlane.f32.xlu0 %v310
    %v312 = vpop.xlane.xlu0 %311
    %v313 = vsel %vm259, %v309, 0.0
    %314 = vadd.xlane.f32.xlu0 %v313
    %v315 = vpop.xlane.xlu0 %314
    %v316 = vrcp.pop %v312
    %v317 = vrcp.pop %v315
    %v318 = vmul.f32 %v307, %v316
    %v319 = vmul.f32 %v309, %v317
    %v320 = vpack.c.bf16 %v318, %v318
    %v321 = vpack.c.bf16 %v319, %v319
    %v323 = vsel %vm259, %v320, 0
    %vm325 = vcmask 1043456
    %v327 = vsel %vm325, %v257, 0
    %329 = vmatpush.bf16.msra.mxu0 0
    %330 = vmatpush.bf16.msra.mxu0 0
    %331 = vmatpush.bf16.msra.mxu0 0
    %332 = vmatpush.bf16.msra.mxu0 0
    %333 = vmatpush.bf16.msra.mxu0 0
    %334 = vmatpush.bf16.msra.mxu0 0
    %335 = vmatpush.bf16.msra.mxu0 0
    %336 = vmatpush.bf16.msra.mxu0 %v327
    %337 = vmatmul.bf16.gmra.mxu0 %v323
    %v338 = vpop.f32.mrf.mxu0
    %v339 = vadd.f32 0.0, %v338
    %v340 = vpop.f32.mrf.mxu0
    %341 = vdwg.mxu0
    %v343 = vsel %vm259, %v321, 0
    %v346 = vsel %vm325, %v258, 0
    %348 = vmatpush.bf16.msra.mxu0 0
    %349 = vmatpush.bf16.msra.mxu0 0
    %350 = vmatpush.bf16.msra.mxu0 0
    %351 = vmatpush.bf16.msra.mxu0 0
    %352 = vmatpush.bf16.msra.mxu0 0
    %353 = vmatpush.bf16.msra.mxu0 0
    %354 = vmatpush.bf16.msra.mxu0 0
    %355 = vmatpush.bf16.msra.mxu0 %v346
    %356 = vmatmul.bf16.gmra.mxu0 %v343
    %v357 = vpop.f32.mrf.mxu0
    %v358 = vadd.f32 0.0, %v357
    %v359 = vpop.f32.mrf.mxu0
    %360 = vdwg.mxu0
    %v362 = vunpack.c.l.b16 %v207
    %v363 = vpack.c.b16 %v362, %v362
    %364 = vrot.lane.b32.xlu0 %v363, 120
    %v365 = vpop.permute.xlu0 %364
    %v367 = vunpack.c.l.b16 %v232
    %v368 = vpack.c.b16 %v367, %v367
    %369 = vrot.lane.b32.xlu0 %v368, 120
    %v370 = vpop.permute.xlu0 %369
    %v372 = vsel %vm259, %v365, 0
    %v375 = vsel %vm259, %v370, 0
    %377 = vmatpush.bf16.xpose.msra.mxu0 0
    %378 = vmatpush.bf16.xpose.msra.mxu0 0
    %379 = vmatpush.bf16.xpose.msra.mxu0 0
    %380 = vmatpush.bf16.xpose.msra.mxu0 0
    %381 = vmatpush.bf16.xpose.msra.mxu0 0
    %382 = vmatpush.bf16.xpose.msra.mxu0 0
    %383 = vmatpush.bf16.xpose.msra.mxu0 0
    %384 = vmatpush.bf16.xpose.msra.mxu0 %v375
    %385 = vmatmul.bf16.gmra.mxu0 %v372
    %v386 = vpop.f32.mrf.mxu0
    %v387 = vadd.f32 0.0, %v386
    %v388 = vpop.f32.mrf.mxu0
    %389 = vdwg.mxu0
    %v391 = vunpack.c.l.b16 %v208
    %v392 = vpack.c.b16 %v391, %v391
    %393 = vrot.lane.b32.xlu0 %v392, 120
    %v394 = vpop.permute.xlu0 %393
    %v396 = vunpack.c.l.b16 %v233
    %v397 = vpack.c.b16 %v396, %v396
    %398 = vrot.lane.b32.xlu0 %v397, 120
    %v399 = vpop.permute.xlu0 %398
    %v401 = vsel %vm259, %v394, 0
    %v404 = vsel %vm259, %v399, 0
    %406 = vmatpush.bf16.xpose.msra.mxu0 0
    %407 = vmatpush.bf16.xpose.msra.mxu0 0
    %408 = vmatpush.bf16.xpose.msra.mxu0 0
    %409 = vmatpush.bf16.xpose.msra.mxu0 0
    %410 = vmatpush.bf16.xpose.msra.mxu0 0
    %411 = vmatpush.bf16.xpose.msra.mxu0 0
    %412 = vmatpush.bf16.xpose.msra.mxu0 0
    %413 = vmatpush.bf16.xpose.msra.mxu0 %v404
    %414 = vmatmul.bf16.gmra.mxu0 %v401
    %v415 = vpop.f32.mrf.mxu0
    %v416 = vadd.f32 0.0, %v415
    %v417 = vpop.f32.mrf.mxu0
    %418 = vdwg.mxu0
    %v419 = vsel %vm259, %v387, -inf
    %420 = vmax.xlane.f32.xlu0 %v419
    %v421 = vpop.xlane.xlu0 %420
    %v422 = vsel %vm259, %v416, -inf
    %423 = vmax.xlane.f32.xlu0 %v422
    %v424 = vpop.xlane.xlu0 %423
    %v425 = vsub.f32 %v387, %v421
    %v426 = vsub.f32 %v416, %v424
    %v427 = vmul.f32 %v425, 1.442695
    %v428 = vpow.pop %v427
    %v429 = vmul.f32 %v426, 1.442695
    %v430 = vpow.pop %v429
    %v431 = vsel %vm259, %v428, 0.0
    %432 = vadd.xlane.f32.xlu0 %v431
    %v433 = vpop.xlane.xlu0 %432
    %v434 = vsel %vm259, %v430, 0.0
    %435 = vadd.xlane.f32.xlu0 %v434
    %v436 = vpop.xlane.xlu0 %435
    %v437 = vrcp.pop %v433
    %v438 = vrcp.pop %v436
    %v439 = vmul.f32 %v428, %v437
    %v440 = vmul.f32 %v430, %v438
    %v441 = vpack.c.bf16 %v439, %v439
    %v442 = vpack.c.bf16 %v440, %v440
    %v444 = vunpack.c.l.b16 %v257
    %v445 = vpack.c.b16 %v444, %v444
    %446 = vrot.lane.b32.xlu0 %v445, 120
    %v447 = vpop.permute.xlu0 %446
    %v449 = vsel %vm259, %v441, 0
    %v452 = vsel %vm325, %v447, 0
    %454 = vmatpush.bf16.msra.mxu0 0
    %455 = vmatpush.bf16.msra.mxu0 0
    %456 = vmatpush.bf16.msra.mxu0 0
    %457 = vmatpush.bf16.msra.mxu0 0
    %458 = vmatpush.bf16.msra.mxu0 0
    %459 = vmatpush.bf16.msra.mxu0 0
    %460 = vmatpush.bf16.msra.mxu0 0
    %461 = vmatpush.bf16.msra.mxu0 %v452
    %462 = vmatmul.bf16.gmra.mxu0 %v449
    %v463 = vpop.f32.mrf.mxu0
    %v464 = vadd.f32 0.0, %v463
    %v465 = vpop.f32.mrf.mxu0
    %466 = vdwg.mxu0
    %v468 = vunpack.c.l.b16 %v258
    %v469 = vpack.c.b16 %v468, %v468
    %470 = vrot.lane.b32.xlu0 %v469, 120
    %v471 = vpop.permute.xlu0 %470
    %v473 = vsel %vm259, %v442, 0
    %v476 = vsel %vm325, %v471, 0
    %478 = vmatpush.bf16.msra.mxu0 0
    %479 = vmatpush.bf16.msra.mxu0 0
    %480 = vmatpush.bf16.msra.mxu0 0
    %481 = vmatpush.bf16.msra.mxu0 0
    %482 = vmatpush.bf16.msra.mxu0 0
    %483 = vmatpush.bf16.msra.mxu0 0
    %484 = vmatpush.bf16.msra.mxu0 0
    %485 = vmatpush.bf16.msra.mxu0 %v476
    %486 = vmatmul.bf16.gmra.mxu0 %v473
    %v487 = vpop.f32.mrf.mxu0
    %v488 = vadd.f32 0.0, %v487
    %v489 = vpop.f32.mrf.mxu0
    %490 = vdwg.mxu0
    %493 = vrot.lane.b32.xlu0 %v464, 8
    %v494 = vpop.permute.xlu0 %493
    %495 = vrot.lane.b32.xlu0 %v488, 8
    %v496 = vpop.permute.xlu0 %495
    %v499 = vsel %vm259, %v339, %v494
    %v500 = vsel %vm259, %v358, %v496
    %v501 = vpack.c.bf16 %v499, %v499
    %v502 = vpack.c.bf16 %v500, %v500
    %vm503 = vcmask 125952
    %504 = vst.msk [vmem:[#allocation2] sm:$0xf] %vm503, %v501
    %505 = vst.msk [vmem:[#allocation2 + $0x4] sm:$0xf] %vm503, %v502
    %506 = vrot.lane.b32.xlu0 %v363, 112
    %v507 = vpop.permute.xlu0 %506
    %508 = vrot.lane.b32.xlu0 %v368, 112
    %v509 = vpop.permute.xlu0 %508
    %v511 = vsel %vm259, %v507, 0
    %v514 = vsel %vm259, %v509, 0
    %516 = vmatpush.bf16.xpose.msra.mxu0 0
    %517 = vmatpush.bf16.xpose.msra.mxu0 0
    %518 = vmatpush.bf16.xpose.msra.mxu0 0
    %519 = vmatpush.bf16.xpose.msra.mxu0 0
    %520 = vmatpush.bf16.xpose.msra.mxu0 0
    %521 = vmatpush.bf16.xpose.msra.mxu0 0
    %522 = vmatpush.bf16.xpose.msra.mxu0 0
    %523 = vmatpush.bf16.xpose.msra.mxu0 %v514
    %524 = vmatmul.bf16.gmra.mxu0 %v511
    %v525 = vpop.f32.mrf.mxu0
    %v526 = vadd.f32 0.0, %v525
    %v527 = vpop.f32.mrf.mxu0
    %528 = vdwg.mxu0
    %529 = vrot.lane.b32.xlu0 %v392, 112
    %v530 = vpop.permute.xlu0 %529
    %531 = vrot.lane.b32.xlu0 %v397, 112
    %v532 = vpop.permute.xlu0 %531
    %v534 = vsel %vm259, %v530, 0
    %v537 = vsel %vm259, %v532, 0
    %539 = vmatpush.bf16.xpose.msra.mxu0 0
    %540 = vmatpush.bf16.xpose.msra.mxu0 0
    %541 = vmatpush.bf16.xpose.msra.mxu0 0
    %542 = vmatpush.bf16.xpose.msra.mxu0 0
    %543 = vmatpush.bf16.xpose.msra.mxu0 0
    %544 = vmatpush.bf16.xpose.msra.mxu0 0
    %545 = vmatpush.bf16.xpose.msra.mxu0 0
    %546 = vmatpush.bf16.xpose.msra.mxu0 %v537
    %547 = vmatmul.bf16.gmra.mxu0 %v534
    %v548 = vpop.f32.mrf.mxu0
    %v549 = vadd.f32 0.0, %v548
    %v550 = vpop.f32.mrf.mxu0
    %551 = vdwg.mxu0
    %v552 = vsel %vm259, %v526, -inf
    %553 = vmax.xlane.f32.xlu0 %v552
    %v554 = vpop.xlane.xlu0 %553
    %v555 = vsel %vm259, %v549, -inf
    %556 = vmax.xlane.f32.xlu0 %v555
    %v557 = vpop.xlane.xlu0 %556
    %v558 = vsub.f32 %v526, %v554
    %v559 = vsub.f32 %v549, %v557
    %v560 = vmul.f32 %v558, 1.442695
    %v561 = vpow.pop %v560
    %v562 = vmul.f32 %v559, 1.442695
    %v563 = vpow.pop %v562
    %v564 = vsel %vm259, %v561, 0.0
    %565 = vadd.xlane.f32.xlu0 %v564
    %v566 = vpop.xlane.xlu0 %565
    %v567 = vsel %vm259, %v563, 0.0
    %568 = vadd.xlane.f32.xlu0 %v567
    %v569 = vpop.xlane.xlu0 %568
    %v570 = vrcp.pop %v566
    %v571 = vrcp.pop %v569
    %v572 = vmul.f32 %v561, %v570
    %v573 = vmul.f32 %v563, %v571
    %v574 = vpack.c.bf16 %v572, %v572
    %v575 = vpack.c.bf16 %v573, %v573
    %576 = vrot.lane.b32.xlu0 %v445, 112
    %v577 = vpop.permute.xlu0 %576
    %v579 = vsel %vm259, %v574, 0
    %v582 = vsel %vm325, %v577, 0
    %584 = vmatpush.bf16.msra.mxu0 0
    %585 = vmatpush.bf16.msra.mxu0 0
    %586 = vmatpush.bf16.msra.mxu0 0
    %587 = vmatpush.bf16.msra.mxu0 0
    %588 = vmatpush.bf16.msra.mxu0 0
    %589 = vmatpush.bf16.msra.mxu0 0
    %590 = vmatpush.bf16.msra.mxu0 0
    %591 = vmatpush.bf16.msra.mxu0 %v582
    %592 = vmatmul.bf16.gmra.mxu0 %v579
    %v593 = vpop.f32.mrf.mxu0
    %v594 = vadd.f32 0.0, %v593
    %v595 = vpop.f32.mrf.mxu0
    %596 = vdwg.mxu0
    %597 = vrot.lane.b32.xlu0 %v469, 112
    %v598 = vpop.permute.xlu0 %597
    %v600 = vsel %vm259, %v575, 0
    %v603 = vsel %vm325, %v598, 0
    %605 = vmatpush.bf16.msra.mxu0 0
    %606 = vmatpush.bf16.msra.mxu0 0
    %607 = vmatpush.bf16.msra.mxu0 0
    %608 = vmatpush.bf16.msra.mxu0 0
    %609 = vmatpush.bf16.msra.mxu0 0
    %610 = vmatpush.bf16.msra.mxu0 0
    %611 = vmatpush.bf16.msra.mxu0 0
    %612 = vmatpush.bf16.msra.mxu0 %v603
    %613 = vmatmul.bf16.gmra.mxu0 %v600
    %v614 = vpop.f32.mrf.mxu0
    %v615 = vadd.f32 0.0, %v614
    %v616 = vpop.f32.mrf.mxu0
    %617 = vdwg.mxu0
    %618 = vrot.lane.b32.xlu0 %v363, 104
    %v619 = vpop.permute.xlu0 %618
    %620 = vrot.lane.b32.xlu0 %v368, 104
    %v621 = vpop.permute.xlu0 %620
    %v623 = vsel %vm259, %v619, 0
    %v626 = vsel %vm259, %v621, 0
    %628 = vmatpush.bf16.xpose.msra.mxu0 0
    %629 = vmatpush.bf16.xpose.msra.mxu0 0
    %630 = vmatpush.bf16.xpose.msra.mxu0 0
    %631 = vmatpush.bf16.xpose.msra.mxu0 0
    %632 = vmatpush.bf16.xpose.msra.mxu0 0
    %633 = vmatpush.bf16.xpose.msra.mxu0 0
    %634 = vmatpush.bf16.xpose.msra.mxu0 0
    %635 = vmatpush.bf16.xpose.msra.mxu0 %v626
    %636 = vmatmul.bf16.gmra.mxu0 %v623
    %v637 = vpop.f32.mrf.mxu0
    %v638 = vadd.f32 0.0, %v637
    %v639 = vpop.f32.mrf.mxu0
    %640 = vdwg.mxu0
    %641 = vrot.lane.b32.xlu0 %v392, 104
    %v642 = vpop.permute.xlu0 %641
    %643 = vrot.lane.b32.xlu0 %v397, 104
    %v644 = vpop.permute.xlu0 %643
    %v646 = vsel %vm259, %v642, 0
    %v649 = vsel %vm259, %v644, 0
    %651 = vmatpush.bf16.xpose.msra.mxu0 0
    %652 = vmatpush.bf16.xpose.msra.mxu0 0
    %653 = vmatpush.bf16.xpose.msra.mxu0 0
    %654 = vmatpush.bf16.xpose.msra.mxu0 0
    %655 = vmatpush.bf16.xpose.msra.mxu0 0
    %656 = vmatpush.bf16.xpose.msra.mxu0 0
    %657 = vmatpush.bf16.xpose.msra.mxu0 0
    %658 = vmatpush.bf16.xpose.msra.mxu0 %v649
    %659 = vmatmul.bf16.gmra.mxu0 %v646
    %v660 = vpop.f32.mrf.mxu0
    %v661 = vadd.f32 0.0, %v660
    %v662 = vpop.f32.mrf.mxu0
    %663 = vdwg.mxu0
    %v664 = vsel %vm259, %v638, -inf
    %665 = vmax.xlane.f32.xlu0 %v664
    %v666 = vpop.xlane.xlu0 %665
    %v667 = vsel %vm259, %v661, -inf
    %668 = vmax.xlane.f32.xlu0 %v667
    %v669 = vpop.xlane.xlu0 %668
    %v670 = vsub.f32 %v638, %v666
    %v671 = vsub.f32 %v661, %v669
    %v672 = vmul.f32 %v670, 1.442695
    %v673 = vpow.pop %v672
    %v674 = vmul.f32 %v671, 1.442695
    %v675 = vpow.pop %v674
    %v676 = vsel %vm259, %v673, 0.0
    %677 = vadd.xlane.f32.xlu0 %v676
    %v678 = vpop.xlane.xlu0 %677
    %v679 = vsel %vm259, %v675, 0.0
    %680 = vadd.xlane.f32.xlu0 %v679
    %v681 = vpop.xlane.xlu0 %680
    %v682 = vrcp.pop %v678
    %v683 = vrcp.pop %v681
    %v684 = vmul.f32 %v673, %v682
    %v685 = vmul.f32 %v675, %v683
    %v686 = vpack.c.bf16 %v684, %v684
    %v687 = vpack.c.bf16 %v685, %v685
    %688 = vrot.lane.b32.xlu0 %v445, 104
    %v689 = vpop.permute.xlu0 %688
    %v691 = vsel %vm259, %v686, 0
    %v694 = vsel %vm325, %v689, 0
    %696 = vmatpush.bf16.msra.mxu0 0
    %697 = vmatpush.bf16.msra.mxu0 0
    %698 = vmatpush.bf16.msra.mxu0 0
    %699 = vmatpush.bf16.msra.mxu0 0
    %700 = vmatpush.bf16.msra.mxu0 0
    %701 = vmatpush.bf16.msra.mxu0 0
    %702 = vmatpush.bf16.msra.mxu0 0
    %703 = vmatpush.bf16.msra.mxu0 %v694
    %704 = vmatmul.bf16.gmra.mxu0 %v691
    %v705 = vpop.f32.mrf.mxu0
    %v706 = vadd.f32 0.0, %v705
    %v707 = vpop.f32.mrf.mxu0
    %708 = vdwg.mxu0
    %709 = vrot.lane.b32.xlu0 %v469, 104
    %v710 = vpop.permute.xlu0 %709
    %v712 = vsel %vm259, %v687, 0
    %v715 = vsel %vm325, %v710, 0
    %717 = vmatpush.bf16.msra.mxu0 0
    %718 = vmatpush.bf16.msra.mxu0 0
    %719 = vmatpush.bf16.msra.mxu0 0
    %720 = vmatpush.bf16.msra.mxu0 0
    %721 = vmatpush.bf16.msra.mxu0 0
    %722 = vmatpush.bf16.msra.mxu0 0
    %723 = vmatpush.bf16.msra.mxu0 0
    %724 = vmatpush.bf16.msra.mxu0 %v715
    %725 = vmatmul.bf16.gmra.mxu0 %v712
    %v726 = vpop.f32.mrf.mxu0
    %v727 = vadd.f32 0.0, %v726
    %v728 = vpop.f32.mrf.mxu0
    %729 = vdwg.mxu0
    %732 = vrot.lane.b32.xlu0 %v706, 8
    %v733 = vpop.permute.xlu0 %732
    %734 = vrot.lane.b32.xlu0 %v727, 8
    %v735 = vpop.permute.xlu0 %734
    %v738 = vsel %vm259, %v594, %v733
    %v739 = vsel %vm259, %v615, %v735
    %v740 = vpack.c.bf16 %v738, %v738
    %v741 = vpack.c.bf16 %v739, %v739
    %744 = vrot.lane.b32.xlu0 %v740, 16
    %v745 = vpop.permute.xlu0 %744
    %746 = vrot.lane.b32.xlu0 %v741, 16
    %v747 = vpop.permute.xlu0 %746
    %vm750 = vcmask 257152
    %751 = vst.msk [vmem:[#allocation2] sm:$0xf] %vm750, %v745
    %752 = vst.msk [vmem:[#allocation2 + $0x4] sm:$0xf] %vm750, %v747
    %v753 = vld [vmem:[#allocation2] sm:$0xf]
    %v754 = vld [vmem:[#allocation2 + $0x4] sm:$0xf]
    %v755 = vld [vmem:[#allocation6] sm:$0xf]
    %v756 = vld [vmem:[#allocation6 + $0x4] sm:$0xf]
    %v757 = vld [vmem:[#allocation6 + $0x8] sm:$0xf]
    %v758 = vld [vmem:[#allocation6 + $0xc] sm:$0xf]
    %v759 = vld [vmem:[%s6] sm:$0x1]
    %v761 = vperm.slane %v759, 0
    %v765 = vunpack.c.l.b16 %v753
    %v766 = vunpack.c.l.b16 %v754
    %v767 = vpack.c.b16 %v766, %v765
    %v772 = vunpack.c.l.b16 %v755
    %v773 = vunpack.c.l.b16 %v756
    %v774 = vunpack.c.l.b16 %v757
    %v775 = vunpack.c.l.b16 %v758
    %v776 = vpack.c.b16 %v773, %v772
    %v777 = vpack.c.b16 %v775, %v774
    %v781 = vsel %vm107, %v767, 0
    %783 = vmatpush.bf16.msra.mxu0 0
    %784 = vmatpush.bf16.msra.mxu0 0
    %785 = vmatpush.bf16.msra.mxu0 0
    %786 = vmatpush.bf16.msra.mxu0 0
    %787 = vmatpush.bf16.msra.mxu0 0
    %788 = vmatpush.bf16.msra.mxu0 0
    %789 = vmatpush.bf16.msra.mxu0 %v777
    %790 = vmatpush.bf16.msra.mxu0 %v776
    %791 = vmatmul.bf16.gmra.mxu0 %v781
    %v792 = vpop.f32.mrf.mxu0
    %v793 = vadd.f32 %v761, %v792
    %v794 = vpop.f32.mrf.mxu0
    %v795 = vadd.f32 %v761, %v794
    %796 = vdwg.mxu0
    %v797 = vadd.f32 %v103, %v793
    %v798 = vadd.f32 %v104, %v795
    %v799 = vld [vmem:[%s7] sm:$0x1]
    %v800 = vld [vmem:[%s8] sm:$0x1]
    %v801 = vsel %vm107, %v797, 0.0
    %802 = vadd.xlane.f32.xlu0 %v801
    %v803 = vpop.xlane.xlu0 %802
    %v804 = vsel %vm107, %v798, 0.0
    %805 = vadd.xlane.f32.xlu0 %v804
    %v806 = vpop.xlane.xlu0 %805
    %v807 = vmul.f32 %v803, %v120
    %v808 = vmul.f32 %v806, %v120
    %v809 = vsub.f32 %v797, %v807
    %v810 = vsub.f32 %v798, %v808
    %v811 = vmul.f32 %v809, %v809
    %v812 = vmul.f32 %v810, %v810
    %v813 = vsel %vm107, %v811, 0.0
    %814 = vadd.xlane.f32.xlu0 %v813
    %v815 = vpop.xlane.xlu0 %814
    %v816 = vsel %vm107, %v812, 0.0
    %817 = vadd.xlane.f32.xlu0 %v816
    %v818 = vpop.xlane.xlu0 %817
    %v819 = vmul.f32 %v815, %v120
    %v820 = vmul.f32 %v818, %v120
    %v821 = vadd.f32 %v819, 1e-05
    %v822 = vadd.f32 %v820, 1e-05
    %v823 = vrsqrt.pop %v821
    %v824 = vmul.f32 %v823, %v821
    %v825 = vmul.f32 %v824, %v823
    %v826 = vmul.f32 0.5, %v825
    %v827 = vsub.f32 1.5, %v826
    %v828 = vmul.f32 %v823, %v827
    %vm829 = vweird.f32 %v821
    %vm830 = vweird.f32 %v823
    %vm831 = vmor %vm829, %vm830
    %v832 = vsel %vm831, %v823, %v828
    %v833 = vrsqrt.pop %v822
    %v834 = vmul.f32 %v833, %v822
    %v835 = vmul.f32 %v834, %v833
    %v836 = vmul.f32 0.5, %v835
    %v837 = vsub.f32 1.5, %v836
    %v838 = vmul.f32 %v833, %v837
    %vm839 = vweird.f32 %v822
    %vm840 = vweird.f32 %v833
    %vm841 = vmor %vm839, %vm840
    %v842 = vsel %vm841, %v833, %v838
    %v843 = vmul.f32 %v809, %v832
    %v844 = vmul.f32 %v810, %v842
    %v846 = vperm.slane %v799, 0
    %v848 = vmul.f32 %v843, %v846
    %v849 = vmul.f32 %v844, %v846
    %v851 = vperm.slane %v800, 0
    %v853 = vadd.f32 %v848, %v851
    %v854 = vadd.f32 %v849, %v851
    %v855 = vpack.c.bf16 %v854, %v853
    %v856 = vld [vmem:[%s12] sm:$0x1]
    %v858 = vperm.slane %v856, 0
    %v860 = vadd.f32 %v797, %v858
    %v861 = vadd.f32 %v798, %v858
    %v862 = vld [vmem:[#allocation8] sm:$0xf]
    %v863 = vld [vmem:[#allocation8 + $0x4] sm:$0xf]
    %v864 = vld [vmem:[#allocation8 + $0x8] sm:$0xf]
    %v865 = vld [vmem:[#allocation8 + $0xc] sm:$0xf]
    %v866 = vld [vmem:[%s10] sm:$0x1]
    %v868 = vperm.slane %v866, 0
    %v874 = vunpack.c.l.b16 %v862
    %v875 = vunpack.c.l.b16 %v863
    %v876 = vunpack.c.l.b16 %v864
    %v877 = vunpack.c.l.b16 %v865
    %v878 = vpack.c.b16 %v875, %v874
    %v879 = vpack.c.b16 %v877, %v876
    %v883 = vsel %vm107, %v855, 0
    %885 = vmatpush.bf16.msra.mxu0 0
    %886 = vmatpush.bf16.msra.mxu0 0
    %887 = vmatpush.bf16.msra.mxu0 0
    %888 = vmatpush.bf16.msra.mxu0 0
    %889 = vmatpush.bf16.msra.mxu0 0
    %890 = vmatpush.bf16.msra.mxu0 0
    %891 = vmatpush.bf16.msra.mxu0 %v879
    %892 = vmatpush.bf16.msra.mxu0 %v878
    %893 = vmatmul.bf16.gmra.mxu0 %v883
    %v894 = vpop.f32.mrf.mxu0
    %v895 = vadd.f32 %v868, %v894
    %v896 = vpop.f32.mrf.mxu0
    %v897 = vadd.f32 %v868, %v896
    %898 = vdwg.mxu0
    %v899 = vmul.f32 %v895, -1.702
    %v900 = vmul.f32 %v897, -1.702
    %v901 = vpack.c.bf16 %v899, %v899
    %v902 = vpack.c.bf16 %v900, %v900
    %v903 = vunpack.c.l.bf16 %v901
    %v904 = vunpack.c.l.bf16 %v902
    %v905 = vmul.f32 %v903, 1.442695
    %v906 = vpow.pop %v905
    %v907 = vmul.f32 %v904, 1.442695
    %v908 = vpow.pop %v907
    %v909 = vpack.c.bf16 %v906, %v906
    %v910 = vpack.c.bf16 %v908, %v908
    %v911 = vunpack.c.l.bf16 %v909
    %v912 = vunpack.c.l.bf16 %v910
    %v913 = vadd.f32 %v911, 1.0
    %v914 = vadd.f32 %v912, 1.0
    %v915 = vpack.c.bf16 %v913, %v913
    %v916 = vpack.c.bf16 %v914, %v914
    %v917 = vunpack.c.h.bf16 1065369472
    %v918 = vunpack.c.l.bf16 1065369472
    %v919 = vunpack.c.h.bf16 %v915
    %v920 = vunpack.c.l.bf16 %v915
    %v921 = vrcp.pop %v919
    %v922 = vmul.f32 %v917, %v921
    %v923 = vrcp.pop %v920
    %v924 = vmul.f32 %v918, %v923
    %v925 = vpack.c.bf16 %v922, %v924
    %v926 = vunpack.c.h.bf16 %v916
    %v927 = vunpack.c.l.bf16 %v916
    %v928 = vrcp.pop %v926
    %v929 = vmul.f32 %v917, %v928
    %v930 = vrcp.pop %v927
    %v931 = vmul.f32 %v918, %v930
    %v932 = vpack.c.bf16 %v929, %v931
    %v933 = vunpack.c.l.bf16 %v925
    %v934 = vunpack.c.l.bf16 %v932
    %v935 = vmul.f32 %v895, %v933
    %v936 = vmul.f32 %v897, %v934
    %v937 = vpack.c.bf16 %v936, %v935
    %v938 = vld [vmem:[%s11] sm:$0xf]
    %v939 = vld [vmem:[%s11 + $0x4] sm:$0xf]
    %v940 = vld [vmem:[%s11 + $0x8] sm:$0xf]
    %v941 = vld [vmem:[%s11 + $0xc] sm:$0xf]
    %v942 = vld [vmem:[%s11 + $0x10] sm:$0xf]
    %v943 = vld [vmem:[%s11 + $0x14] sm:$0xf]
    %v944 = vld [vmem:[%s11 + $0x18] sm:$0xf]
    %v945 = vld [vmem:[%s11 + $0x1c] sm:$0xf]
    %v946 = vld [vmem:[%s11 + $0x20] sm:$0xf]
    %v947 = vld [vmem:[%s11 + $0x24] sm:$0xf]
    %v948 = vld [vmem:[%s11 + $0x28] sm:$0xf]
    %v949 = vld [vmem:[%s11 + $0x2c] sm:$0xf]
    %v950 = vld [vmem:[%s11 + $0x30] sm:$0xf]
    %v951 = vld [vmem:[%s11 + $0x34] sm:$0xf]
    %v952 = vld [vmem:[%s11 + $0x38] sm:$0xf]
    %v953 = vld [vmem:[%s11 + $0x3c] sm:$0xf]
    %v970 = vunpack.c.l.b16 %v938
    %v971 = vunpack.c.l.b16 %v939
    %v972 = vunpack.c.l.b16 %v940
    %v973 = vunpack.c.l.b16 %v941
    %v974 = vunpack.c.l.b16 %v942
    %v975 = vunpack.c.l.b16 %v943
    %v976 = vunpack.c.l.b16 %v944
    %v977 = vunpack.c.l.b16 %v945
    %v978 = vunpack.c.l.b16 %v946
    %v979 = vunpack.c.l.b16 %v947
    %v980 = vunpack.c.l.b16 %v948
    %v981 = vunpack.c.l.b16 %v949
    %v982 = vunpack.c.l.b16 %v950
    %v983 = vunpack.c.l.b16 %v951
    %v984 = vunpack.c.l.b16 %v952
    %v985 = vunpack.c.l.b16 %v953
    %v986 = vpack.c.b16 %v971, %v970
    %v987 = vpack.c.b16 %v973, %v972
    %v988 = vpack.c.b16 %v975, %v974
    %v989 = vpack.c.b16 %v977, %v976
    %v990 = vpack.c.b16 %v979, %v978
    %v991 = vpack.c.b16 %v981, %v980
    %v992 = vpack.c.b16 %v983, %v982
    %v993 = vpack.c.b16 %v985, %v984
    %1002 = vmatpush.bf16.msra.mxu0 %v993
    %1003 = vmatpush.bf16.msra.mxu0 %v992
    %1004 = vmatpush.bf16.msra.mxu0 %v991
    %1005 = vmatpush.bf16.msra.mxu0 %v990
    %1006 = vmatpush.bf16.msra.mxu0 %v989
    %1007 = vmatpush.bf16.msra.mxu0 %v988
    %1008 = vmatpush.bf16.msra.mxu0 %v987
    %1009 = vmatpush.bf16.msra.mxu0 %v986
    %1010 = vmatmul.bf16.gmra.mxu0 %v937
    %v1011 = vpop.f32.mrf.mxu0
    %v1012 = vadd.f32 0.0, %v1011
    %v1013 = vpop.f32.mrf.mxu0
    %v1014 = vadd.f32 0.0, %v1013
    %1015 = vdwg.mxu0
    %v1016 = vadd.f32 %v860, %v1012
    %v1017 = vadd.f32 %v861, %v1014
    %v1018 = vperm.slane %v1016, 0
    %v1019 = vperm.slane %v1017, 0
    %v1020 = vmul.f32 %v1016, %v1018
    %v1021 = vmul.f32 %v1017, %v1019
    %v1022 = vsel %vm107, %v1020, 0.0
    %1023 = vadd.xlane.f32.xlu0 %v1022
    %v1024 = vpop.xlane.xlu0 %1023
    %v1025 = vsel %vm107, %v1021, 0.0
    %1026 = vadd.xlane.f32.xlu0 %v1025
    %v1027 = vpop.xlane.xlu0 %1026
    %v1028 = vmul.f32 %v1024, 0.17677669
    %v1029 = vmul.f32 %v1027, 0.17677669
    %v1030 = vlaneseq
    %v1031 = vshrl.u32 %v1030, 7
    %v1032 = vlaneseq
    %v1033 = vand.u32 %v1032, 127
    %v1036 = vperm.slane %v1028, 0
    %v1037 = vperm.slane %v1028, 1
    %v1038 = vperm.slane %v1028, 2
    %v1039 = vperm.slane %v1028, 3
    %v1040 = vperm.slane %v1028, 4
    %v1041 = vperm.slane %v1028, 5
    %v1042 = vperm.slane %v1028, 6
    %v1043 = vperm.slane %v1028, 7
    %v1044 = vperm.slane %v1029, 0
    %v1045 = vperm.slane %v1029, 1
    %v1046 = vperm.slane %v1029, 2
    %v1047 = vperm.slane %v1029, 3
    %v1048 = vperm.slane %v1029, 4
    %v1049 = vperm.slane %v1029, 5
    %v1050 = vperm.slane %v1029, 6
    %v1051 = vperm.slane %v1029, 7
    %vm1068 = vcmp.gt.f32.partialorder %v1028, %v1036
    %vm1069 = vcmp.gt.f32.partialorder %v1028, %v1037
    %vm1070 = vcmp.gt.f32.partialorder %v1028, %v1038
    %vm1071 = vcmp.gt.f32.partialorder %v1028, %v1039
    %vm1072 = vcmp.gt.f32.partialorder %v1028, %v1040
    %vm1073 = vcmp.gt.f32.partialorder %v1028, %v1041
    %vm1074 = vcmp.gt.f32.partialorder %v1028, %v1042
    %vm1075 = vcmp.gt.f32.partialorder %v1028, %v1043
    %vm1076 = vcmp.gt.f32.partialorder %v1029, %v1044
    %vm1077 = vcmp.gt.f32.partialorder %v1029, %v1045
    %vm1078 = vcmp.gt.f32.partialorder %v1029, %v1046
    %vm1079 = vcmp.gt.f32.partialorder %v1029, %v1047
    %vm1080 = vcmp.gt.f32.partialorder %v1029, %v1048
    %vm1081 = vcmp.gt.f32.partialorder %v1029, %v1049
    %vm1082 = vcmp.gt.f32.partialorder %v1029, %v1050
    %vm1083 = vcmp.gt.f32.partialorder %v1029, %v1051
    %vm1084 = vcmp.eq.f32.partialorder %v1028, %v1036
    %vm1085 = vcmp.eq.f32.partialorder %v1028, %v1037
    %vm1086 = vcmp.eq.f32.partialorder %v1028, %v1038
    %vm1087 = vcmp.eq.f32.partialorder %v1028, %v1039
    %vm1088 = vcmp.eq.f32.partialorder %v1028, %v1040
    %vm1089 = vcmp.eq.f32.partialorder %v1028, %v1041
    %vm1090 = vcmp.eq.f32.partialorder %v1028, %v1042
    %vm1091 = vcmp.eq.f32.partialorder %v1028, %v1043
    %vm1092 = vcmp.eq.f32.partialorder %v1029, %v1044
    %vm1093 = vcmp.eq.f32.partialorder %v1029, %v1045
    %vm1094 = vcmp.eq.f32.partialorder %v1029, %v1046
    %vm1095 = vcmp.eq.f32.partialorder %v1029, %v1047
    %vm1096 = vcmp.eq.f32.partialorder %v1029, %v1048
    %vm1097 = vcmp.eq.f32.partialorder %v1029, %v1049
    %vm1098 = vcmp.eq.f32.partialorder %v1029, %v1050
    %vm1099 = vcmp.eq.f32.partialorder %v1029, %v1051
    %vm1100 = vcmp.lt.s32.totalorder %v1033, %v1031
    %v1101 = vsel %vm1100, 1, 0
    %vm1102 = vcmp.eq.s32.totalorder %v1101, 1
    %v1103 = vsel %vm1102, 1, 0
    %v1104 = vperm.slane %v1103, 0
    %v1105 = vlaneseq
    %v1106 = vshrl.u32 %v1105, 7
    %1108 = vset.pattern.permute.xlu0 %v1106
    %1109 = vperm.xlu0 %1108, %v1104
    %v1110 = vpop.permute.xlu0 %1109
    %v1111 = vperm.slane %v1103, 1
    %v1112 = vlaneseq
    %v1113 = vshrl.u32 %v1112, 7
    %1115 = vset.pattern.permute.xlu0 %v1113
    %1116 = vperm.xlu0 %1115, %v1111
    %v1117 = vpop.permute.xlu0 %1116
    %v1118 = vperm.slane %v1103, 2
    %v1119 = vlaneseq
    %v1120 = vshrl.u32 %v1119, 7
    %1122 = vset.pattern.permute.xlu0 %v1120
    %1123 = vperm.xlu0 %1122, %v1118
    %v1124 = vpop.permute.xlu0 %1123
    %v1125 = vperm.slane %v1103, 3
    %v1126 = vlaneseq
    %v1127 = vshrl.u32 %v1126, 7
    %1129 = vset.pattern.permute.xlu0 %v1127
    %1130 = vperm.xlu0 %1129, %v1125
    %v1131 = vpop.permute.xlu0 %1130
    %v1132 = vperm.slane %v1103, 4
    %v1133 = vlaneseq
    %v1134 = vshrl.u32 %v1133, 7
    %1136 = vset.pattern.permute.xlu0 %v1134
    %1137 = vperm.xlu0 %1136, %v1132
    %v1138 = vpop.permute.xlu0 %1137
    %v1139 = vperm.slane %v1103, 5
    %v1140 = vlaneseq
    %v1141 = vshrl.u32 %v1140, 7
    %1143 = vset.pattern.permute.xlu0 %v1141
    %1144 = vperm.xlu0 %1143, %v1139
    %v1145 = vpop.permute.xlu0 %1144
    %v1146 = vperm.slane %v1103, 6
    %v1147 = vlaneseq
    %v1148 = vshrl.u32 %v1147, 7
    %1150 = vset.pattern.permute.xlu0 %v1148
    %1151 = vperm.xlu0 %1150, %v1146
    %v1152 = vpop.permute.xlu0 %1151
    %v1153 = vperm.slane %v1103, 7
    %v1154 = vlaneseq
    %v1155 = vshrl.u32 %v1154, 7
    %1157 = vset.pattern.permute.xlu0 %v1155
    %1158 = vperm.xlu0 %1157, %v1153
    %v1159 = vpop.permute.xlu0 %1158
    %vm1160 = vcmp.ne.s32.totalorder %v1110, 0
    %vm1161 = vcmp.ne.s32.totalorder %v1117, 0
    %vm1162 = vcmp.ne.s32.totalorder %v1124, 0
    %vm1163 = vcmp.ne.s32.totalorder %v1131, 0
    %vm1164 = vcmp.ne.s32.totalorder %v1138, 0
    %vm1165 = vcmp.ne.s32.totalorder %v1145, 0
    %vm1166 = vcmp.ne.s32.totalorder %v1152, 0
    %vm1167 = vcmp.ne.s32.totalorder %v1159, 0
    %vm1168 = vmand %vm1084, %vm1160
    %vm1169 = vmand %vm1085, %vm1161
    %vm1170 = vmand %vm1086, %vm1162
    %vm1171 = vmand %vm1087, %vm1163
    %vm1172 = vmand %vm1088, %vm1164
    %vm1173 = vmand %vm1089, %vm1165
    %vm1174 = vmand %vm1090, %vm1166
    %vm1175 = vmand %vm1091, %vm1167
    %vm1176 = vmand %vm1092, %vm1160
    %vm1177 = vmand %vm1093, %vm1161
    %vm1178 = vmand %vm1094, %vm1162
    %vm1179 = vmand %vm1095, %vm1163
    %vm1180 = vmand %vm1096, %vm1164
    %vm1181 = vmand %vm1097, %vm1165
    %vm1182 = vmand %vm1098, %vm1166
    %vm1183 = vmand %vm1099, %vm1167
    %vm1184 = vmor %vm1068, %vm1168
    %vm1185 = vmor %vm1069, %vm1169
    %vm1186 = vmor %vm1070, %vm1170
    %vm1187 = vmor %vm1071, %vm1171
    %vm1188 = vmor %vm1072, %vm1172
    %vm1189 = vmor %vm1073, %vm1173
    %vm1190 = vmor %vm1074, %vm1174
    %vm1191 = vmor %vm1075, %vm1175
    %vm1192 = vmor %vm1076, %vm1176
    %vm1193 = vmor %vm1077, %vm1177
    %vm1194 = vmor %vm1078, %vm1178
    %vm1195 = vmor %vm1079, %vm1179
    %vm1196 = vmor %vm1080, %vm1180
    %vm1197 = vmor %vm1081, %vm1181
    %vm1198 = vmor %vm1082, %vm1182
    %vm1199 = vmor %vm1083, %vm1183
    %v1200 = vsel %vm1184, 1, 0
    %v1201 = vsel %vm1185, 1, 0
    %v1202 = vsel %vm1186, 1, 0
    %v1203 = vsel %vm1187, 1, 0
    %v1204 = vsel %vm1188, 1, 0
    %v1205 = vsel %vm1189, 1, 0
    %v1206 = vsel %vm1190, 1, 0
    %v1207 = vsel %vm1191, 1, 0
    %v1208 = vsel %vm1192, 1, 0
    %v1209 = vsel %vm1193, 1, 0
    %v1210 = vsel %vm1194, 1, 0
    %v1211 = vsel %vm1195, 1, 0
    %v1212 = vsel %vm1196, 1, 0
    %v1213 = vsel %vm1197, 1, 0
    %v1214 = vsel %vm1198, 1, 0
    %v1215 = vsel %vm1199, 1, 0
    %v1216 = vcvt.s32.f32 %v1200
    %v1217 = vcvt.s32.f32 %v1201
    %v1218 = vcvt.s32.f32 %v1202
    %v1219 = vcvt.s32.f32 %v1203
    %v1220 = vcvt.s32.f32 %v1204
    %v1221 = vcvt.s32.f32 %v1205
    %v1222 = vcvt.s32.f32 %v1206
    %v1223 = vcvt.s32.f32 %v1207
    %v1224 = vcvt.s32.f32 %v1208
    %v1225 = vcvt.s32.f32 %v1209
    %v1226 = vcvt.s32.f32 %v1210
    %v1227 = vcvt.s32.f32 %v1211
    %v1228 = vcvt.s32.f32 %v1212
    %v1229 = vcvt.s32.f32 %v1213
    %v1230 = vcvt.s32.f32 %v1214
    %v1231 = vcvt.s32.f32 %v1215
    %1248 = vset.pattern.permute.xlu0 0
    %1249 = vperm.xlu0 %1248, %v1216
    %v1250 = vpop.permute.xlu0 %1249
    %1251 = vset.pattern.permute.xlu0 0
    %1252 = vperm.xlu0 %1251, %v1217
    %v1253 = vpop.permute.xlu0 %1252
    %1254 = vset.pattern.permute.xlu0 0
    %1255 = vperm.xlu0 %1254, %v1218
    %v1256 = vpop.permute.xlu0 %1255
    %1257 = vset.pattern.permute.xlu0 0
    %1258 = vperm.xlu0 %1257, %v1219
    %v1259 = vpop.permute.xlu0 %1258
    %1260 = vset.pattern.permute.xlu0 0
    %1261 = vperm.xlu0 %1260, %v1220
    %v1262 = vpop.permute.xlu0 %1261
    %1263 = vset.pattern.permute.xlu0 0
    %1264 = vperm.xlu0 %1263, %v1221
    %v1265 = vpop.permute.xlu0 %1264
    %1266 = vset.pattern.permute.xlu0 0
    %1267 = vperm.xlu0 %1266, %v1222
    %v1268 = vpop.permute.xlu0 %1267
    %1269 = vset.pattern.permute.xlu0 0
    %1270 = vperm.xlu0 %1269, %v1223
    %v1271 = vpop.permute.xlu0 %1270
    %1272 = vset.pattern.permute.xlu0 0
    %1273 = vperm.xlu0 %1272, %v1224
    %v1274 = vpop.permute.xlu0 %1273
    %1275 = vset.pattern.permute.xlu0 0
    %1276 = vperm.xlu0 %1275, %v1225
    %v1277 = vpop.permute.xlu0 %1276
    %1278 = vset.pattern.permute.xlu0 0
    %1279 = vperm.xlu0 %1278, %v1226
    %v1280 = vpop.permute.xlu0 %1279
    %1281 = vset.pattern.permute.xlu0 0
    %1282 = vperm.xlu0 %1281, %v1227
    %v1283 = vpop.permute.xlu0 %1282
    %1284 = vset.pattern.permute.xlu0 0
    %1285 = vperm.xlu0 %1284, %v1228
    %v1286 = vpop.permute.xlu0 %1285
    %1287 = vset.pattern.permute.xlu0 0
    %1288 = vperm.xlu0 %1287, %v1229
    %v1289 = vpop.permute.xlu0 %1288
    %1290 = vset.pattern.permute.xlu0 0
    %1291 = vperm.xlu0 %1290, %v1230
    %v1292 = vpop.permute.xlu0 %1291
    %1293 = vset.pattern.permute.xlu0 0
    %1294 = vperm.xlu0 %1293, %v1231
    %v1295 = vpop.permute.xlu0 %1294
    %v1296 = vperm.slane %v1250, %v1033
    %v1297 = vperm.slane %v1253, %v1033
    %v1298 = vperm.slane %v1256, %v1033
    %v1299 = vperm.slane %v1259, %v1033
    %v1300 = vperm.slane %v1262, %v1033
    %v1301 = vperm.slane %v1265, %v1033
    %v1302 = vperm.slane %v1268, %v1033
    %v1303 = vperm.slane %v1271, %v1033
    %v1304 = vperm.slane %v1274, %v1033
    %v1305 = vperm.slane %v1277, %v1033
    %v1306 = vperm.slane %v1280, %v1033
    %v1307 = vperm.slane %v1283, %v1033
    %v1308 = vperm.slane %v1286, %v1033
    %v1309 = vperm.slane %v1289, %v1033
    %v1310 = vperm.slane %v1292, %v1033
    %v1311 = vperm.slane %v1295, %v1033
    %vm1312 = vcmask 1041409
    %v1313 = vsel %vm1312, %v1297, %v1296
    %vm1314 = vcmask 1042434
    %v1315 = vsel %vm1314, %v1298, %v1313
    %vm1316 = vcmask 1043459
    %v1317 = vsel %vm1316, %v1299, %v1315
    %vm1318 = vcmask 1044484
    %v1319 = vsel %vm1318, %v1300, %v1317
    %vm1320 = vcmask 1045509
    %v1321 = vsel %vm1320, %v1301, %v1319
    %vm1322 = vcmask 1046534
    %v1323 = vsel %vm1322, %v1302, %v1321
    %vm1324 = vcmask 1047559
    %v1325 = vsel %vm1324, %v1303, %v1323
    %v1326 = vsel %vm1312, %v1305, %v1304
    %v1327 = vsel %vm1314, %v1306, %v1326
    %v1328 = vsel %vm1316, %v1307, %v1327
    %v1329 = vsel %vm1318, %v1308, %v1328
    %v1330 = vsel %vm1320, %v1309, %v1329
    %v1331 = vsel %vm1322, %v1310, %v1330
    %v1332 = vsel %vm1324, %v1311, %v1331
    %v1335 = vsel %vm259, %v1325, 0.0
    %1336 = vadd.xlane.f32.xlu0 %v1335
    %v1337 = vpop.xlane.xlu0 %1336
    %v1338 = vsel %vm259, %v1332, 0.0
    %1339 = vadd.xlane.f32.xlu0 %v1338
    %v1340 = vpop.xlane.xlu0 %1339
    %vm1341 = vcmp.lt.f32.partialorder %v1337, 5.0
    %vm1342 = vcmp.lt.f32.partialorder %v1340, 5.0
    %v1343 = vsel %vm1341, 1, 0
    %v1344 = vsel %vm1342, 1, 0
    %v1345 = vcvt.s32.f32 %v1343
    %v1346 = vcvt.s32.f32 %v1344
    %v1347 = vmul.f32 %v1016, %v1345
    %v1348 = vmul.f32 %v1017, %v1346
    %v1349 = vsel %vm107, %v1347, 0.0
    %v1350 = vrot.slane %v1349, 4
    %v1351 = vadd.f32 %v1349, %v1350
    %v1352 = vrot.slane %v1351, 2
    %v1353 = vadd.f32 %v1351, %v1352
    %v1354 = vrot.slane %v1353, 1
    %v1355 = vadd.f32 %v1353, %v1354
    %v1356 = vsel %vm107, %v1348, 0.0
    %v1357 = vrot.slane %v1356, 4
    %v1358 = vadd.f32 %v1356, %v1357
    %v1359 = vrot.slane %v1358, 2
    %v1360 = vadd.f32 %v1358, %v1359
    %v1361 = vrot.slane %v1360, 1
    %v1362 = vadd.f32 %v1360, %v1361
    %v1363 = vmul.f32 %v1355, 0.2
    %v1364 = vmul.f32 %v1362, 0.2
    %v1365 = vld [vmem:[%s13] sm:$0x1]
    %v1366 = vld [vmem:[%s14] sm:$0x1]
    %v1369 = vsel %vm1312, %v1364, %v1363
    %vm1371 = vcmask 254976
    %v1372 = vsel %vm1371, %v1369, 0.0
    %1373 = vadd.xlane.f32.xlu0 %v1372
    %v1374 = vpop.xlane.xlu0 %1373
    %v1375 = vmul.f32 %v1374, %v120
    %v1377 = vrot.slane %v1375, 1
    %v1380 = vsub.f32 %v1363, %v1375
    %v1381 = vsub.f32 %v1364, %v1377
    %v1382 = vmul.f32 %v1380, %v1380
    %v1383 = vmul.f32 %v1381, %v1381
    %v1386 = vrot.slane %v1383, 7
    %v1387 = vsel %vm1312, %v1386, %v1382
    %v1389 = vsel %vm1371, %v1387, 0.0
    %1390 = vadd.xlane.f32.xlu0 %v1389
    %v1391 = vpop.xlane.xlu0 %1390
    %v1392 = vmul.f32 %v1391, %v120
    %v1393 = vadd.f32 %v1392, 1e-05
    %v1394 = vrsqrt.pop %v1393
    %v1395 = vmul.f32 %v1394, %v1393
    %v1396 = vmul.f32 %v1395, %v1394
    %v1397 = vmul.f32 0.5, %v1396
    %v1398 = vsub.f32 1.5, %v1397
    %v1399 = vmul.f32 %v1394, %v1398
    %vm1400 = vweird.f32 %v1393
    %vm1401 = vweird.f32 %v1394
    %vm1402 = vmor %vm1400, %vm1401
    %v1403 = vsel %vm1402, %v1394, %v1399
    %v1405 = vrot.slane %v1403, 1
    %v1408 = vmul.f32 %v1380, %v1403
    %v1409 = vmul.f32 %v1381, %v1405
    %v1411 = vperm.slane %v1365, 0
    %v1413 = vmul.f32 %v1408, %v1411
    %v1414 = vmul.f32 %v1409, %v1411
    %v1416 = vperm.slane %v1366, 0
    %v1418 = vadd.f32 %v1413, %v1416
    %v1419 = vadd.f32 %v1414, %v1416
    %v1420 = vpack.c.bf16 %v1418, %v1418
    %v1421 = vpack.c.bf16 %v1419, %v1419
    %v1422 = vld [vmem:[%s15] sm:$0xff]
    %v1423 = vld [vmem:[%s15 + $0x8] sm:$0xff]
    %v1424 = vld [vmem:[%s15 + $0x10] sm:$0xff]
    %v1425 = vld [vmem:[%s15 + $0x18] sm:$0xff]
    %v1426 = vld [vmem:[%s15 + $0x20] sm:$0xff]
    %v1427 = vld [vmem:[%s15 + $0x28] sm:$0xff]
    %v1428 = vld [vmem:[%s15 + $0x30] sm:$0xff]
    %v1429 = vld [vmem:[%s15 + $0x38] sm:$0xff]
    %v1432 = vunpack.c.l.b16 %v1420
    %v1433 = vunpack.c.l.b16 %v1421
    %v1434 = vrot.slane %v1433, 7
    %v1435 = vsel %vm1312, %v1434, %v1432
    %v1436 = vpack.c.b16 %v1435, %v1435
    %v1445 = vunpack.c.l.b16 %v1422
    %v1446 = vunpack.c.h.b16 %v1422
    %v1447 = vunpack.c.l.b16 %v1423
    %v1448 = vunpack.c.h.b16 %v1423
    %v1449 = vunpack.c.l.b16 %v1424
    %v1450 = vunpack.c.h.b16 %v1424
    %v1451 = vunpack.c.l.b16 %v1425
    %v1452 = vunpack.c.h.b16 %v1425
    %v1453 = vunpack.c.l.b16 %v1426
    %v1454 = vunpack.c.h.b16 %v1426
    %v1455 = vunpack.c.l.b16 %v1427
    %v1456 = vunpack.c.h.b16 %v1427
    %v1457 = vunpack.c.l.b16 %v1428
    %v1458 = vunpack.c.h.b16 %v1428
    %v1459 = vunpack.c.l.b16 %v1429
    %v1460 = vunpack.c.h.b16 %v1429
    %v1461 = vpack.c.b16 %v1449, %v1445
    %v1462 = vpack.c.b16 %v1450, %v1446
    %v1463 = vpack.c.b16 %v1451, %v1447
    %v1464 = vpack.c.b16 %v1452, %v1448
    %v1465 = vpack.c.b16 %v1457, %v1453
    %v1466 = vpack.c.b16 %v1458, %v1454
    %v1467 = vpack.c.b16 %v1459, %v1455
    %v1468 = vpack.c.b16 %v1460, %v1456
    %v1478 = vsel %vm107, %v1436, 0
    %1480 = vmatpush.bf16.msra.mxu0 0
    %1481 = vmatpush.bf16.msra.mxu0 0
    %1482 = vmatpush.bf16.msra.mxu0 0
    %1483 = vmatpush.bf16.msra.mxu0 0
    %1484 = vmatpush.bf16.msra.mxu0 0
    %1485 = vmatpush.bf16.msra.mxu0 0
    %1486 = vmatpush.bf16.msra.mxu0 %v1465
    %1487 = vmatpush.bf16.msra.mxu0 %v1461
    %1488 = vmatmul.bf16.gmra.mxu0 %v1478
    %v1489 = vpop.f32.mrf.mxu0
    %v1490 = vadd.f32 0.0, %v1489
    %v1491 = vpop.f32.mrf.mxu0
    %1492 = vdwg.mxu0
    %1493 = vmatpush.bf16.msra.mxu0 0
    %1494 = vmatpush.bf16.msra.mxu0 0
    %1495 = vmatpush.bf16.msra.mxu0 0
    %1496 = vmatpush.bf16.msra.mxu0 0
    %1497 = vmatpush.bf16.msra.mxu0 0
    %1498 = vmatpush.bf16.msra.mxu0 0
    %1499 = vmatpush.bf16.msra.mxu0 %v1466
    %1500 = vmatpush.bf16.msra.mxu0 %v1462
    %1501 = vmatmul.bf16.gmra.mxu0 %v1478
    %v1502 = vpop.f32.mrf.mxu0
    %v1503 = vadd.f32 0.0, %v1502
    %v1504 = vpop.f32.mrf.mxu0
    %1505 = vdwg.mxu0
    %1506 = vmatpush.bf16.msra.mxu0 0
    %1507 = vmatpush.bf16.msra.mxu0 0
    %1508 = vmatpush.bf16.msra.mxu0 0
    %1509 = vmatpush.bf16.msra.mxu0 0
    %1510 = vmatpush.bf16.msra.mxu0 0
    %1511 = vmatpush.bf16.msra.mxu0 0
    %1512 = vmatpush.bf16.msra.mxu0 %v1467
    %1513 = vmatpush.bf16.msra.mxu0 %v1463
    %1514 = vmatmul.bf16.gmra.mxu0 %v1478
    %v1515 = vpop.f32.mrf.mxu0
    %v1516 = vadd.f32 0.0, %v1515
    %v1517 = vpop.f32.mrf.mxu0
    %1518 = vdwg.mxu0
    %1519 = vmatpush.bf16.msra.mxu0 0
    %1520 = vmatpush.bf16.msra.mxu0 0
    %1521 = vmatpush.bf16.msra.mxu0 0
    %1522 = vmatpush.bf16.msra.mxu0 0
    %1523 = vmatpush.bf16.msra.mxu0 0
    %1524 = vmatpush.bf16.msra.mxu0 0
    %1525 = vmatpush.bf16.msra.mxu0 %v1468
    %1526 = vmatpush.bf16.msra.mxu0 %v1464
    %1527 = vmatmul.bf16.gmra.mxu0 %v1478
    %v1528 = vpop.f32.mrf.mxu0
    %v1529 = vadd.f32 0.0, %v1528
    %v1530 = vpop.f32.mrf.mxu0
    %1531 = vdwg.mxu0
    %v1536 = vrot.slane %v1503, 6
    %v1537 = vrot.slane %v1516, 4
    %v1538 = vrot.slane %v1529, 2
    %vm1539 = vcmask 1041408
    %v1540 = vsel %vm1539, %v1490, %v1536
    %vm1541 = vcmask 1045508
    %v1542 = vsel %vm1541, %v1537, %v1538
    %v1543 = vsel %vm325, %v1540, %v1542
    %1545 = vst [vmem:[#allocation9] sm:$0xff] %v1543
    // Predicated region
    $region78: #{tpu_custom_call.1} parent=1 // pred_check
      _
    $region79: #{tpu_custom_call.1} parent=1 // pred_check_branch
      %1547 = sbr.rel (0) target = $region81
    $region80: #{tpu_custom_call.1} parent=1 // pred_region
      %1549 = vsyncadd [#allocation5], 0
      %s1551 = sshll.u32 [#allocation9], 4
      %s1552 = int_to_ptr.vmem [resolvable:$true] %s1551
      %s1553 = sshll.u32 %s16, 4
      %s1554 = int_to_ptr.hbm [resolvable:$true] %s1553
      %1556 = dma.vmem_to_hbm [thread:$0]  %s1552, 128, %s1554, [#allocation5]
    $region81: #{tpu_custom_call.1} parent=1 // pred_fallthru
      _
    // Predicated region
    $region82: #{tpu_custom_call.1} parent=1 // pred_check
      _
    $region83: #{tpu_custom_call.1} parent=1 // pred_check_branch
      %1558 = sbr.rel (0) target = $region85
    $region84: #{tpu_custom_call.1} parent=1 // pred_region
      %1560 = dma.done [#allocation5], 128
    $region85: #{tpu_custom_call.1} parent=1 // pred_fallthru
      _
    %1561 = vsyncpa [#allocation4], 1
    %1562 = vsyncpa [#allocation7], 1
    %1563 = vsyncpa [#allocation5], 1

</llo_original>
